<compile_context>
chip_gen: v7x
topology: tpu7x:2x2x1
jax: 0.10.0
libtpu: 0.0.40
codegen_flags: <defaults>
</compile_context>

<pallas_src>
import jax
import jax.numpy as jnp
from jax import lax
from jax.experimental import pallas as pl
from jax.experimental.pallas import tpu as pltpu
import numpy as np


# (ki, kj) taps of a 3x3 kernel, t = ki*3 + kj.
_TAPS3x3 = [(ki, kj) for ki in range(3) for kj in range(3)]


# ----------------------------------------------------------------------------
# Fused Pallas kernel: whole lenet forward
# ----------------------------------------------------------------------------

def lenet_fused_kernel(jcol_ref, s_ref, w1r_ref, b1c_ref, sel1_ref, w2p_ref,
                       b2c_ref, sel2_ref, w1js_ref, b1l_ref, w2l_ref, b2l_ref,
                       o_ref, y1_ref, x1_ref, y2_ref, f2_ref, fr_ref):
  f32 = jnp.float32

  # ---- conv1 (1->6, 3x3): ONE im2col MXU matmul, K=16 ----------------------
  # rows r = h*22 + w (h<=19 valid, w<=19 valid); lanes = channels (>=6 zero).
  y1_ref[...] = jnp.maximum(
      jnp.dot(jcol_ref[...], w1r_ref[...], preferred_element_type=f32)
      + b1c_ref[...], 0.0)                                   # (448, 128)

  # ---- max-pool 2x2 #1: elementwise 4-tap max + ONE selection matmul -------
  # vm1[r] = max(y1[r], y1[r+1], y1[r+22], y1[r+23]); only rows 44*ph+2*pw
  # (ph,pw<=9) are ever selected, so mixed-in garbage rows are harmless.
  vm1 = jnp.maximum(
      jnp.maximum(y1_ref[0:416, :], y1_ref[1:417, :]),
      jnp.maximum(y1_ref[22:438, :], y1_ref[23:439, :]))     # (416, 128)
  # x1[ph*16+pw, :] = vm1[44*ph+2*pw, :]; other rows (incl. 160..167) -> 0.
  x1_ref[...] = jnp.dot(sel1_ref[...], vm1,
                        preferred_element_type=f32)          # (168, 128)

  # ---- conv2 (6->16, 3x3): lane-pack 9 taps into ONE (128,128) LHS ---------
  # tap t occupies lanes [8t, 8t+8); x1 lanes >= 6 are zero so rolls don't
  # collide.  Rows r = h2*16 + w2 (h2,w2 <= 7 valid).
  packed = x1_ref[0:128, :]
  for t, (ki, kj) in enumerate(_TAPS3x3):
    if t == 0:
      continue
    off = ki * 16 + kj
    packed = packed + pltpu.roll(x1_ref[off:off + 128, :], 8 * t, axis=1)
  y2_ref[...] = jnp.maximum(
      jnp.dot(packed, w2p_ref[...], preferred_element_type=f32)
      + b2c_ref[...], 0.0)                                   # (128, 128)

  # ---- max-pool 2x2 #2: elementwise 4-tap max + tiny selection matmul ------
  vm2 = jnp.maximum(
      jnp.maximum(y2_ref[0:104, :], y2_ref[1:105, :]),
      jnp.maximum(y2_ref[16:120, :], y2_ref[17:121, :]))     # (104, 128)
  # f2[ph2*4+pw2, c] = vm2[32*ph2+2*pw2, c]
  f2_ref[...] = jnp.dot(sel2_ref[...], vm2,
                        preferred_element_type=f32)          # (16, 128)

  # ---- flatten (pos, chan) sublanes -> lanes of one (1,384) row ------------
  # fr lane 16*p + c = pooled2[p, c]; lanes 256..383 = [s1 | s2 | zeros].
  for p in range(16):
    fr_ref[0:1, 16 * p:16 * p + 16] = f2_ref[p:p + 1, 0:16]
  fr_ref[0:1, 256:384] = s_ref[...]

  # ---- linear1 + ReLU: ONE (1,384)x(384,128) matmul -------------------------
  h1 = jnp.maximum(
      jnp.dot(fr_ref[...], w1js_ref[...], preferred_element_type=f32)
      + b1l_ref[...], 0.0)                                   # (1, 128)

  # ---- linear2 + log_softmax ------------------------------------------------
  z2 = jnp.dot(h1, w2l_ref[...], preferred_element_type=f32) + b2l_ref[...]
  m = jnp.max(z2, axis=-1, keepdims=True)
  e = jnp.exp(z2 - m)
  o_ref[...] = (z2 - m) - jnp.log(jnp.sum(e, axis=-1, keepdims=True))


def _vmem_spec():
  return pl.BlockSpec(memory_space=pltpu.MemorySpace.VMEM)


# ----------------------------------------------------------------------------
# Parameter preparation (runs ONCE, outside jit): fold all transposes, the
# PyTorch (c,h,w) flatten permutation, lane/sublane padding AND the pooling
# selection matrices into stored constants.
# ----------------------------------------------------------------------------

def prepare_params(params):
  f32 = jnp.float32

  # conv1: w1r[ki*3+kj, c] = w_conv1[c,0,ki,kj]; lanes >= 6 zero.
  w_c1 = params["w_conv1"].astype(f32)                       # (6,1,3,3)
  w1r = jnp.zeros((16, 128), f32).at[:9, :6].set(w_c1.reshape(6, 9).T)
  b1c = jnp.zeros((1, 128), f32).at[0, :6].set(params["b_conv1"].astype(f32))

  # conv2: packed RHS, rows 8t+c = w_conv2[o,c,ki,kj]; rows>=72 / cols>=16 zero.
  w_c2 = params["w_conv2"].astype(f32)                       # (16,6,3,3)
  wt = jnp.transpose(w_c2, (2, 3, 1, 0)).reshape(9, 6, 16)   # [t, c, o]
  wt_p = jnp.zeros((9, 8, 16), f32).at[:, :6, :].set(wt)
  w2p = jnp.zeros((128, 128), f32).at[:72, :16].set(wt_p.reshape(72, 16))
  b2c = jnp.zeros((1, 128), f32).at[0, :16].set(params["b_conv2"].astype(f32))

  # Pooling selection matrices (input independent, built once).
  sel1 = np.zeros((168, 416), np.float32)
  for ph in range(10):
    for pw in range(10):
      sel1[ph * 16 + pw, 44 * ph + 2 * pw] = 1.0
  sel2 = np.zeros((16, 104), np.float32)
  for ph in range(4):
    for pw in range(4):
      sel2[ph * 4 + pw, 32 * ph + 2 * pw] = 1.0

  # linear1: rows [16*p + c] <- W1[:, c*16 + p] (folds PyTorch flatten order),
  # rows [256 + k] <- W1[:, 256 + k] (s1|s2 part); rest zero.
  w_l1 = params["w_lin1"].astype(f32)                        # (128, 298)
  w1j = jnp.transpose(w_l1[:, :256].reshape(128, 16, 16),
                      (2, 1, 0)).reshape(256, 128)
  w1js = (jnp.zeros((384, 128), f32)
          .at[:256, :].set(w1j)
          .at[256:298, :].set(w_l1[:, 256:].T))
  b1l = params["b_lin1"].astype(f32).reshape(1, 128)

  w2l = params["w_lin2"].astype(f32).T                       # (128, 64)
  b2l = params["b_lin2"].astype(f32).reshape(1, 64)
  return dict(w1r=w1r, b1c=b1c, sel1=jnp.asarray(sel1), w2p=w2p, b2c=b2c,
              sel2=jnp.asarray(sel2), w1js=w1js, b1l=b1l, w2l=w2l, b2l=b2l)


# ----------------------------------------------------------------------------
# Forward: single fused pallas_call
# ----------------------------------------------------------------------------

@jax.jit
def lenet_forward(kp, J, s1, s2):
  # Per-call input prep: 9-tap im2col of J (rows r = h*22+w, 448 rows with
  # 8 padding rows never selected) and the packed s1|s2 row.
  j_flat = jnp.pad(J.reshape(-1).astype(jnp.float32), (0, 12))      # (496,)
  cols = jnp.stack([j_flat[ki * 22 + kj: ki * 22 + kj + 448]
                    for ki in range(3) for kj in range(3)], axis=1)  # (448, 9)
  jcol = jnp.pad(cols, ((0, 0), (0, 7)))                             # (448, 16)
  s_row = (jnp.zeros((1, 128), jnp.float32)
           .at[0, 0:21].set(s1).at[0, 21:42].set(s2))

  return pl.pallas_call(
      lenet_fused_kernel,
      out_shape=jax.ShapeDtypeStruct((1, 64), jnp.float32),
      in_specs=[_vmem_spec()] * 12,
      out_specs=_vmem_spec(),
      scratch_shapes=[pltpu.VMEM((448, 128), jnp.float32),   # y1 (conv1 out)
                      pltpu.VMEM((168, 128), jnp.float32),   # x1 (pooled 1)
                      pltpu.VMEM((128, 128), jnp.float32),   # y2 (conv2 out)
                      pltpu.VMEM((16, 128), jnp.float32),    # f2 (pooled 2)
                      pltpu.VMEM((1, 384), jnp.float32)],    # flattened row
      # Actual executed MXU work (~12M MACs) after restructuring; the useful
      # model FLOPs are far smaller — this is only an XLA scheduling hint.
      cost_estimate=pl.CostEstimate(flops=25_000_000,
                                    transcendentals=70,
                                    bytes_accessed=650_000),
  )(jcol, s_row, kp["w1r"], kp["b1c"], kp["sel1"], kp["w2p"], kp["b2c"],
    kp["sel2"], kp["w1js"], kp["b1l"], kp["w2l"], kp["b2l"])


# ----------------------------------------------------------------------------
# Pure-JAX reference (independent check of the Pallas implementation)
# ----------------------------------------------------------------------------

def lenet_reference(params, J, s1, s2):
  hi = lax.Precision.HIGHEST
  x = J.reshape(1, 1, 22, 22)
  y = lax.conv_general_dilated(x, params["w_conv1"], (1, 1), "VALID",
                               dimension_numbers=("NCHW", "OIHW", "NCHW"),
                               precision=hi)
  y = jnp.maximum(y + params["b_conv1"].reshape(1, -1, 1, 1), 0.0)
  y = lax.reduce_window(y, -jnp.inf, lax.max, (1, 1, 2, 2), (1, 1, 2, 2), "VALID")
  y = lax.conv_general_dilated(y, params["w_conv2"], (1, 1), "VALID",
                               dimension_numbers=("NCHW", "OIHW", "NCHW"),
                               precision=hi)
  y = jnp.maximum(y + params["b_conv2"].reshape(1, -1, 1, 1), 0.0)
  y = lax.reduce_window(y, -jnp.inf, lax.max, (1, 1, 2, 2), (1, 1, 2, 2), "VALID")
  flat = y.reshape(1, 16 * 4 * 4)
  xin = jnp.concatenate([flat, s1.reshape(1, 21), s2.reshape(1, 21)], axis=1)
  h = jnp.maximum(jnp.dot(xin, params["w_lin1"].T, precision=hi) + params["b_lin1"], 0.0)
  z = jnp.dot(h, params["w_lin2"].T, precision=hi) + params["b_lin2"]
  return jax.nn.log_softmax(z, axis=1)


# ----------------------------------------------------------------------------
# Deterministic parameter init (shapes from the torch module __init__)
# ----------------------------------------------------------------------------

def init_params(key):
  ks = jax.random.split(key, 8)
  n = lambda k, shape, s: (s * jax.random.normal(k, shape)).astype(jnp.float32)
  return dict(
      w_conv1=n(ks[0], (6, 1, 3, 3), 0.2),
      b_conv1=n(ks[1], (6,), 0.1),
      w_conv2=n(ks[2], (16, 6, 3, 3), 0.1),
      b_conv2=n(ks[3], (16,), 0.1),
      w_lin1=n(ks[4], (128, 16 * 4 * 4 + 21 + 21), 0.05),
      b_lin1=n(ks[5], (128,), 0.05),
      w_lin2=n(ks[6], (64, 128), 0.05),
      b_lin2=n(ks[7], (64,), 0.05),
  )


if __name__ == "__main__":
  key = jax.random.PRNGKey(0)
  k_j, k_s1, k_s2, k_p = jax.random.split(key, 4)

  # Shapes implied by the forward: J -> view(1,1,22,22); s1, s2 -> 21 features.
  J = jax.random.normal(k_j, (22, 22), dtype=jnp.float32)
  s1 = jax.random.normal(k_s1, (21,), dtype=jnp.float32)
  s2 = jax.random.normal(k_s2, (21,), dtype=jnp.float32)
  params = init_params(k_p)
  kernel_params = prepare_params(params)   # one-time weight / mask re-layout

  out = lenet_forward(kernel_params, J, s1, s2)
  out = jax.block_until_ready(out)

  assert out.shape == (1, 64), out.shape
  assert bool(jnp.all(jnp.isfinite(out)))
  # log_softmax rows sum (in prob space) to 1
  assert abs(float(jnp.sum(jnp.exp(out))) - 1.0) < 1e-3

  ref = jax.block_until_ready(lenet_reference(params, J, s1, s2))
  np.testing.assert_allclose(np.asarray(out), np.asarray(ref), rtol=2e-2, atol=2e-2)

  print("KERNEL_OK")
</pallas_src>

<mosaic_0001>
module attributes {stable_mosaic.version = 11 : i64} {
  func.func @lenet_fused_kernel(%arg0: memref<448x16xf32, #tpu.memory_space<vmem>>, %arg1: memref<1x128xf32, #tpu.memory_space<vmem>>, %arg2: memref<16x128xf32, #tpu.memory_space<vmem>>, %arg3: memref<1x128xf32, #tpu.memory_space<vmem>>, %arg4: memref<168x416xf32, #tpu.memory_space<vmem>>, %arg5: memref<128x128xf32, #tpu.memory_space<vmem>>, %arg6: memref<1x128xf32, #tpu.memory_space<vmem>>, %arg7: memref<16x104xf32, #tpu.memory_space<vmem>>, %arg8: memref<384x128xf32, #tpu.memory_space<vmem>>, %arg9: memref<1x128xf32, #tpu.memory_space<vmem>>, %arg10: memref<128x64xf32, #tpu.memory_space<vmem>>, %arg11: memref<1x64xf32, #tpu.memory_space<vmem>>, %arg12: memref<1x64xf32, #tpu.memory_space<vmem>>, %arg13: memref<448x128xf32, #tpu.memory_space<vmem>>, %arg14: memref<168x128xf32, #tpu.memory_space<vmem>>, %arg15: memref<128x128xf32, #tpu.memory_space<vmem>>, %arg16: memref<16x128xf32, #tpu.memory_space<vmem>>, %arg17: memref<1x384xf32, #tpu.memory_space<vmem>>) attributes {dimension_semantics = [], scalar_prefetch = 0 : i64, scratch_operands = 5 : i64, tpu.core_type = #tpu.core_type<tc>} {
    %c0 = arith.constant 0 : index
    %c0_0 = arith.constant 0 : index
    %0 = vector.load %arg0[%c0, %c0_0] : memref<448x16xf32, #tpu.memory_space<vmem>>, vector<448x16xf32>
    %c0_1 = arith.constant 0 : index
    %c0_2 = arith.constant 0 : index
    %1 = vector.load %arg2[%c0_1, %c0_2] : memref<16x128xf32, #tpu.memory_space<vmem>>, vector<16x128xf32>
    %cst = arith.constant dense<0.000000e+00> : vector<448x128xf32>
    %2 = tpu.matmul %0, %1, %cst {dimension_numbers = #tpu.dot_dimension_numbers<[1], [0], [0], [1], [0, 0, 1, 1], [], []>} : vector<448x16xf32>, vector<16x128xf32>, vector<448x128xf32> -> vector<448x128xf32>
    %c0_3 = arith.constant 0 : index
    %c0_4 = arith.constant 0 : index
    %3 = vector.load %arg3[%c0_3, %c0_4] : memref<1x128xf32, #tpu.memory_space<vmem>>, vector<1x128xf32>
    %4 = vector.broadcast %3 : vector<1x128xf32> to vector<448x128xf32>
    %5 = arith.addf %2, %4 : vector<448x128xf32>
    %cst_5 = arith.constant 0.000000e+00 : f32
    %6 = vector.broadcast %cst_5 : f32 to vector<448x128xf32>
    %7 = arith.maximumf %5, %6 : vector<448x128xf32>
    %c0_6 = arith.constant 0 : index
    %c0_7 = arith.constant 0 : index
    %8 = vector.load %arg13[%c0_6, %c0_7] : memref<448x128xf32, #tpu.memory_space<vmem>>, vector<448x128xf32>
    tpu.vector_store %arg13[%c0_6, %c0_7], %7 {strides = array<i32>} : memref<448x128xf32, #tpu.memory_space<vmem>>, vector<448x128xf32>,
    %c0_8 = arith.constant 0 : index
    %c0_9 = arith.constant 0 : index
    %9 = vector.load %arg13[%c0_8, %c0_9] : memref<448x128xf32, #tpu.memory_space<vmem>>, vector<416x128xf32>
    %c1 = arith.constant 1 : index
    %c0_10 = arith.constant 0 : index
    %10 = vector.load %arg13[%c1, %c0_10] : memref<448x128xf32, #tpu.memory_space<vmem>>, vector<416x128xf32>
    %11 = arith.maximumf %9, %10 : vector<416x128xf32>
    %c22 = arith.constant 22 : index
    %c0_11 = arith.constant 0 : index
    %12 = vector.load %arg13[%c22, %c0_11] : memref<448x128xf32, #tpu.memory_space<vmem>>, vector<416x128xf32>
    %c23 = arith.constant 23 : index
    %c0_12 = arith.constant 0 : index
    %13 = vector.load %arg13[%c23, %c0_12] : memref<448x128xf32, #tpu.memory_space<vmem>>, vector<416x128xf32>
    %14 = arith.maximumf %12, %13 : vector<416x128xf32>
    %15 = arith.maximumf %11, %14 : vector<416x128xf32>
    %c0_13 = arith.constant 0 : index
    %c0_14 = arith.constant 0 : index
    %16 = vector.load %arg4[%c0_13, %c0_14] : memref<168x416xf32, #tpu.memory_space<vmem>>, vector<168x416xf32>
    %cst_15 = arith.constant dense<0.000000e+00> : vector<168x128xf32>
    %17 = tpu.matmul %16, %15, %cst_15 {dimension_numbers = #tpu.dot_dimension_numbers<[1], [0], [0], [1], [0, 0, 1, 1], [], []>} : vector<168x416xf32>, vector<416x128xf32>, vector<168x128xf32> -> vector<168x128xf32>
    %c0_16 = arith.constant 0 : index
    %c0_17 = arith.constant 0 : index
    %18 = vector.load %arg14[%c0_16, %c0_17] : memref<168x128xf32, #tpu.memory_space<vmem>>, vector<168x128xf32>
    tpu.vector_store %arg14[%c0_16, %c0_17], %17 {strides = array<i32>} : memref<168x128xf32, #tpu.memory_space<vmem>>, vector<168x128xf32>,
    %c0_18 = arith.constant 0 : index
    %c0_19 = arith.constant 0 : index
    %19 = vector.load %arg14[%c0_18, %c0_19] : memref<168x128xf32, #tpu.memory_space<vmem>>, vector<128x128xf32>
    %c1_20 = arith.constant 1 : index
    %c0_21 = arith.constant 0 : index
    %20 = vector.load %arg14[%c1_20, %c0_21] : memref<168x128xf32, #tpu.memory_space<vmem>>, vector<128x128xf32>
    %c8_i32 = arith.constant 8 : i32
    %21 = tpu.dynamic_rotate %20 by %c8_i32 dim 1 : vector<128x128xf32>, i32 -> vector<128x128xf32>
    %22 = arith.addf %19, %21 : vector<128x128xf32>
    %c2 = arith.constant 2 : index
    %c0_22 = arith.constant 0 : index
    %23 = vector.load %arg14[%c2, %c0_22] : memref<168x128xf32, #tpu.memory_space<vmem>>, vector<128x128xf32>
    %c16_i32 = arith.constant 16 : i32
    %24 = tpu.dynamic_rotate %23 by %c16_i32 dim 1 : vector<128x128xf32>, i32 -> vector<128x128xf32>
    %25 = arith.addf %22, %24 : vector<128x128xf32>
    %c16 = arith.constant 16 : index
    %c0_23 = arith.constant 0 : index
    %26 = vector.load %arg14[%c16, %c0_23] : memref<168x128xf32, #tpu.memory_space<vmem>>, vector<128x128xf32>
    %c24_i32 = arith.constant 24 : i32
    %27 = tpu.dynamic_rotate %26 by %c24_i32 dim 1 : vector<128x128xf32>, i32 -> vector<128x128xf32>
    %28 = arith.addf %25, %27 : vector<128x128xf32>
    %c17 = arith.constant 17 : index
    %c0_24 = arith.constant 0 : index
    %29 = vector.load %arg14[%c17, %c0_24] : memref<168x128xf32, #tpu.memory_space<vmem>>, vector<128x128xf32>
    %c32_i32 = arith.constant 32 : i32
    %30 = tpu.dynamic_rotate %29 by %c32_i32 dim 1 : vector<128x128xf32>, i32 -> vector<128x128xf32>
    %31 = arith.addf %28, %30 : vector<128x128xf32>
    %c18 = arith.constant 18 : index
    %c0_25 = arith.constant 0 : index
    %32 = vector.load %arg14[%c18, %c0_25] : memref<168x128xf32, #tpu.memory_space<vmem>>, vector<128x128xf32>
    %c40_i32 = arith.constant 40 : i32
    %33 = tpu.dynamic_rotate %32 by %c40_i32 dim 1 : vector<128x128xf32>, i32 -> vector<128x128xf32>
    %34 = arith.addf %31, %33 : vector<128x128xf32>
    %c32 = arith.constant 32 : index
    %c0_26 = arith.constant 0 : index
    %35 = vector.load %arg14[%c32, %c0_26] : memref<168x128xf32, #tpu.memory_space<vmem>>, vector<128x128xf32>
    %c48_i32 = arith.constant 48 : i32
    %36 = tpu.dynamic_rotate %35 by %c48_i32 dim 1 : vector<128x128xf32>, i32 -> vector<128x128xf32>
    %37 = arith.addf %34, %36 : vector<128x128xf32>
    %c33 = arith.constant 33 : index
    %c0_27 = arith.constant 0 : index
    %38 = vector.load %arg14[%c33, %c0_27] : memref<168x128xf32, #tpu.memory_space<vmem>>, vector<128x128xf32>
    %c56_i32 = arith.constant 56 : i32
    %39 = tpu.dynamic_rotate %38 by %c56_i32 dim 1 : vector<128x128xf32>, i32 -> vector<128x128xf32>
    %40 = arith.addf %37, %39 : vector<128x128xf32>
    %c34 = arith.constant 34 : index
    %c0_28 = arith.constant 0 : index
    %41 = vector.load %arg14[%c34, %c0_28] : memref<168x128xf32, #tpu.memory_space<vmem>>, vector<128x128xf32>
    %c64_i32 = arith.constant 64 : i32
    %42 = tpu.dynamic_rotate %41 by %c64_i32 dim 1 : vector<128x128xf32>, i32 -> vector<128x128xf32>
    %43 = arith.addf %40, %42 : vector<128x128xf32>
    %c0_29 = arith.constant 0 : index
    %c0_30 = arith.constant 0 : index
    %44 = vector.load %arg5[%c0_29, %c0_30] : memref<128x128xf32, #tpu.memory_space<vmem>>, vector<128x128xf32>
    %cst_31 = arith.constant dense<0.000000e+00> : vector<128x128xf32>
    %45 = tpu.matmul %43, %44, %cst_31 {dimension_numbers = #tpu.dot_dimension_numbers<[1], [0], [0], [1], [0, 0, 1, 1], [], []>} : vector<128x128xf32>, vector<128x128xf32>, vector<128x128xf32> -> vector<128x128xf32>
    %c0_32 = arith.constant 0 : index
    %c0_33 = arith.constant 0 : index
    %46 = vector.load %arg6[%c0_32, %c0_33] : memref<1x128xf32, #tpu.memory_space<vmem>>, vector<1x128xf32>
    %47 = vector.broadcast %46 : vector<1x128xf32> to vector<128x128xf32>
    %48 = arith.addf %45, %47 : vector<128x128xf32>
    %cst_34 = arith.constant 0.000000e+00 : f32
    %49 = vector.broadcast %cst_34 : f32 to vector<128x128xf32>
    %50 = arith.maximumf %48, %49 : vector<128x128xf32>
    %c0_35 = arith.constant 0 : index
    %c0_36 = arith.constant 0 : index
    %51 = vector.load %arg15[%c0_35, %c0_36] : memref<128x128xf32, #tpu.memory_space<vmem>>, vector<128x128xf32>
    tpu.vector_store %arg15[%c0_35, %c0_36], %50 {strides = array<i32>} : memref<128x128xf32, #tpu.memory_space<vmem>>, vector<128x128xf32>,
    %c0_37 = arith.constant 0 : index
    %c0_38 = arith.constant 0 : index
    %52 = vector.load %arg15[%c0_37, %c0_38] : memref<128x128xf32, #tpu.memory_space<vmem>>, vector<104x128xf32>
    %c1_39 = arith.constant 1 : index
    %c0_40 = arith.constant 0 : index
    %53 = vector.load %arg15[%c1_39, %c0_40] : memref<128x128xf32, #tpu.memory_space<vmem>>, vector<104x128xf32>
    %54 = arith.maximumf %52, %53 : vector<104x128xf32>
    %c16_41 = arith.constant 16 : index
    %c0_42 = arith.constant 0 : index
    %55 = vector.load %arg15[%c16_41, %c0_42] : memref<128x128xf32, #tpu.memory_space<vmem>>, vector<104x128xf32>
    %c17_43 = arith.constant 17 : index
    %c0_44 = arith.constant 0 : index
    %56 = vector.load %arg15[%c17_43, %c0_44] : memref<128x128xf32, #tpu.memory_space<vmem>>, vector<104x128xf32>
    %57 = arith.maximumf %55, %56 : vector<104x128xf32>
    %58 = arith.maximumf %54, %57 : vector<104x128xf32>
    %c0_45 = arith.constant 0 : index
    %c0_46 = arith.constant 0 : index
    %59 = vector.load %arg7[%c0_45, %c0_46] : memref<16x104xf32, #tpu.memory_space<vmem>>, vector<16x104xf32>
    %cst_47 = arith.constant dense<0.000000e+00> : vector<16x128xf32>
    %60 = tpu.matmul %59, %58, %cst_47 {dimension_numbers = #tpu.dot_dimension_numbers<[1], [0], [0], [1], [0, 0, 1, 1], [], []>} : vector<16x104xf32>, vector<104x128xf32>, vector<16x128xf32> -> vector<16x128xf32>
    %c0_48 = arith.constant 0 : index
    %c0_49 = arith.constant 0 : index
    %61 = vector.load %arg16[%c0_48, %c0_49] : memref<16x128xf32, #tpu.memory_space<vmem>>, vector<16x128xf32>
    tpu.vector_store %arg16[%c0_48, %c0_49], %60 {strides = array<i32>} : memref<16x128xf32, #tpu.memory_space<vmem>>, vector<16x128xf32>,
    %c0_50 = arith.constant 0 : index
    %c0_51 = arith.constant 0 : index
    %62 = vector.load %arg16[%c0_50, %c0_51] : memref<16x128xf32, #tpu.memory_space<vmem>>, vector<1x16xf32>
    %c0_52 = arith.constant 0 : index
    %c0_53 = arith.constant 0 : index
    %63 = vector.load %arg17[%c0_52, %c0_53] : memref<1x384xf32, #tpu.memory_space<vmem>>, vector<1x16xf32>
    tpu.vector_store %arg17[%c0_52, %c0_53], %62 {strides = array<i32>} : memref<1x384xf32, #tpu.memory_space<vmem>>, vector<1x16xf32>,
    %c1_54 = arith.constant 1 : index
    %c0_55 = arith.constant 0 : index
    %64 = vector.load %arg16[%c1_54, %c0_55] : memref<16x128xf32, #tpu.memory_space<vmem>>, vector<1x16xf32>
    %c0_56 = arith.constant 0 : index
    %c16_57 = arith.constant 16 : index
    %65 = vector.load %arg17[%c0_56, %c16_57] : memref<1x384xf32, #tpu.memory_space<vmem>>, vector<1x16xf32>
    tpu.vector_store %arg17[%c0_56, %c16_57], %64 {strides = array<i32>} : memref<1x384xf32, #tpu.memory_space<vmem>>, vector<1x16xf32>,
    %c2_58 = arith.constant 2 : index
    %c0_59 = arith.constant 0 : index
    %66 = vector.load %arg16[%c2_58, %c0_59] : memref<16x128xf32, #tpu.memory_space<vmem>>, vector<1x16xf32>
    %c0_60 = arith.constant 0 : index
    %c32_61 = arith.constant 32 : index
    %67 = vector.load %arg17[%c0_60, %c32_61] : memref<1x384xf32, #tpu.memory_space<vmem>>, vector<1x16xf32>
    tpu.vector_store %arg17[%c0_60, %c32_61], %66 {strides = array<i32>} : memref<1x384xf32, #tpu.memory_space<vmem>>, vector<1x16xf32>,
    %c3 = arith.constant 3 : index
    %c0_62 = arith.constant 0 : index
    %68 = vector.load %arg16[%c3, %c0_62] : memref<16x128xf32, #tpu.memory_space<vmem>>, vector<1x16xf32>
    %c0_63 = arith.constant 0 : index
    %c48 = arith.constant 48 : index
    %69 = vector.load %arg17[%c0_63, %c48] : memref<1x384xf32, #tpu.memory_space<vmem>>, vector<1x16xf32>
    tpu.vector_store %arg17[%c0_63, %c48], %68 {strides = array<i32>} : memref<1x384xf32, #tpu.memory_space<vmem>>, vector<1x16xf32>,
    %c4 = arith.constant 4 : index
    %c0_64 = arith.constant 0 : index
    %70 = vector.load %arg16[%c4, %c0_64] : memref<16x128xf32, #tpu.memory_space<vmem>>, vector<1x16xf32>
    %c0_65 = arith.constant 0 : index
    %c64 = arith.constant 64 : index
    %71 = vector.load %arg17[%c0_65, %c64] : memref<1x384xf32, #tpu.memory_space<vmem>>, vector<1x16xf32>
    tpu.vector_store %arg17[%c0_65, %c64], %70 {strides = array<i32>} : memref<1x384xf32, #tpu.memory_space<vmem>>, vector<1x16xf32>,
    %c5 = arith.constant 5 : index
    %c0_66 = arith.constant 0 : index
    %72 = vector.load %arg16[%c5, %c0_66] : memref<16x128xf32, #tpu.memory_space<vmem>>, vector<1x16xf32>
    %c0_67 = arith.constant 0 : index
    %c80 = arith.constant 80 : index
    %73 = vector.load %arg17[%c0_67, %c80] : memref<1x384xf32, #tpu.memory_space<vmem>>, vector<1x16xf32>
    tpu.vector_store %arg17[%c0_67, %c80], %72 {strides = array<i32>} : memref<1x384xf32, #tpu.memory_space<vmem>>, vector<1x16xf32>,
    %c6 = arith.constant 6 : index
    %c0_68 = arith.constant 0 : index
    %74 = vector.load %arg16[%c6, %c0_68] : memref<16x128xf32, #tpu.memory_space<vmem>>, vector<1x16xf32>
    %c0_69 = arith.constant 0 : index
    %c96 = arith.constant 96 : index
    %75 = vector.load %arg17[%c0_69, %c96] : memref<1x384xf32, #tpu.memory_space<vmem>>, vector<1x16xf32>
    tpu.vector_store %arg17[%c0_69, %c96], %74 {strides = array<i32>} : memref<1x384xf32, #tpu.memory_space<vmem>>, vector<1x16xf32>,
    %c7 = arith.constant 7 : index
    %c0_70 = arith.constant 0 : index
    %76 = vector.load %arg16[%c7, %c0_70] : memref<16x128xf32, #tpu.memory_space<vmem>>, vector<1x16xf32>
    %c0_71 = arith.constant 0 : index
    %c112 = arith.constant 112 : index
    %77 = vector.load %arg17[%c0_71, %c112] : memref<1x384xf32, #tpu.memory_space<vmem>>, vector<1x16xf32>
    tpu.vector_store %arg17[%c0_71, %c112], %76 {strides = array<i32>} : memref<1x384xf32, #tpu.memory_space<vmem>>, vector<1x16xf32>,
    %c8 = arith.constant 8 : index
    %c0_72 = arith.constant 0 : index
    %78 = vector.load %arg16[%c8, %c0_72] : memref<16x128xf32, #tpu.memory_space<vmem>>, vector<1x16xf32>
    %c0_73 = arith.constant 0 : index
    %c128 = arith.constant 128 : index
    %79 = vector.load %arg17[%c0_73, %c128] : memref<1x384xf32, #tpu.memory_space<vmem>>, vector<1x16xf32>
    tpu.vector_store %arg17[%c0_73, %c128], %78 {strides = array<i32>} : memref<1x384xf32, #tpu.memory_space<vmem>>, vector<1x16xf32>,
    %c9 = arith.constant 9 : index
    %c0_74 = arith.constant 0 : index
    %80 = vector.load %arg16[%c9, %c0_74] : memref<16x128xf32, #tpu.memory_space<vmem>>, vector<1x16xf32>
    %c0_75 = arith.constant 0 : index
    %c144 = arith.constant 144 : index
    %81 = vector.load %arg17[%c0_75, %c144] : memref<1x384xf32, #tpu.memory_space<vmem>>, vector<1x16xf32>
    tpu.vector_store %arg17[%c0_75, %c144], %80 {strides = array<i32>} : memref<1x384xf32, #tpu.memory_space<vmem>>, vector<1x16xf32>,
    %c10 = arith.constant 10 : index
    %c0_76 = arith.constant 0 : index
    %82 = vector.load %arg16[%c10, %c0_76] : memref<16x128xf32, #tpu.memory_space<vmem>>, vector<1x16xf32>
    %c0_77 = arith.constant 0 : index
    %c160 = arith.constant 160 : index
    %83 = vector.load %arg17[%c0_77, %c160] : memref<1x384xf32, #tpu.memory_space<vmem>>, vector<1x16xf32>
    tpu.vector_store %arg17[%c0_77, %c160], %82 {strides = array<i32>} : memref<1x384xf32, #tpu.memory_space<vmem>>, vector<1x16xf32>,
    %c11 = arith.constant 11 : index
    %c0_78 = arith.constant 0 : index
    %84 = vector.load %arg16[%c11, %c0_78] : memref<16x128xf32, #tpu.memory_space<vmem>>, vector<1x16xf32>
    %c0_79 = arith.constant 0 : index
    %c176 = arith.constant 176 : index
    %85 = vector.load %arg17[%c0_79, %c176] : memref<1x384xf32, #tpu.memory_space<vmem>>, vector<1x16xf32>
    tpu.vector_store %arg17[%c0_79, %c176], %84 {strides = array<i32>} : memref<1x384xf32, #tpu.memory_space<vmem>>, vector<1x16xf32>,
    %c12 = arith.constant 12 : index
    %c0_80 = arith.constant 0 : index
    %86 = vector.load %arg16[%c12, %c0_80] : memref<16x128xf32, #tpu.memory_space<vmem>>, vector<1x16xf32>
    %c0_81 = arith.constant 0 : index
    %c192 = arith.constant 192 : index
    %87 = vector.load %arg17[%c0_81, %c192] : memref<1x384xf32, #tpu.memory_space<vmem>>, vector<1x16xf32>
    tpu.vector_store %arg17[%c0_81, %c192], %86 {strides = array<i32>} : memref<1x384xf32, #tpu.memory_space<vmem>>, vector<1x16xf32>,
    %c13 = arith.constant 13 : index
    %c0_82 = arith.constant 0 : index
    %88 = vector.load %arg16[%c13, %c0_82] : memref<16x128xf32, #tpu.memory_space<vmem>>, vector<1x16xf32>
    %c0_83 = arith.constant 0 : index
    %c208 = arith.constant 208 : index
    %89 = vector.load %arg17[%c0_83, %c208] : memref<1x384xf32, #tpu.memory_space<vmem>>, vector<1x16xf32>
    tpu.vector_store %arg17[%c0_83, %c208], %88 {strides = array<i32>} : memref<1x384xf32, #tpu.memory_space<vmem>>, vector<1x16xf32>,
    %c14 = arith.constant 14 : index
    %c0_84 = arith.constant 0 : index
    %90 = vector.load %arg16[%c14, %c0_84] : memref<16x128xf32, #tpu.memory_space<vmem>>, vector<1x16xf32>
    %c0_85 = arith.constant 0 : index
    %c224 = arith.constant 224 : index
    %91 = vector.load %arg17[%c0_85, %c224] : memref<1x384xf32, #tpu.memory_space<vmem>>, vector<1x16xf32>
    tpu.vector_store %arg17[%c0_85, %c224], %90 {strides = array<i32>} : memref<1x384xf32, #tpu.memory_space<vmem>>, vector<1x16xf32>,
    %c15 = arith.constant 15 : index
    %c0_86 = arith.constant 0 : index
    %92 = vector.load %arg16[%c15, %c0_86] : memref<16x128xf32, #tpu.memory_space<vmem>>, vector<1x16xf32>
    %c0_87 = arith.constant 0 : index
    %c240 = arith.constant 240 : index
    %93 = vector.load %arg17[%c0_87, %c240] : memref<1x384xf32, #tpu.memory_space<vmem>>, vector<1x16xf32>
    tpu.vector_store %arg17[%c0_87, %c240], %92 {strides = array<i32>} : memref<1x384xf32, #tpu.memory_space<vmem>>, vector<1x16xf32>,
    %c0_88 = arith.constant 0 : index
    %c0_89 = arith.constant 0 : index
    %94 = vector.load %arg1[%c0_88, %c0_89] : memref<1x128xf32, #tpu.memory_space<vmem>>, vector<1x128xf32>
    %c0_90 = arith.constant 0 : index
    %c256 = arith.constant 256 : index
    %95 = vector.load %arg17[%c0_90, %c256] : memref<1x384xf32, #tpu.memory_space<vmem>>, vector<1x128xf32>
    tpu.vector_store %arg17[%c0_90, %c256], %94 {strides = array<i32>} : memref<1x384xf32, #tpu.memory_space<vmem>>, vector<1x128xf32>,
    %c0_91 = arith.constant 0 : index
    %c0_92 = arith.constant 0 : index
    %96 = vector.load %arg17[%c0_91, %c0_92] : memref<1x384xf32, #tpu.memory_space<vmem>>, vector<1x384xf32>
    %c0_93 = arith.constant 0 : index
    %c0_94 = arith.constant 0 : index
    %97 = vector.load %arg8[%c0_93, %c0_94] : memref<384x128xf32, #tpu.memory_space<vmem>>, vector<384x128xf32>
    %cst_95 = arith.constant dense<0.000000e+00> : vector<1x128xf32>
    %98 = tpu.matmul %96, %97, %cst_95 {dimension_numbers = #tpu.dot_dimension_numbers<[1], [0], [0], [1], [0, 0, 1, 1], [], []>} : vector<1x384xf32>, vector<384x128xf32>, vector<1x128xf32> -> vector<1x128xf32>
    %c0_96 = arith.constant 0 : index
    %c0_97 = arith.constant 0 : index
    %99 = vector.load %arg9[%c0_96, %c0_97] : memref<1x128xf32, #tpu.memory_space<vmem>>, vector<1x128xf32>
    %100 = arith.addf %98, %99 : vector<1x128xf32>
    %cst_98 = arith.constant 0.000000e+00 : f32
    %101 = vector.broadcast %cst_98 : f32 to vector<1x128xf32>
    %102 = arith.maximumf %100, %101 : vector<1x128xf32>
    %c0_99 = arith.constant 0 : index
    %c0_100 = arith.constant 0 : index
    %103 = vector.load %arg10[%c0_99, %c0_100] : memref<128x64xf32, #tpu.memory_space<vmem>>, vector<128x64xf32>
    %cst_101 = arith.constant dense<0.000000e+00> : vector<1x64xf32>
    %104 = tpu.matmul %102, %103, %cst_101 {dimension_numbers = #tpu.dot_dimension_numbers<[1], [0], [0], [1], [0, 0, 1, 1], [], []>} : vector<1x128xf32>, vector<128x64xf32>, vector<1x64xf32> -> vector<1x64xf32>
    %c0_102 = arith.constant 0 : index
    %c0_103 = arith.constant 0 : index
    %105 = vector.load %arg11[%c0_102, %c0_103] : memref<1x64xf32, #tpu.memory_space<vmem>>, vector<1x64xf32>
    %106 = arith.addf %104, %105 : vector<1x64xf32>
    %cst_104 = arith.constant dense<0xFF800000> : vector<1xf32>
    %107 = vector.multi_reduction <maximumf>, %106, %cst_104 [1] : vector<1x64xf32> to vector<1xf32>
    %108 = vector.shape_cast %107 : vector<1xf32> to vector<1x1xf32>
    %109 = vector.broadcast %108 : vector<1x1xf32> to vector<1x64xf32>
    %110 = arith.subf %106, %109 : vector<1x64xf32>
    %111 = math.exp %110 : vector<1x64xf32>
    %112 = vector.broadcast %108 : vector<1x1xf32> to vector<1x64xf32>
    %113 = arith.subf %106, %112 : vector<1x64xf32>
    %cst_105 = arith.constant dense<0.000000e+00> : vector<1xf32>
    %114 = vector.multi_reduction <add>, %111, %cst_105 [1] : vector<1x64xf32> to vector<1xf32>
    %115 = vector.shape_cast %114 : vector<1xf32> to vector<1x1xf32>
    %116 = math.log %115 : vector<1x1xf32>
    %117 = vector.broadcast %116 : vector<1x1xf32> to vector<1x64xf32>
    %118 = arith.subf %113, %117 : vector<1x64xf32>
    %c0_106 = arith.constant 0 : index
    %c0_107 = arith.constant 0 : index
    %119 = vector.load %arg12[%c0_106, %c0_107] : memref<1x64xf32, #tpu.memory_space<vmem>>, vector<1x64xf32>
    tpu.vector_store %arg12[%c0_106, %c0_107], %118 {strides = array<i32>} : memref<1x64xf32, #tpu.memory_space<vmem>>, vector<1x64xf32>,
    return
  }
}

</mosaic_0001>

<llo_original>
// kernel: lenet_forward.1
$region0: #{lenet_forward.1}
  #allocation0 [shape = 'u32[]', space=smem, size = 0x4, offset = 0x4, fixed_abs, tag = 'smem constant byte address 0x4 - core index']
  #allocation1 [shape = 'u32[144,128]{1,0:T(1,128)}', space=vmem, size = 0x12000, scoped, tag = 'internal scratch']
  #allocation2 [shape = 'f32[448,128]{1,0:T(8,128)}', space=vmem, size = 0x38000, scoped, tag = 'scratch operand']
  #allocation3 [shape = 'f32[168,128]{1,0:T(8,128)}', space=vmem, size = 0x15000, scoped, tag = 'scratch operand']
  #allocation4 [shape = 'f32[128,128]{1,0:T(8,128)}', space=vmem, size = 0x10000, scoped, tag = 'scratch operand']
  #allocation5 [shape = 'f32[16,128]{1,0:T(8,128)}', space=vmem, size = 0x2000, scoped, tag = 'scratch operand']
  #allocation6 [shape = 'f32[1,384]{1,0:T(1,128)}', space=vmem, size = 0x600, scoped, tag = 'scratch operand']
  %s0 = inlined_call_operand.vmem [shape: f32[448,16], index: 0, kind: input, shape index: {}]
  %s1 = inlined_call_operand.vmem [shape: f32[1,128], index: 1, kind: input, shape index: {}]
  %s2 = inlined_call_operand.vmem [shape: f32[16,128], index: 2, kind: input, shape index: {}]
  %s3 = inlined_call_operand.vmem [shape: f32[1,128], index: 3, kind: input, shape index: {}]
  %s4 = inlined_call_operand.vmem [shape: f32[168,416], index: 4, kind: input, shape index: {}]
  %s5 = inlined_call_operand.vmem [shape: f32[128,128], index: 5, kind: input, shape index: {}]
  %s6 = inlined_call_operand.vmem [shape: f32[1,128], index: 6, kind: input, shape index: {}]
  %s7 = inlined_call_operand.vmem [shape: f32[16,104], index: 7, kind: input, shape index: {}]
  %s8 = inlined_call_operand.vmem [shape: f32[384,128], index: 8, kind: input, shape index: {}]
  %s9 = inlined_call_operand.vmem [shape: f32[1,128], index: 9, kind: input, shape index: {}]
  %s10 = inlined_call_operand.vmem [shape: f32[128,64], index: 10, kind: input, shape index: {}]
  %s11 = inlined_call_operand.vmem [shape: f32[1,64], index: 11, kind: input, shape index: {}]
  %s12 = inlined_call_operand.hbm [shape: f32[1,64], index: 12, kind: output, shape index: {}]
  %s13 = sld [smem:[#allocation0]]
  $region58: #{lenet_forward.1} parent=0
    _
  %s15 = ssub.s32 1, %s13
  %s16 = scalar_select 0, %s15, %s13
  $region1: #{lenet_forward.1} parent=0
    #allocation7 [shape = 'u8[512]{0}', space=vmem, size = 0x400, scoped, tag = 'output window, operand 0, single buffered']
    #allocation8 [shape = 's32[1]{0}', space=sflag, size = 0x4, scoped, tag = 'scoped memory for lenet_forward.1']
    %17 = vsyncpa [#allocation8], 0
    // Predicated region
    $region2: #{lenet_forward.1} parent=1 // pred_check
      _
    $region3: #{lenet_forward.1} parent=1 // pred_check_branch
      %19 = sbr.rel (0) target = $region5
    $region4: #{lenet_forward.1} parent=1 // pred_region
      _
    $region5: #{lenet_forward.1} parent=1 // pred_fallthru
      _
    // Predicated region
    $region6: #{lenet_forward.1} parent=1 // pred_check
      _
    $region7: #{lenet_forward.1} parent=1 // pred_check_branch
      %21 = sbr.rel (0) target = $region9
    $region8: #{lenet_forward.1} parent=1 // pred_region
      _
    $region9: #{lenet_forward.1} parent=1 // pred_fallthru
      _
    // Predicated region
    $region10: #{lenet_forward.1} parent=1 // pred_check
      _
    $region11: #{lenet_forward.1} parent=1 // pred_check_branch
      %23 = sbr.rel (0) target = $region13
    $region12: #{lenet_forward.1} parent=1 // pred_region
      _
    $region13: #{lenet_forward.1} parent=1 // pred_fallthru
      _
    // Predicated region
    $region14: #{lenet_forward.1} parent=1 // pred_check
      _
    $region15: #{lenet_forward.1} parent=1 // pred_check_branch
      %25 = sbr.rel (0) target = $region17
    $region16: #{lenet_forward.1} parent=1 // pred_region
      _
    $region17: #{lenet_forward.1} parent=1 // pred_fallthru
      _
    // Predicated region
    $region18: #{lenet_forward.1} parent=1 // pred_check
      _
    $region19: #{lenet_forward.1} parent=1 // pred_check_branch
      %27 = sbr.rel (0) target = $region21
    $region20: #{lenet_forward.1} parent=1 // pred_region
      _
    $region21: #{lenet_forward.1} parent=1 // pred_fallthru
      _
    // Predicated region
    $region22: #{lenet_forward.1} parent=1 // pred_check
      _
    $region23: #{lenet_forward.1} parent=1 // pred_check_branch
      %29 = sbr.rel (0) target = $region25
    $region24: #{lenet_forward.1} parent=1 // pred_region
      _
    $region25: #{lenet_forward.1} parent=1 // pred_fallthru
      _
    // Predicated region
    $region26: #{lenet_forward.1} parent=1 // pred_check
      _
    $region27: #{lenet_forward.1} parent=1 // pred_check_branch
      %31 = sbr.rel (0) target = $region29
    $region28: #{lenet_forward.1} parent=1 // pred_region
      _
    $region29: #{lenet_forward.1} parent=1 // pred_fallthru
      _
    // Predicated region
    $region30: #{lenet_forward.1} parent=1 // pred_check
      _
    $region31: #{lenet_forward.1} parent=1 // pred_check_branch
      %33 = sbr.rel (0) target = $region33
    $region32: #{lenet_forward.1} parent=1 // pred_region
      _
    $region33: #{lenet_forward.1} parent=1 // pred_fallthru
      _
    // Predicated region
    $region34: #{lenet_forward.1} parent=1 // pred_check
      _
    $region35: #{lenet_forward.1} parent=1 // pred_check_branch
      %35 = sbr.rel (0) target = $region37
    $region36: #{lenet_forward.1} parent=1 // pred_region
      _
    $region37: #{lenet_forward.1} parent=1 // pred_fallthru
      _
    // Predicated region
    $region38: #{lenet_forward.1} parent=1 // pred_check
      _
    $region39: #{lenet_forward.1} parent=1 // pred_check_branch
      %37 = sbr.rel (0) target = $region41
    $region40: #{lenet_forward.1} parent=1 // pred_region
      _
    $region41: #{lenet_forward.1} parent=1 // pred_fallthru
      _
    // Predicated region
    $region42: #{lenet_forward.1} parent=1 // pred_check
      _
    $region43: #{lenet_forward.1} parent=1 // pred_check_branch
      %39 = sbr.rel (0) target = $region45
    $region44: #{lenet_forward.1} parent=1 // pred_region
      _
    $region45: #{lenet_forward.1} parent=1 // pred_fallthru
      _
    // Predicated region
    $region46: #{lenet_forward.1} parent=1 // pred_check
      _
    $region47: #{lenet_forward.1} parent=1 // pred_check_branch
      %41 = sbr.rel (0) target = $region49
    $region48: #{lenet_forward.1} parent=1 // pred_region
      _
    $region49: #{lenet_forward.1} parent=1 // pred_fallthru
      _
    %v42 = vld [vmem:[%s0] sm:$0xff]
    %v43 = vld [vmem:[%s0 + $0x8] sm:$0xff]
    %v44 = vld [vmem:[%s0 + $0x10] sm:$0xff]
    %v45 = vld [vmem:[%s0 + $0x18] sm:$0xff]
    %v46 = vld [vmem:[%s0 + $0x20] sm:$0xff]
    %v47 = vld [vmem:[%s0 + $0x28] sm:$0xff]
    %v48 = vld [vmem:[%s0 + $0x30] sm:$0xff]
    %v49 = vld [vmem:[%s0 + $0x38] sm:$0xff]
    %v50 = vld [vmem:[%s0 + $0x40] sm:$0xff]
    %v51 = vld [vmem:[%s0 + $0x48] sm:$0xff]
    %v52 = vld [vmem:[%s0 + $0x50] sm:$0xff]
    %v53 = vld [vmem:[%s0 + $0x58] sm:$0xff]
    %v54 = vld [vmem:[%s0 + $0x60] sm:$0xff]
    %v55 = vld [vmem:[%s0 + $0x68] sm:$0xff]
    %v56 = vld [vmem:[%s0 + $0x70] sm:$0xff]
    %v57 = vld [vmem:[%s0 + $0x78] sm:$0xff]
    %v58 = vld [vmem:[%s0 + $0x80] sm:$0xff]
    %v59 = vld [vmem:[%s0 + $0x88] sm:$0xff]
    %v60 = vld [vmem:[%s0 + $0x90] sm:$0xff]
    %v61 = vld [vmem:[%s0 + $0x98] sm:$0xff]
    %v62 = vld [vmem:[%s0 + $0xa0] sm:$0xff]
    %v63 = vld [vmem:[%s0 + $0xa8] sm:$0xff]
    %v64 = vld [vmem:[%s0 + $0xb0] sm:$0xff]
    %v65 = vld [vmem:[%s0 + $0xb8] sm:$0xff]
    %v66 = vld [vmem:[%s0 + $0xc0] sm:$0xff]
    %v67 = vld [vmem:[%s0 + $0xc8] sm:$0xff]
    %v68 = vld [vmem:[%s0 + $0xd0] sm:$0xff]
    %v69 = vld [vmem:[%s0 + $0xd8] sm:$0xff]
    %v70 = vld [vmem:[%s0 + $0xe0] sm:$0xff]
    %v71 = vld [vmem:[%s0 + $0xe8] sm:$0xff]
    %v72 = vld [vmem:[%s0 + $0xf0] sm:$0xff]
    %v73 = vld [vmem:[%s0 + $0xf8] sm:$0xff]
    %v74 = vld [vmem:[%s0 + $0x100] sm:$0xff]
    %v75 = vld [vmem:[%s0 + $0x108] sm:$0xff]
    %v76 = vld [vmem:[%s0 + $0x110] sm:$0xff]
    %v77 = vld [vmem:[%s0 + $0x118] sm:$0xff]
    %v78 = vld [vmem:[%s0 + $0x120] sm:$0xff]
    %v79 = vld [vmem:[%s0 + $0x128] sm:$0xff]
    %v80 = vld [vmem:[%s0 + $0x130] sm:$0xff]
    %v81 = vld [vmem:[%s0 + $0x138] sm:$0xff]
    %v82 = vld [vmem:[%s0 + $0x140] sm:$0xff]
    %v83 = vld [vmem:[%s0 + $0x148] sm:$0xff]
    %v84 = vld [vmem:[%s0 + $0x150] sm:$0xff]
    %v85 = vld [vmem:[%s0 + $0x158] sm:$0xff]
    %v86 = vld [vmem:[%s0 + $0x160] sm:$0xff]
    %v87 = vld [vmem:[%s0 + $0x168] sm:$0xff]
    %v88 = vld [vmem:[%s0 + $0x170] sm:$0xff]
    %v89 = vld [vmem:[%s0 + $0x178] sm:$0xff]
    %v90 = vld [vmem:[%s0 + $0x180] sm:$0xff]
    %v91 = vld [vmem:[%s0 + $0x188] sm:$0xff]
    %v92 = vld [vmem:[%s0 + $0x190] sm:$0xff]
    %v93 = vld [vmem:[%s0 + $0x198] sm:$0xff]
    %v94 = vld [vmem:[%s0 + $0x1a0] sm:$0xff]
    %v95 = vld [vmem:[%s0 + $0x1a8] sm:$0xff]
    %v96 = vld [vmem:[%s0 + $0x1b0] sm:$0xff]
    %v97 = vld [vmem:[%s0 + $0x1b8] sm:$0xff]
    %v98 = vld [vmem:[%s2] sm:$0xff]
    %v99 = vld [vmem:[%s2 + $0x8] sm:$0xff]
    %v100 = vld [vmem:[%s3] sm:$0x1]
    %v102 = vlaneseq
    %v103 = vshrl.u32 %v102, 7
    %v104 = vsub.s32 0, %v103
    %v105 = vrot.slane %v100, %v104
    %vm107 = vcmask 130048
    %v109 = vsel %vm107, %v42, 0
    %v112 = vsel %vm107, %v43, 0
    %v115 = vsel %vm107, %v44, 0
    %v118 = vsel %vm107, %v45, 0
    %v121 = vsel %vm107, %v46, 0
    %v124 = vsel %vm107, %v47, 0
    %v127 = vsel %vm107, %v48, 0
    %v130 = vsel %vm107, %v49, 0
    %v133 = vsel %vm107, %v50, 0
    %v136 = vsel %vm107, %v51, 0
    %v139 = vsel %vm107, %v52, 0
    %v142 = vsel %vm107, %v53, 0
    %v145 = vsel %vm107, %v54, 0
    %v148 = vsel %vm107, %v55, 0
    %v151 = vsel %vm107, %v56, 0
    %v154 = vsel %vm107, %v57, 0
    %v157 = vsel %vm107, %v58, 0
    %v160 = vsel %vm107, %v59, 0
    %v163 = vsel %vm107, %v60, 0
    %v166 = vsel %vm107, %v61, 0
    %v169 = vsel %vm107, %v62, 0
    %v172 = vsel %vm107, %v63, 0
    %v175 = vsel %vm107, %v64, 0
    %v178 = vsel %vm107, %v65, 0
    %v181 = vsel %vm107, %v66, 0
    %v184 = vsel %vm107, %v67, 0
    %v187 = vsel %vm107, %v68, 0
    %v190 = vsel %vm107, %v69, 0
    %v193 = vsel %vm107, %v70, 0
    %v196 = vsel %vm107, %v71, 0
    %v199 = vsel %vm107, %v72, 0
    %v202 = vsel %vm107, %v73, 0
    %v205 = vsel %vm107, %v74, 0
    %v208 = vsel %vm107, %v75, 0
    %v211 = vsel %vm107, %v76, 0
    %v214 = vsel %vm107, %v77, 0
    %v217 = vsel %vm107, %v78, 0
    %v220 = vsel %vm107, %v79, 0
    %v223 = vsel %vm107, %v80, 0
    %v226 = vsel %vm107, %v81, 0
    %v229 = vsel %vm107, %v82, 0
    %v232 = vsel %vm107, %v83, 0
    %v235 = vsel %vm107, %v84, 0
    %v238 = vsel %vm107, %v85, 0
    %v241 = vsel %vm107, %v86, 0
    %v244 = vsel %vm107, %v87, 0
    %v247 = vsel %vm107, %v88, 0
    %v250 = vsel %vm107, %v89, 0
    %v253 = vsel %vm107, %v90, 0
    %v256 = vsel %vm107, %v91, 0
    %v259 = vsel %vm107, %v92, 0
    %v262 = vsel %vm107, %v93, 0
    %v265 = vsel %vm107, %v94, 0
    %v268 = vsel %vm107, %v95, 0
    %v271 = vsel %vm107, %v96, 0
    %v274 = vsel %vm107, %v97, 0
    %276 = vmatprep.subr.mxu0 0.0
    %277 = vmatpush1.msra.mxu0 %v98
    %278 = vmatprep.subr.mxu0 0.0
    %279 = vmatpush1.msra.mxu0 %v99
    %280 = vmatprep.subr.mxu0 0.0
    %281 = vmatpush1.msra.mxu0 0.0
    %282 = vmatprep.subr.mxu0 0.0
    %283 = vmatpush1.msra.mxu0 0.0
    %284 = vmatprep.subr.mxu0 0.0
    %285 = vmatpush1.msra.mxu0 0.0
    %286 = vmatprep.subr.mxu0 0.0
    %287 = vmatpush1.msra.mxu0 0.0
    %288 = vmatprep.subr.mxu0 0.0
    %289 = vmatpush1.msra.mxu0 0.0
    %290 = vmatprep.subr.mxu0 0.0
    %291 = vmatpush1.msra.mxu0 0.0
    %292 = vmatprep.subr.mxu0 0.0
    %293 = vmatpush1.msra.mxu0 0.0
    %294 = vmatprep.subr.mxu0 0.0
    %295 = vmatpush1.msra.mxu0 0.0
    %296 = vmatprep.subr.mxu0 0.0
    %297 = vmatpush1.msra.mxu0 0.0
    %298 = vmatprep.subr.mxu0 0.0
    %299 = vmatpush1.msra.mxu0 0.0
    %300 = vmatprep.subr.mxu0 0.0
    %301 = vmatpush1.msra.mxu0 0.0
    %302 = vmatprep.subr.mxu0 0.0
    %303 = vmatpush1.msra.mxu0 0.0
    %304 = vmatprep.subr.mxu0 0.0
    %305 = vmatpush1.msra.mxu0 0.0
    %306 = vmatprep.subr.mxu0 0.0
    %307 = vmatpush1.msra.mxu0 0.0
    %308 = vmatprep.subr.mxu0 0.0
    %309 = vmatpush1.msra.mxu0 0.0
    %310 = vmatprep.subr.mxu0 0.0
    %311 = vmatpush1.msra.mxu0 0.0
    %312 = vmatprep.subr.mxu0 0.0
    %313 = vmatpush1.msra.mxu0 0.0
    %314 = vmatprep.subr.mxu0 0.0
    %315 = vmatpush1.msra.mxu0 0.0
    %316 = vmatprep.subr.mxu0 0.0
    %317 = vmatpush1.msra.mxu0 0.0
    %318 = vmatprep.subr.mxu0 0.0
    %319 = vmatpush1.msra.mxu0 0.0
    %320 = vmatprep.subr.mxu0 0.0
    %321 = vmatpush1.msra.mxu0 0.0
    %322 = vmatprep.subr.mxu0 0.0
    %323 = vmatpush1.msra.mxu0 0.0
    %324 = vmatprep.subr.mxu0 0.0
    %325 = vmatpush1.msra.mxu0 0.0
    %326 = vmatprep.subr.mxu0 0.0
    %327 = vmatpush1.msra.mxu0 0.0
    %328 = vmatprep.subr.mxu0 0.0
    %329 = vmatpush1.msra.mxu0 0.0
    %330 = vmatprep.subr.mxu0 0.0
    %331 = vmatpush1.msra.mxu0 0.0
    %332 = vmatprep.subr.mxu0 0.0
    %333 = vmatpush1.msra.mxu0 0.0
    %334 = vmatprep.subr.mxu0 0.0
    %335 = vmatpush1.msra.mxu0 0.0
    %336 = vmatprep.subr.mxu0 0.0
    %337 = vmatpush1.msra.mxu0 0.0
    %338 = vmatprep.subr.mxu0 0.0
    %339 = vmatpush1.msra.mxu0 0.0
    %340 = vmatprep.mubr.f32.mxu0 0.0
    %341 = vmatmul.mubr.f32.gmra.mrb[0].mxu0 %v109
    %v342 = vpop.f32.mrb[0].mxu0
    %v343 = vadd.f32 %v105, %v342
    %v344 = vpop.f32.mrb[0].mxu0
    %345 = vmatprep.mubr.f32.mxu0 0.0
    %346 = vmatmul.mubr.f32.gmra.mrb[0].mxu0 %v112
    %v347 = vpop.f32.mrb[0].mxu0
    %v348 = vadd.f32 %v105, %v347
    %v349 = vpop.f32.mrb[0].mxu0
    %350 = vmatprep.mubr.f32.mxu0 0.0
    %351 = vmatmul.mubr.f32.gmra.mrb[0].mxu0 %v115
    %v352 = vpop.f32.mrb[0].mxu0
    %v353 = vadd.f32 %v105, %v352
    %v354 = vpop.f32.mrb[0].mxu0
    %355 = vmatprep.mubr.f32.mxu0 0.0
    %356 = vmatmul.mubr.f32.gmra.mrb[0].mxu0 %v118
    %v357 = vpop.f32.mrb[0].mxu0
    %v358 = vadd.f32 %v105, %v357
    %v359 = vpop.f32.mrb[0].mxu0
    %360 = vmatprep.mubr.f32.mxu0 0.0
    %361 = vmatmul.mubr.f32.gmra.mrb[0].mxu0 %v121
    %v362 = vpop.f32.mrb[0].mxu0
    %v363 = vadd.f32 %v105, %v362
    %v364 = vpop.f32.mrb[0].mxu0
    %365 = vmatprep.mubr.f32.mxu0 0.0
    %366 = vmatmul.mubr.f32.gmra.mrb[0].mxu0 %v124
    %v367 = vpop.f32.mrb[0].mxu0
    %v368 = vadd.f32 %v105, %v367
    %v369 = vpop.f32.mrb[0].mxu0
    %370 = vmatprep.mubr.f32.mxu0 0.0
    %371 = vmatmul.mubr.f32.gmra.mrb[0].mxu0 %v127
    %v372 = vpop.f32.mrb[0].mxu0
    %v373 = vadd.f32 %v105, %v372
    %v374 = vpop.f32.mrb[0].mxu0
    %375 = vmatprep.mubr.f32.mxu0 0.0
    %376 = vmatmul.mubr.f32.gmra.mrb[0].mxu0 %v130
    %v377 = vpop.f32.mrb[0].mxu0
    %v378 = vadd.f32 %v105, %v377
    %v379 = vpop.f32.mrb[0].mxu0
    %380 = vmatprep.mubr.f32.mxu0 0.0
    %381 = vmatmul.mubr.f32.gmra.mrb[0].mxu0 %v133
    %v382 = vpop.f32.mrb[0].mxu0
    %v383 = vadd.f32 %v105, %v382
    %v384 = vpop.f32.mrb[0].mxu0
    %385 = vmatprep.mubr.f32.mxu0 0.0
    %386 = vmatmul.mubr.f32.gmra.mrb[0].mxu0 %v136
    %v387 = vpop.f32.mrb[0].mxu0
    %v388 = vadd.f32 %v105, %v387
    %v389 = vpop.f32.mrb[0].mxu0
    %390 = vmatprep.mubr.f32.mxu0 0.0
    %391 = vmatmul.mubr.f32.gmra.mrb[0].mxu0 %v139
    %v392 = vpop.f32.mrb[0].mxu0
    %v393 = vadd.f32 %v105, %v392
    %v394 = vpop.f32.mrb[0].mxu0
    %395 = vmatprep.mubr.f32.mxu0 0.0
    %396 = vmatmul.mubr.f32.gmra.mrb[0].mxu0 %v142
    %v397 = vpop.f32.mrb[0].mxu0
    %v398 = vadd.f32 %v105, %v397
    %v399 = vpop.f32.mrb[0].mxu0
    %400 = vmatprep.mubr.f32.mxu0 0.0
    %401 = vmatmul.mubr.f32.gmra.mrb[0].mxu0 %v145
    %v402 = vpop.f32.mrb[0].mxu0
    %v403 = vadd.f32 %v105, %v402
    %v404 = vpop.f32.mrb[0].mxu0
    %405 = vmatprep.mubr.f32.mxu0 0.0
    %406 = vmatmul.mubr.f32.gmra.mrb[0].mxu0 %v148
    %v407 = vpop.f32.mrb[0].mxu0
    %v408 = vadd.f32 %v105, %v407
    %v409 = vpop.f32.mrb[0].mxu0
    %410 = vmatprep.mubr.f32.mxu0 0.0
    %411 = vmatmul.mubr.f32.gmra.mrb[0].mxu0 %v151
    %v412 = vpop.f32.mrb[0].mxu0
    %v413 = vadd.f32 %v105, %v412
    %v414 = vpop.f32.mrb[0].mxu0
    %415 = vmatprep.mubr.f32.mxu0 0.0
    %416 = vmatmul.mubr.f32.gmra.mrb[0].mxu0 %v154
    %v417 = vpop.f32.mrb[0].mxu0
    %v418 = vadd.f32 %v105, %v417
    %v419 = vpop.f32.mrb[0].mxu0
    %420 = vmatprep.mubr.f32.mxu0 0.0
    %421 = vmatmul.mubr.f32.gmra.mrb[0].mxu0 %v157
    %v422 = vpop.f32.mrb[0].mxu0
    %v423 = vadd.f32 %v105, %v422
    %v424 = vpop.f32.mrb[0].mxu0
    %425 = vmatprep.mubr.f32.mxu0 0.0
    %426 = vmatmul.mubr.f32.gmra.mrb[0].mxu0 %v160
    %v427 = vpop.f32.mrb[0].mxu0
    %v428 = vadd.f32 %v105, %v427
    %v429 = vpop.f32.mrb[0].mxu0
    %430 = vmatprep.mubr.f32.mxu0 0.0
    %431 = vmatmul.mubr.f32.gmra.mrb[0].mxu0 %v163
    %v432 = vpop.f32.mrb[0].mxu0
    %v433 = vadd.f32 %v105, %v432
    %v434 = vpop.f32.mrb[0].mxu0
    %435 = vmatprep.mubr.f32.mxu0 0.0
    %436 = vmatmul.mubr.f32.gmra.mrb[0].mxu0 %v166
    %v437 = vpop.f32.mrb[0].mxu0
    %v438 = vadd.f32 %v105, %v437
    %v439 = vpop.f32.mrb[0].mxu0
    %440 = vmatprep.mubr.f32.mxu0 0.0
    %441 = vmatmul.mubr.f32.gmra.mrb[0].mxu0 %v169
    %v442 = vpop.f32.mrb[0].mxu0
    %v443 = vadd.f32 %v105, %v442
    %v444 = vpop.f32.mrb[0].mxu0
    %445 = vmatprep.mubr.f32.mxu0 0.0
    %446 = vmatmul.mubr.f32.gmra.mrb[0].mxu0 %v172
    %v447 = vpop.f32.mrb[0].mxu0
    %v448 = vadd.f32 %v105, %v447
    %v449 = vpop.f32.mrb[0].mxu0
    %450 = vmatprep.mubr.f32.mxu0 0.0
    %451 = vmatmul.mubr.f32.gmra.mrb[0].mxu0 %v175
    %v452 = vpop.f32.mrb[0].mxu0
    %v453 = vadd.f32 %v105, %v452
    %v454 = vpop.f32.mrb[0].mxu0
    %455 = vmatprep.mubr.f32.mxu0 0.0
    %456 = vmatmul.mubr.f32.gmra.mrb[0].mxu0 %v178
    %v457 = vpop.f32.mrb[0].mxu0
    %v458 = vadd.f32 %v105, %v457
    %v459 = vpop.f32.mrb[0].mxu0
    %460 = vmatprep.mubr.f32.mxu0 0.0
    %461 = vmatmul.mubr.f32.gmra.mrb[0].mxu0 %v181
    %v462 = vpop.f32.mrb[0].mxu0
    %v463 = vadd.f32 %v105, %v462
    %v464 = vpop.f32.mrb[0].mxu0
    %465 = vmatprep.mubr.f32.mxu0 0.0
    %466 = vmatmul.mubr.f32.gmra.mrb[0].mxu0 %v184
    %v467 = vpop.f32.mrb[0].mxu0
    %v468 = vadd.f32 %v105, %v467
    %v469 = vpop.f32.mrb[0].mxu0
    %470 = vmatprep.mubr.f32.mxu0 0.0
    %471 = vmatmul.mubr.f32.gmra.mrb[0].mxu0 %v187
    %v472 = vpop.f32.mrb[0].mxu0
    %v473 = vadd.f32 %v105, %v472
    %v474 = vpop.f32.mrb[0].mxu0
    %475 = vmatprep.mubr.f32.mxu0 0.0
    %476 = vmatmul.mubr.f32.gmra.mrb[0].mxu0 %v190
    %v477 = vpop.f32.mrb[0].mxu0
    %v478 = vadd.f32 %v105, %v477
    %v479 = vpop.f32.mrb[0].mxu0
    %480 = vmatprep.mubr.f32.mxu0 0.0
    %481 = vmatmul.mubr.f32.gmra.mrb[0].mxu0 %v193
    %v482 = vpop.f32.mrb[0].mxu0
    %v483 = vadd.f32 %v105, %v482
    %v484 = vpop.f32.mrb[0].mxu0
    %485 = vmatprep.mubr.f32.mxu0 0.0
    %486 = vmatmul.mubr.f32.gmra.mrb[0].mxu0 %v196
    %v487 = vpop.f32.mrb[0].mxu0
    %v488 = vadd.f32 %v105, %v487
    %v489 = vpop.f32.mrb[0].mxu0
    %490 = vmatprep.mubr.f32.mxu0 0.0
    %491 = vmatmul.mubr.f32.gmra.mrb[0].mxu0 %v199
    %v492 = vpop.f32.mrb[0].mxu0
    %v493 = vadd.f32 %v105, %v492
    %v494 = vpop.f32.mrb[0].mxu0
    %495 = vmatprep.mubr.f32.mxu0 0.0
    %496 = vmatmul.mubr.f32.gmra.mrb[0].mxu0 %v202
    %v497 = vpop.f32.mrb[0].mxu0
    %v498 = vadd.f32 %v105, %v497
    %v499 = vpop.f32.mrb[0].mxu0
    %500 = vmatprep.mubr.f32.mxu0 0.0
    %501 = vmatmul.mubr.f32.gmra.mrb[0].mxu0 %v205
    %v502 = vpop.f32.mrb[0].mxu0
    %v503 = vadd.f32 %v105, %v502
    %v504 = vpop.f32.mrb[0].mxu0
    %505 = vmatprep.mubr.f32.mxu0 0.0
    %506 = vmatmul.mubr.f32.gmra.mrb[0].mxu0 %v208
    %v507 = vpop.f32.mrb[0].mxu0
    %v508 = vadd.f32 %v105, %v507
    %v509 = vpop.f32.mrb[0].mxu0
    %510 = vmatprep.mubr.f32.mxu0 0.0
    %511 = vmatmul.mubr.f32.gmra.mrb[0].mxu0 %v211
    %v512 = vpop.f32.mrb[0].mxu0
    %v513 = vadd.f32 %v105, %v512
    %v514 = vpop.f32.mrb[0].mxu0
    %515 = vmatprep.mubr.f32.mxu0 0.0
    %516 = vmatmul.mubr.f32.gmra.mrb[0].mxu0 %v214
    %v517 = vpop.f32.mrb[0].mxu0
    %v518 = vadd.f32 %v105, %v517
    %v519 = vpop.f32.mrb[0].mxu0
    %520 = vmatprep.mubr.f32.mxu0 0.0
    %521 = vmatmul.mubr.f32.gmra.mrb[0].mxu0 %v217
    %v522 = vpop.f32.mrb[0].mxu0
    %v523 = vadd.f32 %v105, %v522
    %v524 = vpop.f32.mrb[0].mxu0
    %525 = vmatprep.mubr.f32.mxu0 0.0
    %526 = vmatmul.mubr.f32.gmra.mrb[0].mxu0 %v220
    %v527 = vpop.f32.mrb[0].mxu0
    %v528 = vadd.f32 %v105, %v527
    %v529 = vpop.f32.mrb[0].mxu0
    %530 = vmatprep.mubr.f32.mxu0 0.0
    %531 = vmatmul.mubr.f32.gmra.mrb[0].mxu0 %v223
    %v532 = vpop.f32.mrb[0].mxu0
    %v533 = vadd.f32 %v105, %v532
    %v534 = vpop.f32.mrb[0].mxu0
    %535 = vmatprep.mubr.f32.mxu0 0.0
    %536 = vmatmul.mubr.f32.gmra.mrb[0].mxu0 %v226
    %v537 = vpop.f32.mrb[0].mxu0
    %v538 = vadd.f32 %v105, %v537
    %v539 = vpop.f32.mrb[0].mxu0
    %540 = vmatprep.mubr.f32.mxu0 0.0
    %541 = vmatmul.mubr.f32.gmra.mrb[0].mxu0 %v229
    %v542 = vpop.f32.mrb[0].mxu0
    %v543 = vadd.f32 %v105, %v542
    %v544 = vpop.f32.mrb[0].mxu0
    %545 = vmatprep.mubr.f32.mxu0 0.0
    %546 = vmatmul.mubr.f32.gmra.mrb[0].mxu0 %v232
    %v547 = vpop.f32.mrb[0].mxu0
    %v548 = vadd.f32 %v105, %v547
    %v549 = vpop.f32.mrb[0].mxu0
    %550 = vmatprep.mubr.f32.mxu0 0.0
    %551 = vmatmul.mubr.f32.gmra.mrb[0].mxu0 %v235
    %v552 = vpop.f32.mrb[0].mxu0
    %v553 = vadd.f32 %v105, %v552
    %v554 = vpop.f32.mrb[0].mxu0
    %555 = vmatprep.mubr.f32.mxu0 0.0
    %556 = vmatmul.mubr.f32.gmra.mrb[0].mxu0 %v238
    %v557 = vpop.f32.mrb[0].mxu0
    %v558 = vadd.f32 %v105, %v557
    %v559 = vpop.f32.mrb[0].mxu0
    %560 = vmatprep.mubr.f32.mxu0 0.0
    %561 = vmatmul.mubr.f32.gmra.mrb[0].mxu0 %v241
    %v562 = vpop.f32.mrb[0].mxu0
    %v563 = vadd.f32 %v105, %v562
    %v564 = vpop.f32.mrb[0].mxu0
    %565 = vmatprep.mubr.f32.mxu0 0.0
    %566 = vmatmul.mubr.f32.gmra.mrb[0].mxu0 %v244
    %v567 = vpop.f32.mrb[0].mxu0
    %v568 = vadd.f32 %v105, %v567
    %v569 = vpop.f32.mrb[0].mxu0
    %570 = vmatprep.mubr.f32.mxu0 0.0
    %571 = vmatmul.mubr.f32.gmra.mrb[0].mxu0 %v247
    %v572 = vpop.f32.mrb[0].mxu0
    %v573 = vadd.f32 %v105, %v572
    %v574 = vpop.f32.mrb[0].mxu0
    %575 = vmatprep.mubr.f32.mxu0 0.0
    %576 = vmatmul.mubr.f32.gmra.mrb[0].mxu0 %v250
    %v577 = vpop.f32.mrb[0].mxu0
    %v578 = vadd.f32 %v105, %v577
    %v579 = vpop.f32.mrb[0].mxu0
    %580 = vmatprep.mubr.f32.mxu0 0.0
    %581 = vmatmul.mubr.f32.gmra.mrb[0].mxu0 %v253
    %v582 = vpop.f32.mrb[0].mxu0
    %v583 = vadd.f32 %v105, %v582
    %v584 = vpop.f32.mrb[0].mxu0
    %585 = vmatprep.mubr.f32.mxu0 0.0
    %586 = vmatmul.mubr.f32.gmra.mrb[0].mxu0 %v256
    %v587 = vpop.f32.mrb[0].mxu0
    %v588 = vadd.f32 %v105, %v587
    %v589 = vpop.f32.mrb[0].mxu0
    %590 = vmatprep.mubr.f32.mxu0 0.0
    %591 = vmatmul.mubr.f32.gmra.mrb[0].mxu0 %v259
    %v592 = vpop.f32.mrb[0].mxu0
    %v593 = vadd.f32 %v105, %v592
    %v594 = vpop.f32.mrb[0].mxu0
    %595 = vmatprep.mubr.f32.mxu0 0.0
    %596 = vmatmul.mubr.f32.gmra.mrb[0].mxu0 %v262
    %v597 = vpop.f32.mrb[0].mxu0
    %v598 = vadd.f32 %v105, %v597
    %v599 = vpop.f32.mrb[0].mxu0
    %600 = vmatprep.mubr.f32.mxu0 0.0
    %601 = vmatmul.mubr.f32.gmra.mrb[0].mxu0 %v265
    %v602 = vpop.f32.mrb[0].mxu0
    %v603 = vadd.f32 %v105, %v602
    %v604 = vpop.f32.mrb[0].mxu0
    %605 = vmatprep.mubr.f32.mxu0 0.0
    %606 = vmatmul.mubr.f32.gmra.mrb[0].mxu0 %v268
    %v607 = vpop.f32.mrb[0].mxu0
    %v608 = vadd.f32 %v105, %v607
    %v609 = vpop.f32.mrb[0].mxu0
    %610 = vmatprep.mubr.f32.mxu0 0.0
    %611 = vmatmul.mubr.f32.gmra.mrb[0].mxu0 %v271
    %v612 = vpop.f32.mrb[0].mxu0
    %v613 = vadd.f32 %v105, %v612
    %v614 = vpop.f32.mrb[0].mxu0
    %615 = vmatprep.mubr.f32.mxu0 0.0
    %616 = vmatmul.mubr.f32.gmra.mrb[0].mxu0 %v274
    %v617 = vpop.f32.mrb[0].mxu0
    %v618 = vadd.f32 %v105, %v617
    %v619 = vpop.f32.mrb[0].mxu0
    %620 = vdwg.mxu0
    %v621 = vmax.f32 %v343, 0.0
    %v622 = vmax.f32 %v348, 0.0
    %v623 = vmax.f32 %v353, 0.0
    %v624 = vmax.f32 %v358, 0.0
    %v625 = vmax.f32 %v363, 0.0
    %v626 = vmax.f32 %v368, 0.0
    %v627 = vmax.f32 %v373, 0.0
    %v628 = vmax.f32 %v378, 0.0
    %v629 = vmax.f32 %v383, 0.0
    %v630 = vmax.f32 %v388, 0.0
    %v631 = vmax.f32 %v393, 0.0
    %v632 = vmax.f32 %v398, 0.0
    %v633 = vmax.f32 %v403, 0.0
    %v634 = vmax.f32 %v408, 0.0
    %v635 = vmax.f32 %v413, 0.0
    %v636 = vmax.f32 %v418, 0.0
    %v637 = vmax.f32 %v423, 0.0
    %v638 = vmax.f32 %v428, 0.0
    %v639 = vmax.f32 %v433, 0.0
    %v640 = vmax.f32 %v438, 0.0
    %v641 = vmax.f32 %v443, 0.0
    %v642 = vmax.f32 %v448, 0.0
    %v643 = vmax.f32 %v453, 0.0
    %v644 = vmax.f32 %v458, 0.0
    %v645 = vmax.f32 %v463, 0.0
    %v646 = vmax.f32 %v468, 0.0
    %v647 = vmax.f32 %v473, 0.0
    %v648 = vmax.f32 %v478, 0.0
    %v649 = vmax.f32 %v483, 0.0
    %v650 = vmax.f32 %v488, 0.0
    %v651 = vmax.f32 %v493, 0.0
    %v652 = vmax.f32 %v498, 0.0
    %v653 = vmax.f32 %v503, 0.0
    %v654 = vmax.f32 %v508, 0.0
    %v655 = vmax.f32 %v513, 0.0
    %v656 = vmax.f32 %v518, 0.0
    %v657 = vmax.f32 %v523, 0.0
    %v658 = vmax.f32 %v528, 0.0
    %v659 = vmax.f32 %v533, 0.0
    %v660 = vmax.f32 %v538, 0.0
    %v661 = vmax.f32 %v543, 0.0
    %v662 = vmax.f32 %v548, 0.0
    %v663 = vmax.f32 %v553, 0.0
    %v664 = vmax.f32 %v558, 0.0
    %v665 = vmax.f32 %v563, 0.0
    %v666 = vmax.f32 %v568, 0.0
    %v667 = vmax.f32 %v573, 0.0
    %v668 = vmax.f32 %v578, 0.0
    %v669 = vmax.f32 %v583, 0.0
    %v670 = vmax.f32 %v588, 0.0
    %v671 = vmax.f32 %v593, 0.0
    %v672 = vmax.f32 %v598, 0.0
    %v673 = vmax.f32 %v603, 0.0
    %v674 = vmax.f32 %v608, 0.0
    %v675 = vmax.f32 %v613, 0.0
    %v676 = vmax.f32 %v618, 0.0
    %677 = vst [vmem:[#allocation2] sm:$0xff] %v621
    %678 = vst [vmem:[#allocation2 + $0x8] sm:$0xff] %v622
    %679 = vst [vmem:[#allocation2 + $0x10] sm:$0xff] %v623
    %680 = vst [vmem:[#allocation2 + $0x18] sm:$0xff] %v624
    %681 = vst [vmem:[#allocation2 + $0x20] sm:$0xff] %v625
    %682 = vst [vmem:[#allocation2 + $0x28] sm:$0xff] %v626
    %683 = vst [vmem:[#allocation2 + $0x30] sm:$0xff] %v627
    %684 = vst [vmem:[#allocation2 + $0x38] sm:$0xff] %v628
    %685 = vst [vmem:[#allocation2 + $0x40] sm:$0xff] %v629
    %686 = vst [vmem:[#allocation2 + $0x48] sm:$0xff] %v630
    %687 = vst [vmem:[#allocation2 + $0x50] sm:$0xff] %v631
    %688 = vst [vmem:[#allocation2 + $0x58] sm:$0xff] %v632
    %689 = vst [vmem:[#allocation2 + $0x60] sm:$0xff] %v633
    %690 = vst [vmem:[#allocation2 + $0x68] sm:$0xff] %v634
    %691 = vst [vmem:[#allocation2 + $0x70] sm:$0xff] %v635
    %692 = vst [vmem:[#allocation2 + $0x78] sm:$0xff] %v636
    %693 = vst [vmem:[#allocation2 + $0x80] sm:$0xff] %v637
    %694 = vst [vmem:[#allocation2 + $0x88] sm:$0xff] %v638
    %695 = vst [vmem:[#allocation2 + $0x90] sm:$0xff] %v639
    %696 = vst [vmem:[#allocation2 + $0x98] sm:$0xff] %v640
    %697 = vst [vmem:[#allocation2 + $0xa0] sm:$0xff] %v641
    %698 = vst [vmem:[#allocation2 + $0xa8] sm:$0xff] %v642
    %699 = vst [vmem:[#allocation2 + $0xb0] sm:$0xff] %v643
    %700 = vst [vmem:[#allocation2 + $0xb8] sm:$0xff] %v644
    %701 = vst [vmem:[#allocation2 + $0xc0] sm:$0xff] %v645
    %702 = vst [vmem:[#allocation2 + $0xc8] sm:$0xff] %v646
    %703 = vst [vmem:[#allocation2 + $0xd0] sm:$0xff] %v647
    %704 = vst [vmem:[#allocation2 + $0xd8] sm:$0xff] %v648
    %705 = vst [vmem:[#allocation2 + $0xe0] sm:$0xff] %v649
    %706 = vst [vmem:[#allocation2 + $0xe8] sm:$0xff] %v650
    %707 = vst [vmem:[#allocation2 + $0xf0] sm:$0xff] %v651
    %708 = vst [vmem:[#allocation2 + $0xf8] sm:$0xff] %v652
    %709 = vst [vmem:[#allocation2 + $0x100] sm:$0xff] %v653
    %710 = vst [vmem:[#allocation2 + $0x108] sm:$0xff] %v654
    %711 = vst [vmem:[#allocation2 + $0x110] sm:$0xff] %v655
    %712 = vst [vmem:[#allocation2 + $0x118] sm:$0xff] %v656
    %713 = vst [vmem:[#allocation2 + $0x120] sm:$0xff] %v657
    %714 = vst [vmem:[#allocation2 + $0x128] sm:$0xff] %v658
    %715 = vst [vmem:[#allocation2 + $0x130] sm:$0xff] %v659
    %716 = vst [vmem:[#allocation2 + $0x138] sm:$0xff] %v660
    %717 = vst [vmem:[#allocation2 + $0x140] sm:$0xff] %v661
    %718 = vst [vmem:[#allocation2 + $0x148] sm:$0xff] %v662
    %719 = vst [vmem:[#allocation2 + $0x150] sm:$0xff] %v663
    %720 = vst [vmem:[#allocation2 + $0x158] sm:$0xff] %v664
    %721 = vst [vmem:[#allocation2 + $0x160] sm:$0xff] %v665
    %722 = vst [vmem:[#allocation2 + $0x168] sm:$0xff] %v666
    %723 = vst [vmem:[#allocation2 + $0x170] sm:$0xff] %v667
    %724 = vst [vmem:[#allocation2 + $0x178] sm:$0xff] %v668
    %725 = vst [vmem:[#allocation2 + $0x180] sm:$0xff] %v669
    %726 = vst [vmem:[#allocation2 + $0x188] sm:$0xff] %v670
    %727 = vst [vmem:[#allocation2 + $0x190] sm:$0xff] %v671
    %728 = vst [vmem:[#allocation2 + $0x198] sm:$0xff] %v672
    %729 = vst [vmem:[#allocation2 + $0x1a0] sm:$0xff] %v673
    %730 = vst [vmem:[#allocation2 + $0x1a8] sm:$0xff] %v674
    %731 = vst [vmem:[#allocation2 + $0x1b0] sm:$0xff] %v675
    %732 = vst [vmem:[#allocation2 + $0x1b8] sm:$0xff] %v676
    %v733 = vld [vmem:[#allocation2] sm:$0xff]
    %v734 = vld [vmem:[#allocation2 + $0x8] sm:$0xff]
    %v735 = vld [vmem:[#allocation2 + $0x10] sm:$0xff]
    %v736 = vld [vmem:[#allocation2 + $0x18] sm:$0xff]
    %v737 = vld [vmem:[#allocation2 + $0x20] sm:$0xff]
    %v738 = vld [vmem:[#allocation2 + $0x28] sm:$0xff]
    %v739 = vld [vmem:[#allocation2 + $0x30] sm:$0xff]
    %v740 = vld [vmem:[#allocation2 + $0x38] sm:$0xff]
    %v741 = vld [vmem:[#allocation2 + $0x40] sm:$0xff]
    %v742 = vld [vmem:[#allocation2 + $0x48] sm:$0xff]
    %v743 = vld [vmem:[#allocation2 + $0x50] sm:$0xff]
    %v744 = vld [vmem:[#allocation2 + $0x58] sm:$0xff]
    %v745 = vld [vmem:[#allocation2 + $0x60] sm:$0xff]
    %v746 = vld [vmem:[#allocation2 + $0x68] sm:$0xff]
    %v747 = vld [vmem:[#allocation2 + $0x70] sm:$0xff]
    %v748 = vld [vmem:[#allocation2 + $0x78] sm:$0xff]
    %v749 = vld [vmem:[#allocation2 + $0x80] sm:$0xff]
    %v750 = vld [vmem:[#allocation2 + $0x88] sm:$0xff]
    %v751 = vld [vmem:[#allocation2 + $0x90] sm:$0xff]
    %v752 = vld [vmem:[#allocation2 + $0x98] sm:$0xff]
    %v753 = vld [vmem:[#allocation2 + $0xa0] sm:$0xff]
    %v754 = vld [vmem:[#allocation2 + $0xa8] sm:$0xff]
    %v755 = vld [vmem:[#allocation2 + $0xb0] sm:$0xff]
    %v756 = vld [vmem:[#allocation2 + $0xb8] sm:$0xff]
    %v757 = vld [vmem:[#allocation2 + $0xc0] sm:$0xff]
    %v758 = vld [vmem:[#allocation2 + $0xc8] sm:$0xff]
    %v759 = vld [vmem:[#allocation2 + $0xd0] sm:$0xff]
    %v760 = vld [vmem:[#allocation2 + $0xd8] sm:$0xff]
    %v761 = vld [vmem:[#allocation2 + $0xe0] sm:$0xff]
    %v762 = vld [vmem:[#allocation2 + $0xe8] sm:$0xff]
    %v763 = vld [vmem:[#allocation2 + $0xf0] sm:$0xff]
    %v764 = vld [vmem:[#allocation2 + $0xf8] sm:$0xff]
    %v765 = vld [vmem:[#allocation2 + $0x100] sm:$0xff]
    %v766 = vld [vmem:[#allocation2 + $0x108] sm:$0xff]
    %v767 = vld [vmem:[#allocation2 + $0x110] sm:$0xff]
    %v768 = vld [vmem:[#allocation2 + $0x118] sm:$0xff]
    %v769 = vld [vmem:[#allocation2 + $0x120] sm:$0xff]
    %v770 = vld [vmem:[#allocation2 + $0x128] sm:$0xff]
    %v771 = vld [vmem:[#allocation2 + $0x130] sm:$0xff]
    %v772 = vld [vmem:[#allocation2 + $0x138] sm:$0xff]
    %v773 = vld [vmem:[#allocation2 + $0x140] sm:$0xff]
    %v774 = vld [vmem:[#allocation2 + $0x148] sm:$0xff]
    %v775 = vld [vmem:[#allocation2 + $0x150] sm:$0xff]
    %v776 = vld [vmem:[#allocation2 + $0x158] sm:$0xff]
    %v777 = vld [vmem:[#allocation2 + $0x160] sm:$0xff]
    %v778 = vld [vmem:[#allocation2 + $0x168] sm:$0xff]
    %v779 = vld [vmem:[#allocation2 + $0x170] sm:$0xff]
    %v780 = vld [vmem:[#allocation2 + $0x178] sm:$0xff]
    %v781 = vld [vmem:[#allocation2 + $0x180] sm:$0xff]
    %v782 = vld [vmem:[#allocation2 + $0x188] sm:$0xff]
    %v783 = vld [vmem:[#allocation2 + $0x190] sm:$0xff]
    %v784 = vld [vmem:[#allocation2 + $0x198] sm:$0xff]
    %v785 = vld [vmem:[#allocation2 + $0x1] sm:$0xff]
    %v786 = vld [vmem:[#allocation2 + $0x9] sm:$0xff]
    %v787 = vld [vmem:[#allocation2 + $0x11] sm:$0xff]
    %v788 = vld [vmem:[#allocation2 + $0x19] sm:$0xff]
    %v789 = vld [vmem:[#allocation2 + $0x21] sm:$0xff]
    %v790 = vld [vmem:[#allocation2 + $0x29] sm:$0xff]
    %v791 = vld [vmem:[#allocation2 + $0x31] sm:$0xff]
    %v792 = vld [vmem:[#allocation2 + $0x39] sm:$0xff]
    %v793 = vld [vmem:[#allocation2 + $0x41] sm:$0xff]
    %v794 = vld [vmem:[#allocation2 + $0x49] sm:$0xff]
    %v795 = vld [vmem:[#allocation2 + $0x51] sm:$0xff]
    %v796 = vld [vmem:[#allocation2 + $0x59] sm:$0xff]
    %v797 = vld [vmem:[#allocation2 + $0x61] sm:$0xff]
    %v798 = vld [vmem:[#allocation2 + $0x69] sm:$0xff]
    %v799 = vld [vmem:[#allocation2 + $0x71] sm:$0xff]
    %v800 = vld [vmem:[#allocation2 + $0x79] sm:$0xff]
    %v801 = vld [vmem:[#allocation2 + $0x81] sm:$0xff]
    %v802 = vld [vmem:[#allocation2 + $0x89] sm:$0xff]
    %v803 = vld [vmem:[#allocation2 + $0x91] sm:$0xff]
    %v804 = vld [vmem:[#allocation2 + $0x99] sm:$0xff]
    %v805 = vld [vmem:[#allocation2 + $0xa1] sm:$0xff]
    %v806 = vld [vmem:[#allocation2 + $0xa9] sm:$0xff]
    %v807 = vld [vmem:[#allocation2 + $0xb1] sm:$0xff]
    %v808 = vld [vmem:[#allocation2 + $0xb9] sm:$0xff]
    %v809 = vld [vmem:[#allocation2 + $0xc1] sm:$0xff]
    %v810 = vld [vmem:[#allocation2 + $0xc9] sm:$0xff]
    %v811 = vld [vmem:[#allocation2 + $0xd1] sm:$0xff]
    %v812 = vld [vmem:[#allocation2 + $0xd9] sm:$0xff]
    %v813 = vld [vmem:[#allocation2 + $0xe1] sm:$0xff]
    %v814 = vld [vmem:[#allocation2 + $0xe9] sm:$0xff]
    %v815 = vld [vmem:[#allocation2 + $0xf1] sm:$0xff]
    %v816 = vld [vmem:[#allocation2 + $0xf9] sm:$0xff]
    %v817 = vld [vmem:[#allocation2 + $0x101] sm:$0xff]
    %v818 = vld [vmem:[#allocation2 + $0x109] sm:$0xff]
    %v819 = vld [vmem:[#allocation2 + $0x111] sm:$0xff]
    %v820 = vld [vmem:[#allocation2 + $0x119] sm:$0xff]
    %v821 = vld [vmem:[#allocation2 + $0x121] sm:$0xff]
    %v822 = vld [vmem:[#allocation2 + $0x129] sm:$0xff]
    %v823 = vld [vmem:[#allocation2 + $0x131] sm:$0xff]
    %v824 = vld [vmem:[#allocation2 + $0x139] sm:$0xff]
    %v825 = vld [vmem:[#allocation2 + $0x141] sm:$0xff]
    %v826 = vld [vmem:[#allocation2 + $0x149] sm:$0xff]
    %v827 = vld [vmem:[#allocation2 + $0x151] sm:$0xff]
    %v828 = vld [vmem:[#allocation2 + $0x159] sm:$0xff]
    %v829 = vld [vmem:[#allocation2 + $0x161] sm:$0xff]
    %v830 = vld [vmem:[#allocation2 + $0x169] sm:$0xff]
    %v831 = vld [vmem:[#allocation2 + $0x171] sm:$0xff]
    %v832 = vld [vmem:[#allocation2 + $0x179] sm:$0xff]
    %v833 = vld [vmem:[#allocation2 + $0x181] sm:$0xff]
    %v834 = vld [vmem:[#allocation2 + $0x189] sm:$0xff]
    %v835 = vld [vmem:[#allocation2 + $0x191] sm:$0xff]
    %v836 = vld [vmem:[#allocation2 + $0x199] sm:$0xff]
    %v837 = vmax.f32 %v733, %v785
    %v838 = vmax.f32 %v734, %v786
    %v839 = vmax.f32 %v735, %v787
    %v840 = vmax.f32 %v736, %v788
    %v841 = vmax.f32 %v737, %v789
    %v842 = vmax.f32 %v738, %v790
    %v843 = vmax.f32 %v739, %v791
    %v844 = vmax.f32 %v740, %v792
    %v845 = vmax.f32 %v741, %v793
    %v846 = vmax.f32 %v742, %v794
    %v847 = vmax.f32 %v743, %v795
    %v848 = vmax.f32 %v744, %v796
    %v849 = vmax.f32 %v745, %v797
    %v850 = vmax.f32 %v746, %v798
    %v851 = vmax.f32 %v747, %v799
    %v852 = vmax.f32 %v748, %v800
    %v853 = vmax.f32 %v749, %v801
    %v854 = vmax.f32 %v750, %v802
    %v855 = vmax.f32 %v751, %v803
    %v856 = vmax.f32 %v752, %v804
    %v857 = vmax.f32 %v753, %v805
    %v858 = vmax.f32 %v754, %v806
    %v859 = vmax.f32 %v755, %v807
    %v860 = vmax.f32 %v756, %v808
    %v861 = vmax.f32 %v757, %v809
    %v862 = vmax.f32 %v758, %v810
    %v863 = vmax.f32 %v759, %v811
    %v864 = vmax.f32 %v760, %v812
    %v865 = vmax.f32 %v761, %v813
    %v866 = vmax.f32 %v762, %v814
    %v867 = vmax.f32 %v763, %v815
    %v868 = vmax.f32 %v764, %v816
    %v869 = vmax.f32 %v765, %v817
    %v870 = vmax.f32 %v766, %v818
    %v871 = vmax.f32 %v767, %v819
    %v872 = vmax.f32 %v768, %v820
    %v873 = vmax.f32 %v769, %v821
    %v874 = vmax.f32 %v770, %v822
    %v875 = vmax.f32 %v771, %v823
    %v876 = vmax.f32 %v772, %v824
    %v877 = vmax.f32 %v773, %v825
    %v878 = vmax.f32 %v774, %v826
    %v879 = vmax.f32 %v775, %v827
    %v880 = vmax.f32 %v776, %v828
    %v881 = vmax.f32 %v777, %v829
    %v882 = vmax.f32 %v778, %v830
    %v883 = vmax.f32 %v779, %v831
    %v884 = vmax.f32 %v780, %v832
    %v885 = vmax.f32 %v781, %v833
    %v886 = vmax.f32 %v782, %v834
    %v887 = vmax.f32 %v783, %v835
    %v888 = vmax.f32 %v784, %v836
    %v889 = vld [vmem:[#allocation2 + $0x16] sm:$0xff]
    %v890 = vld [vmem:[#allocation2 + $0x1e] sm:$0xff]
    %v891 = vld [vmem:[#allocation2 + $0x26] sm:$0xff]
    %v892 = vld [vmem:[#allocation2 + $0x2e] sm:$0xff]
    %v893 = vld [vmem:[#allocation2 + $0x36] sm:$0xff]
    %v894 = vld [vmem:[#allocation2 + $0x3e] sm:$0xff]
    %v895 = vld [vmem:[#allocation2 + $0x46] sm:$0xff]
    %v896 = vld [vmem:[#allocation2 + $0x4e] sm:$0xff]
    %v897 = vld [vmem:[#allocation2 + $0x56] sm:$0xff]
    %v898 = vld [vmem:[#allocation2 + $0x5e] sm:$0xff]
    %v899 = vld [vmem:[#allocation2 + $0x66] sm:$0xff]
    %v900 = vld [vmem:[#allocation2 + $0x6e] sm:$0xff]
    %v901 = vld [vmem:[#allocation2 + $0x76] sm:$0xff]
    %v902 = vld [vmem:[#allocation2 + $0x7e] sm:$0xff]
    %v903 = vld [vmem:[#allocation2 + $0x86] sm:$0xff]
    %v904 = vld [vmem:[#allocation2 + $0x8e] sm:$0xff]
    %v905 = vld [vmem:[#allocation2 + $0x96] sm:$0xff]
    %v906 = vld [vmem:[#allocation2 + $0x9e] sm:$0xff]
    %v907 = vld [vmem:[#allocation2 + $0xa6] sm:$0xff]
    %v908 = vld [vmem:[#allocation2 + $0xae] sm:$0xff]
    %v909 = vld [vmem:[#allocation2 + $0xb6] sm:$0xff]
    %v910 = vld [vmem:[#allocation2 + $0xbe] sm:$0xff]
    %v911 = vld [vmem:[#allocation2 + $0xc6] sm:$0xff]
    %v912 = vld [vmem:[#allocation2 + $0xce] sm:$0xff]
    %v913 = vld [vmem:[#allocation2 + $0xd6] sm:$0xff]
    %v914 = vld [vmem:[#allocation2 + $0xde] sm:$0xff]
    %v915 = vld [vmem:[#allocation2 + $0xe6] sm:$0xff]
    %v916 = vld [vmem:[#allocation2 + $0xee] sm:$0xff]
    %v917 = vld [vmem:[#allocation2 + $0xf6] sm:$0xff]
    %v918 = vld [vmem:[#allocation2 + $0xfe] sm:$0xff]
    %v919 = vld [vmem:[#allocation2 + $0x106] sm:$0xff]
    %v920 = vld [vmem:[#allocation2 + $0x10e] sm:$0xff]
    %v921 = vld [vmem:[#allocation2 + $0x116] sm:$0xff]
    %v922 = vld [vmem:[#allocation2 + $0x11e] sm:$0xff]
    %v923 = vld [vmem:[#allocation2 + $0x126] sm:$0xff]
    %v924 = vld [vmem:[#allocation2 + $0x12e] sm:$0xff]
    %v925 = vld [vmem:[#allocation2 + $0x136] sm:$0xff]
    %v926 = vld [vmem:[#allocation2 + $0x13e] sm:$0xff]
    %v927 = vld [vmem:[#allocation2 + $0x146] sm:$0xff]
    %v928 = vld [vmem:[#allocation2 + $0x14e] sm:$0xff]
    %v929 = vld [vmem:[#allocation2 + $0x156] sm:$0xff]
    %v930 = vld [vmem:[#allocation2 + $0x15e] sm:$0xff]
    %v931 = vld [vmem:[#allocation2 + $0x166] sm:$0xff]
    %v932 = vld [vmem:[#allocation2 + $0x16e] sm:$0xff]
    %v933 = vld [vmem:[#allocation2 + $0x176] sm:$0xff]
    %v934 = vld [vmem:[#allocation2 + $0x17e] sm:$0xff]
    %v935 = vld [vmem:[#allocation2 + $0x186] sm:$0xff]
    %v936 = vld [vmem:[#allocation2 + $0x18e] sm:$0xff]
    %v937 = vld [vmem:[#allocation2 + $0x196] sm:$0xff]
    %v938 = vld [vmem:[#allocation2 + $0x19e] sm:$0xff]
    %v939 = vld [vmem:[#allocation2 + $0x1a6] sm:$0xff]
    %v940 = vld [vmem:[#allocation2 + $0x1ae] sm:$0xff]
    %v941 = vld [vmem:[#allocation2 + $0x17] sm:$0xff]
    %v942 = vld [vmem:[#allocation2 + $0x1f] sm:$0xff]
    %v943 = vld [vmem:[#allocation2 + $0x27] sm:$0xff]
    %v944 = vld [vmem:[#allocation2 + $0x2f] sm:$0xff]
    %v945 = vld [vmem:[#allocation2 + $0x37] sm:$0xff]
    %v946 = vld [vmem:[#allocation2 + $0x3f] sm:$0xff]
    %v947 = vld [vmem:[#allocation2 + $0x47] sm:$0xff]
    %v948 = vld [vmem:[#allocation2 + $0x4f] sm:$0xff]
    %v949 = vld [vmem:[#allocation2 + $0x57] sm:$0xff]
    %v950 = vld [vmem:[#allocation2 + $0x5f] sm:$0xff]
    %v951 = vld [vmem:[#allocation2 + $0x67] sm:$0xff]
    %v952 = vld [vmem:[#allocation2 + $0x6f] sm:$0xff]
    %v953 = vld [vmem:[#allocation2 + $0x77] sm:$0xff]
    %v954 = vld [vmem:[#allocation2 + $0x7f] sm:$0xff]
    %v955 = vld [vmem:[#allocation2 + $0x87] sm:$0xff]
    %v956 = vld [vmem:[#allocation2 + $0x8f] sm:$0xff]
    %v957 = vld [vmem:[#allocation2 + $0x97] sm:$0xff]
    %v958 = vld [vmem:[#allocation2 + $0x9f] sm:$0xff]
    %v959 = vld [vmem:[#allocation2 + $0xa7] sm:$0xff]
    %v960 = vld [vmem:[#allocation2 + $0xaf] sm:$0xff]
    %v961 = vld [vmem:[#allocation2 + $0xb7] sm:$0xff]
    %v962 = vld [vmem:[#allocation2 + $0xbf] sm:$0xff]
    %v963 = vld [vmem:[#allocation2 + $0xc7] sm:$0xff]
    %v964 = vld [vmem:[#allocation2 + $0xcf] sm:$0xff]
    %v965 = vld [vmem:[#allocation2 + $0xd7] sm:$0xff]
    %v966 = vld [vmem:[#allocation2 + $0xdf] sm:$0xff]
    %v967 = vld [vmem:[#allocation2 + $0xe7] sm:$0xff]
    %v968 = vld [vmem:[#allocation2 + $0xef] sm:$0xff]
    %v969 = vld [vmem:[#allocation2 + $0xf7] sm:$0xff]
    %v970 = vld [vmem:[#allocation2 + $0xff] sm:$0xff]
    %v971 = vld [vmem:[#allocation2 + $0x107] sm:$0xff]
    %v972 = vld [vmem:[#allocation2 + $0x10f] sm:$0xff]
    %v973 = vld [vmem:[#allocation2 + $0x117] sm:$0xff]
    %v974 = vld [vmem:[#allocation2 + $0x11f] sm:$0xff]
    %v975 = vld [vmem:[#allocation2 + $0x127] sm:$0xff]
    %v976 = vld [vmem:[#allocation2 + $0x12f] sm:$0xff]
    %v977 = vld [vmem:[#allocation2 + $0x137] sm:$0xff]
    %v978 = vld [vmem:[#allocation2 + $0x13f] sm:$0xff]
    %v979 = vld [vmem:[#allocation2 + $0x147] sm:$0xff]
    %v980 = vld [vmem:[#allocation2 + $0x14f] sm:$0xff]
    %v981 = vld [vmem:[#allocation2 + $0x157] sm:$0xff]
    %v982 = vld [vmem:[#allocation2 + $0x15f] sm:$0xff]
    %v983 = vld [vmem:[#allocation2 + $0x167] sm:$0xff]
    %v984 = vld [vmem:[#allocation2 + $0x16f] sm:$0xff]
    %v985 = vld [vmem:[#allocation2 + $0x177] sm:$0xff]
    %v986 = vld [vmem:[#allocation2 + $0x17f] sm:$0xff]
    %v987 = vld [vmem:[#allocation2 + $0x187] sm:$0xff]
    %v988 = vld [vmem:[#allocation2 + $0x18f] sm:$0xff]
    %v989 = vld [vmem:[#allocation2 + $0x197] sm:$0xff]
    %v990 = vld [vmem:[#allocation2 + $0x19f] sm:$0xff]
    %v991 = vld [vmem:[#allocation2 + $0x1a7] sm:$0xff]
    %v992 = vld [vmem:[#allocation2 + $0x1af] sm:$0xff]
    %v993 = vmax.f32 %v889, %v941
    %v994 = vmax.f32 %v890, %v942
    %v995 = vmax.f32 %v891, %v943
    %v996 = vmax.f32 %v892, %v944
    %v997 = vmax.f32 %v893, %v945
    %v998 = vmax.f32 %v894, %v946
    %v999 = vmax.f32 %v895, %v947
    %v1000 = vmax.f32 %v896, %v948
    %v1001 = vmax.f32 %v897, %v949
    %v1002 = vmax.f32 %v898, %v950
    %v1003 = vmax.f32 %v899, %v951
    %v1004 = vmax.f32 %v900, %v952
    %v1005 = vmax.f32 %v901, %v953
    %v1006 = vmax.f32 %v902, %v954
    %v1007 = vmax.f32 %v903, %v955
    %v1008 = vmax.f32 %v904, %v956
    %v1009 = vmax.f32 %v905, %v957
    %v1010 = vmax.f32 %v906, %v958
    %v1011 = vmax.f32 %v907, %v959
    %v1012 = vmax.f32 %v908, %v960
    %v1013 = vmax.f32 %v909, %v961
    %v1014 = vmax.f32 %v910, %v962
    %v1015 = vmax.f32 %v911, %v963
    %v1016 = vmax.f32 %v912, %v964
    %v1017 = vmax.f32 %v913, %v965
    %v1018 = vmax.f32 %v914, %v966
    %v1019 = vmax.f32 %v915, %v967
    %v1020 = vmax.f32 %v916, %v968
    %v1021 = vmax.f32 %v917, %v969
    %v1022 = vmax.f32 %v918, %v970
    %v1023 = vmax.f32 %v919, %v971
    %v1024 = vmax.f32 %v920, %v972
    %v1025 = vmax.f32 %v921, %v973
    %v1026 = vmax.f32 %v922, %v974
    %v1027 = vmax.f32 %v923, %v975
    %v1028 = vmax.f32 %v924, %v976
    %v1029 = vmax.f32 %v925, %v977
    %v1030 = vmax.f32 %v926, %v978
    %v1031 = vmax.f32 %v927, %v979
    %v1032 = vmax.f32 %v928, %v980
    %v1033 = vmax.f32 %v929, %v981
    %v1034 = vmax.f32 %v930, %v982
    %v1035 = vmax.f32 %v931, %v983
    %v1036 = vmax.f32 %v932, %v984
    %v1037 = vmax.f32 %v933, %v985
    %v1038 = vmax.f32 %v934, %v986
    %v1039 = vmax.f32 %v935, %v987
    %v1040 = vmax.f32 %v936, %v988
    %v1041 = vmax.f32 %v937, %v989
    %v1042 = vmax.f32 %v938, %v990
    %v1043 = vmax.f32 %v939, %v991
    %v1044 = vmax.f32 %v940, %v992
    %v1045 = vmax.f32 %v837, %v993
    %v1046 = vmax.f32 %v838, %v994
    %v1047 = vmax.f32 %v839, %v995
    %v1048 = vmax.f32 %v840, %v996
    %v1049 = vmax.f32 %v841, %v997
    %v1050 = vmax.f32 %v842, %v998
    %v1051 = vmax.f32 %v843, %v999
    %v1052 = vmax.f32 %v844, %v1000
    %v1053 = vmax.f32 %v845, %v1001
    %v1054 = vmax.f32 %v846, %v1002
    %v1055 = vmax.f32 %v847, %v1003
    %v1056 = vmax.f32 %v848, %v1004
    %v1057 = vmax.f32 %v849, %v1005
    %v1058 = vmax.f32 %v850, %v1006
    %v1059 = vmax.f32 %v851, %v1007
    %v1060 = vmax.f32 %v852, %v1008
    %v1061 = vmax.f32 %v853, %v1009
    %v1062 = vmax.f32 %v854, %v1010
    %v1063 = vmax.f32 %v855, %v1011
    %v1064 = vmax.f32 %v856, %v1012
    %v1065 = vmax.f32 %v857, %v1013
    %v1066 = vmax.f32 %v858, %v1014
    %v1067 = vmax.f32 %v859, %v1015
    %v1068 = vmax.f32 %v860, %v1016
    %v1069 = vmax.f32 %v861, %v1017
    %v1070 = vmax.f32 %v862, %v1018
    %v1071 = vmax.f32 %v863, %v1019
    %v1072 = vmax.f32 %v864, %v1020
    %v1073 = vmax.f32 %v865, %v1021
    %v1074 = vmax.f32 %v866, %v1022
    %v1075 = vmax.f32 %v867, %v1023
    %v1076 = vmax.f32 %v868, %v1024
    %v1077 = vmax.f32 %v869, %v1025
    %v1078 = vmax.f32 %v870, %v1026
    %v1079 = vmax.f32 %v871, %v1027
    %v1080 = vmax.f32 %v872, %v1028
    %v1081 = vmax.f32 %v873, %v1029
    %v1082 = vmax.f32 %v874, %v1030
    %v1083 = vmax.f32 %v875, %v1031
    %v1084 = vmax.f32 %v876, %v1032
    %v1085 = vmax.f32 %v877, %v1033
    %v1086 = vmax.f32 %v878, %v1034
    %v1087 = vmax.f32 %v879, %v1035
    %v1088 = vmax.f32 %v880, %v1036
    %v1089 = vmax.f32 %v881, %v1037
    %v1090 = vmax.f32 %v882, %v1038
    %v1091 = vmax.f32 %v883, %v1039
    %v1092 = vmax.f32 %v884, %v1040
    %v1093 = vmax.f32 %v885, %v1041
    %v1094 = vmax.f32 %v886, %v1042
    %v1095 = vmax.f32 %v887, %v1043
    %v1096 = vmax.f32 %v888, %v1044
    %v1097 = vld [vmem:[%s4] sm:$0xff]
    %v1098 = vld [vmem:[%s4 + $0x8] sm:$0xff]
    %v1099 = vld [vmem:[%s4 + $0x10] sm:$0xff]
    %v1100 = vld [vmem:[%s4 + $0x18] sm:$0xff]
    %v1101 = vld [vmem:[%s4 + $0x20] sm:$0xff]
    %v1102 = vld [vmem:[%s4 + $0x28] sm:$0xff]
    %v1103 = vld [vmem:[%s4 + $0x30] sm:$0xff]
    %v1104 = vld [vmem:[%s4 + $0x38] sm:$0xff]
    %v1105 = vld [vmem:[%s4 + $0x40] sm:$0xff]
    %v1106 = vld [vmem:[%s4 + $0x48] sm:$0xff]
    %v1107 = vld [vmem:[%s4 + $0x50] sm:$0xff]
    %v1108 = vld [vmem:[%s4 + $0x58] sm:$0xff]
    %v1109 = vld [vmem:[%s4 + $0x60] sm:$0xff]
    %v1110 = vld [vmem:[%s4 + $0x68] sm:$0xff]
    %v1111 = vld [vmem:[%s4 + $0x70] sm:$0xff]
    %v1112 = vld [vmem:[%s4 + $0x78] sm:$0xff]
    %v1113 = vld [vmem:[%s4 + $0x80] sm:$0xff]
    %v1114 = vld [vmem:[%s4 + $0x88] sm:$0xff]
    %v1115 = vld [vmem:[%s4 + $0x90] sm:$0xff]
    %v1116 = vld [vmem:[%s4 + $0x98] sm:$0xff]
    %v1117 = vld [vmem:[%s4 + $0xa0] sm:$0xff]
    %v1118 = vld [vmem:[%s4 + $0xa8] sm:$0xff]
    %v1119 = vld [vmem:[%s4 + $0xb0] sm:$0xff]
    %v1120 = vld [vmem:[%s4 + $0xb8] sm:$0xff]
    %v1121 = vld [vmem:[%s4 + $0xc0] sm:$0xff]
    %v1122 = vld [vmem:[%s4 + $0xc8] sm:$0xff]
    %v1123 = vld [vmem:[%s4 + $0xd0] sm:$0xff]
    %v1124 = vld [vmem:[%s4 + $0xd8] sm:$0xff]
    %v1125 = vld [vmem:[%s4 + $0xe0] sm:$0xff]
    %v1126 = vld [vmem:[%s4 + $0xe8] sm:$0xff]
    %v1127 = vld [vmem:[%s4 + $0xf0] sm:$0xff]
    %v1128 = vld [vmem:[%s4 + $0xf8] sm:$0xff]
    %v1129 = vld [vmem:[%s4 + $0x100] sm:$0xff]
    %v1130 = vld [vmem:[%s4 + $0x108] sm:$0xff]
    %v1131 = vld [vmem:[%s4 + $0x110] sm:$0xff]
    %v1132 = vld [vmem:[%s4 + $0x118] sm:$0xff]
    %v1133 = vld [vmem:[%s4 + $0x120] sm:$0xff]
    %v1134 = vld [vmem:[%s4 + $0x128] sm:$0xff]
    %v1135 = vld [vmem:[%s4 + $0x130] sm:$0xff]
    %v1136 = vld [vmem:[%s4 + $0x138] sm:$0xff]
    %v1137 = vld [vmem:[%s4 + $0x140] sm:$0xff]
    %v1138 = vld [vmem:[%s4 + $0x148] sm:$0xff]
    %v1139 = vld [vmem:[%s4 + $0x150] sm:$0xff]
    %v1140 = vld [vmem:[%s4 + $0x158] sm:$0xff]
    %v1141 = vld [vmem:[%s4 + $0x160] sm:$0xff]
    %v1142 = vld [vmem:[%s4 + $0x168] sm:$0xff]
    %v1143 = vld [vmem:[%s4 + $0x170] sm:$0xff]
    %v1144 = vld [vmem:[%s4 + $0x178] sm:$0xff]
    %v1145 = vld [vmem:[%s4 + $0x180] sm:$0xff]
    %v1146 = vld [vmem:[%s4 + $0x188] sm:$0xff]
    %v1147 = vld [vmem:[%s4 + $0x190] sm:$0xff]
    %v1148 = vld [vmem:[%s4 + $0x198] sm:$0xff]
    %v1149 = vld [vmem:[%s4 + $0x1a0] sm:$0xff]
    %v1150 = vld [vmem:[%s4 + $0x1a8] sm:$0xff]
    %v1151 = vld [vmem:[%s4 + $0x1b0] sm:$0xff]
    %v1152 = vld [vmem:[%s4 + $0x1b8] sm:$0xff]
    %v1153 = vld [vmem:[%s4 + $0x1c0] sm:$0xff]
    %v1154 = vld [vmem:[%s4 + $0x1c8] sm:$0xff]
    %v1155 = vld [vmem:[%s4 + $0x1d0] sm:$0xff]
    %v1156 = vld [vmem:[%s4 + $0x1d8] sm:$0xff]
    %v1157 = vld [vmem:[%s4 + $0x1e0] sm:$0xff]
    %v1158 = vld [vmem:[%s4 + $0x1e8] sm:$0xff]
    %v1159 = vld [vmem:[%s4 + $0x1f0] sm:$0xff]
    %v1160 = vld [vmem:[%s4 + $0x1f8] sm:$0xff]
    %v1161 = vld [vmem:[%s4 + $0x200] sm:$0xff]
    %v1162 = vld [vmem:[%s4 + $0x208] sm:$0xff]
    %v1163 = vld [vmem:[%s4 + $0x210] sm:$0xff]
    %v1164 = vld [vmem:[%s4 + $0x218] sm:$0xff]
    %v1165 = vld [vmem:[%s4 + $0x220] sm:$0xff]
    %v1166 = vld [vmem:[%s4 + $0x228] sm:$0xff]
    %v1167 = vld [vmem:[%s4 + $0x230] sm:$0xff]
    %v1168 = vld [vmem:[%s4 + $0x238] sm:$0xff]
    %v1169 = vld [vmem:[%s4 + $0x240] sm:$0xff]
    %v1170 = vld [vmem:[%s4 + $0x248] sm:$0xff]
    %v1171 = vld [vmem:[%s4 + $0x250] sm:$0xff]
    %v1172 = vld [vmem:[%s4 + $0x258] sm:$0xff]
    %v1173 = vld [vmem:[%s4 + $0x260] sm:$0xff]
    %v1174 = vld [vmem:[%s4 + $0x268] sm:$0xff]
    %v1175 = vld [vmem:[%s4 + $0x270] sm:$0xff]
    %v1176 = vld [vmem:[%s4 + $0x278] sm:$0xff]
    %v1177 = vld [vmem:[%s4 + $0x280] sm:$0xff]
    %v1178 = vld [vmem:[%s4 + $0x288] sm:$0xff]
    %v1179 = vld [vmem:[%s4 + $0x290] sm:$0xff]
    %v1180 = vld [vmem:[%s4 + $0x298] sm:$0xff]
    %vm1181 = vcmask 261120
    %v1183 = vsel %vm1181, %v1100, 0
    %v1186 = vsel %vm1181, %v1104, 0
    %v1189 = vsel %vm1181, %v1108, 0
    %v1192 = vsel %vm1181, %v1112, 0
    %v1195 = vsel %vm1181, %v1116, 0
    %v1198 = vsel %vm1181, %v1120, 0
    %v1201 = vsel %vm1181, %v1124, 0
    %v1204 = vsel %vm1181, %v1128, 0
    %v1207 = vsel %vm1181, %v1132, 0
    %v1210 = vsel %vm1181, %v1136, 0
    %v1213 = vsel %vm1181, %v1140, 0
    %v1216 = vsel %vm1181, %v1144, 0
    %v1219 = vsel %vm1181, %v1148, 0
    %v1222 = vsel %vm1181, %v1152, 0
    %v1225 = vsel %vm1181, %v1156, 0
    %v1228 = vsel %vm1181, %v1160, 0
    %v1231 = vsel %vm1181, %v1164, 0
    %v1234 = vsel %vm1181, %v1168, 0
    %v1237 = vsel %vm1181, %v1172, 0
    %v1240 = vsel %vm1181, %v1176, 0
    %v1243 = vsel %vm1181, %v1180, 0
    %1245 = vmatprep.subr.mxu0 0.0
    %1246 = vmatpush1.msra.mxu0 %v1045
    %1247 = vmatprep.subr.mxu0 0.0
    %1248 = vmatpush1.msra.mxu0 %v1046
    %1249 = vmatprep.subr.mxu0 0.0
    %1250 = vmatpush1.msra.mxu0 %v1047
    %1251 = vmatprep.subr.mxu0 0.0
    %1252 = vmatpush1.msra.mxu0 %v1048
    %1253 = vmatprep.subr.mxu0 0.0
    %1254 = vmatpush1.msra.mxu0 %v1049
    %1255 = vmatprep.subr.mxu0 0.0
    %1256 = vmatpush1.msra.mxu0 %v1050
    %1257 = vmatprep.subr.mxu0 0.0
    %1258 = vmatpush1.msra.mxu0 %v1051
    %1259 = vmatprep.subr.mxu0 0.0
    %1260 = vmatpush1.msra.mxu0 %v1052
    %1261 = vmatprep.subr.mxu0 0.0
    %1262 = vmatpush1.msra.mxu0 %v1053
    %1263 = vmatprep.subr.mxu0 0.0
    %1264 = vmatpush1.msra.mxu0 %v1054
    %1265 = vmatprep.subr.mxu0 0.0
    %1266 = vmatpush1.msra.mxu0 %v1055
    %1267 = vmatprep.subr.mxu0 0.0
    %1268 = vmatpush1.msra.mxu0 %v1056
    %1269 = vmatprep.subr.mxu0 0.0
    %1270 = vmatpush1.msra.mxu0 %v1057
    %1271 = vmatprep.subr.mxu0 0.0
    %1272 = vmatpush1.msra.mxu0 %v1058
    %1273 = vmatprep.subr.mxu0 0.0
    %1274 = vmatpush1.msra.mxu0 %v1059
    %1275 = vmatprep.subr.mxu0 0.0
    %1276 = vmatpush1.msra.mxu0 %v1060
    %1277 = vmatprep.subr.mxu0 0.0
    %1278 = vmatpush1.msra.mxu0 %v1061
    %1279 = vmatprep.subr.mxu0 0.0
    %1280 = vmatpush1.msra.mxu0 %v1062
    %1281 = vmatprep.subr.mxu0 0.0
    %1282 = vmatpush1.msra.mxu0 %v1063
    %1283 = vmatprep.subr.mxu0 0.0
    %1284 = vmatpush1.msra.mxu0 %v1064
    %1285 = vmatprep.subr.mxu0 0.0
    %1286 = vmatpush1.msra.mxu0 %v1065
    %1287 = vmatprep.subr.mxu0 0.0
    %1288 = vmatpush1.msra.mxu0 %v1066
    %1289 = vmatprep.subr.mxu0 0.0
    %1290 = vmatpush1.msra.mxu0 %v1067
    %1291 = vmatprep.subr.mxu0 0.0
    %1292 = vmatpush1.msra.mxu0 %v1068
    %1293 = vmatprep.subr.mxu0 0.0
    %1294 = vmatpush1.msra.mxu0 %v1069
    %1295 = vmatprep.subr.mxu0 0.0
    %1296 = vmatpush1.msra.mxu0 %v1070
    %1297 = vmatprep.subr.mxu0 0.0
    %1298 = vmatpush1.msra.mxu0 %v1071
    %1299 = vmatprep.subr.mxu0 0.0
    %1300 = vmatpush1.msra.mxu0 %v1072
    %1301 = vmatprep.subr.mxu0 0.0
    %1302 = vmatpush1.msra.mxu0 %v1073
    %1303 = vmatprep.subr.mxu0 0.0
    %1304 = vmatpush1.msra.mxu0 %v1074
    %1305 = vmatprep.subr.mxu0 0.0
    %1306 = vmatpush1.msra.mxu0 %v1075
    %1307 = vmatprep.subr.mxu0 0.0
    %1308 = vmatpush1.msra.mxu0 %v1076
    %1309 = vmatprep.mubr.f32.mxu0 %v1098
    %1310 = vmatmul.mubr.f32.gmra.mrb[0].mxu0 %v1097
    %v1311 = vpop.f32.mrb[0].mxu0
    %v1312 = vadd.f32 0.0, %v1311
    %v1313 = vpop.f32.mrb[0].mxu0
    %1314 = vmatprep.mubr.f32.mxu0 %v1102
    %1315 = vmatmul.mubr.f32.gmra.mrb[0].mxu0 %v1101
    %v1316 = vpop.f32.mrb[0].mxu0
    %v1317 = vadd.f32 0.0, %v1316
    %v1318 = vpop.f32.mrb[0].mxu0
    %1319 = vmatprep.mubr.f32.mxu0 %v1106
    %1320 = vmatmul.mubr.f32.gmra.mrb[0].mxu0 %v1105
    %v1321 = vpop.f32.mrb[0].mxu0
    %v1322 = vadd.f32 0.0, %v1321
    %v1323 = vpop.f32.mrb[0].mxu0
    %1324 = vmatprep.mubr.f32.mxu0 %v1110
    %1325 = vmatmul.mubr.f32.gmra.mrb[0].mxu0 %v1109
    %v1326 = vpop.f32.mrb[0].mxu0
    %v1327 = vadd.f32 0.0, %v1326
    %v1328 = vpop.f32.mrb[0].mxu0
    %1329 = vmatprep.mubr.f32.mxu0 %v1114
    %1330 = vmatmul.mubr.f32.gmra.mrb[0].mxu0 %v1113
    %v1331 = vpop.f32.mrb[0].mxu0
    %v1332 = vadd.f32 0.0, %v1331
    %v1333 = vpop.f32.mrb[0].mxu0
    %1334 = vmatprep.mubr.f32.mxu0 %v1118
    %1335 = vmatmul.mubr.f32.gmra.mrb[0].mxu0 %v1117
    %v1336 = vpop.f32.mrb[0].mxu0
    %v1337 = vadd.f32 0.0, %v1336
    %v1338 = vpop.f32.mrb[0].mxu0
    %1339 = vmatprep.mubr.f32.mxu0 %v1122
    %1340 = vmatmul.mubr.f32.gmra.mrb[0].mxu0 %v1121
    %v1341 = vpop.f32.mrb[0].mxu0
    %v1342 = vadd.f32 0.0, %v1341
    %v1343 = vpop.f32.mrb[0].mxu0
    %1344 = vmatprep.mubr.f32.mxu0 %v1126
    %1345 = vmatmul.mubr.f32.gmra.mrb[0].mxu0 %v1125
    %v1346 = vpop.f32.mrb[0].mxu0
    %v1347 = vadd.f32 0.0, %v1346
    %v1348 = vpop.f32.mrb[0].mxu0
    %1349 = vmatprep.mubr.f32.mxu0 %v1130
    %1350 = vmatmul.mubr.f32.gmra.mrb[0].mxu0 %v1129
    %v1351 = vpop.f32.mrb[0].mxu0
    %v1352 = vadd.f32 0.0, %v1351
    %v1353 = vpop.f32.mrb[0].mxu0
    %1354 = vmatprep.mubr.f32.mxu0 %v1134
    %1355 = vmatmul.mubr.f32.gmra.mrb[0].mxu0 %v1133
    %v1356 = vpop.f32.mrb[0].mxu0
    %v1357 = vadd.f32 0.0, %v1356
    %v1358 = vpop.f32.mrb[0].mxu0
    %1359 = vmatprep.mubr.f32.mxu0 %v1138
    %1360 = vmatmul.mubr.f32.gmra.mrb[0].mxu0 %v1137
    %v1361 = vpop.f32.mrb[0].mxu0
    %v1362 = vadd.f32 0.0, %v1361
    %v1363 = vpop.f32.mrb[0].mxu0
    %1364 = vmatprep.mubr.f32.mxu0 %v1142
    %1365 = vmatmul.mubr.f32.gmra.mrb[0].mxu0 %v1141
    %v1366 = vpop.f32.mrb[0].mxu0
    %v1367 = vadd.f32 0.0, %v1366
    %v1368 = vpop.f32.mrb[0].mxu0
    %1369 = vmatprep.mubr.f32.mxu0 %v1146
    %1370 = vmatmul.mubr.f32.gmra.mrb[0].mxu0 %v1145
    %v1371 = vpop.f32.mrb[0].mxu0
    %v1372 = vadd.f32 0.0, %v1371
    %v1373 = vpop.f32.mrb[0].mxu0
    %1374 = vmatprep.mubr.f32.mxu0 %v1150
    %1375 = vmatmul.mubr.f32.gmra.mrb[0].mxu0 %v1149
    %v1376 = vpop.f32.mrb[0].mxu0
    %v1377 = vadd.f32 0.0, %v1376
    %v1378 = vpop.f32.mrb[0].mxu0
    %1379 = vmatprep.mubr.f32.mxu0 %v1154
    %1380 = vmatmul.mubr.f32.gmra.mrb[0].mxu0 %v1153
    %v1381 = vpop.f32.mrb[0].mxu0
    %v1382 = vadd.f32 0.0, %v1381
    %v1383 = vpop.f32.mrb[0].mxu0
    %1384 = vmatprep.mubr.f32.mxu0 %v1158
    %1385 = vmatmul.mubr.f32.gmra.mrb[0].mxu0 %v1157
    %v1386 = vpop.f32.mrb[0].mxu0
    %v1387 = vadd.f32 0.0, %v1386
    %v1388 = vpop.f32.mrb[0].mxu0
    %1389 = vmatprep.mubr.f32.mxu0 %v1162
    %1390 = vmatmul.mubr.f32.gmra.mrb[0].mxu0 %v1161
    %v1391 = vpop.f32.mrb[0].mxu0
    %v1392 = vadd.f32 0.0, %v1391
    %v1393 = vpop.f32.mrb[0].mxu0
    %1394 = vmatprep.mubr.f32.mxu0 %v1166
    %1395 = vmatmul.mubr.f32.gmra.mrb[0].mxu0 %v1165
    %v1396 = vpop.f32.mrb[0].mxu0
    %v1397 = vadd.f32 0.0, %v1396
    %v1398 = vpop.f32.mrb[0].mxu0
    %1399 = vmatprep.mubr.f32.mxu0 %v1170
    %1400 = vmatmul.mubr.f32.gmra.mrb[0].mxu0 %v1169
    %v1401 = vpop.f32.mrb[0].mxu0
    %v1402 = vadd.f32 0.0, %v1401
    %v1403 = vpop.f32.mrb[0].mxu0
    %1404 = vmatprep.mubr.f32.mxu0 %v1174
    %1405 = vmatmul.mubr.f32.gmra.mrb[0].mxu0 %v1173
    %v1406 = vpop.f32.mrb[0].mxu0
    %v1407 = vadd.f32 0.0, %v1406
    %v1408 = vpop.f32.mrb[0].mxu0
    %1409 = vmatprep.mubr.f32.mxu0 %v1178
    %1410 = vmatmul.mubr.f32.gmra.mrb[0].mxu0 %v1177
    %v1411 = vpop.f32.mrb[0].mxu0
    %v1412 = vadd.f32 0.0, %v1411
    %v1413 = vpop.f32.mrb[0].mxu0
    %1414 = vdwg.mxu0
    %1415 = vmatprep.subr.mxu0 0.0
    %1416 = vmatpush1.msra.mxu0 %v1077
    %1417 = vmatprep.subr.mxu0 0.0
    %1418 = vmatpush1.msra.mxu0 %v1078
    %1419 = vmatprep.subr.mxu0 0.0
    %1420 = vmatpush1.msra.mxu0 %v1079
    %1421 = vmatprep.subr.mxu0 0.0
    %1422 = vmatpush1.msra.mxu0 %v1080
    %1423 = vmatprep.subr.mxu0 0.0
    %1424 = vmatpush1.msra.mxu0 %v1081
    %1425 = vmatprep.subr.mxu0 0.0
    %1426 = vmatpush1.msra.mxu0 %v1082
    %1427 = vmatprep.subr.mxu0 0.0
    %1428 = vmatpush1.msra.mxu0 %v1083
    %1429 = vmatprep.subr.mxu0 0.0
    %1430 = vmatpush1.msra.mxu0 %v1084
    %1431 = vmatprep.subr.mxu0 0.0
    %1432 = vmatpush1.msra.mxu0 %v1085
    %1433 = vmatprep.subr.mxu0 0.0
    %1434 = vmatpush1.msra.mxu0 %v1086
    %1435 = vmatprep.subr.mxu0 0.0
    %1436 = vmatpush1.msra.mxu0 %v1087
    %1437 = vmatprep.subr.mxu0 0.0
    %1438 = vmatpush1.msra.mxu0 %v1088
    %1439 = vmatprep.subr.mxu0 0.0
    %1440 = vmatpush1.msra.mxu0 %v1089
    %1441 = vmatprep.subr.mxu0 0.0
    %1442 = vmatpush1.msra.mxu0 %v1090
    %1443 = vmatprep.subr.mxu0 0.0
    %1444 = vmatpush1.msra.mxu0 %v1091
    %1445 = vmatprep.subr.mxu0 0.0
    %1446 = vmatpush1.msra.mxu0 %v1092
    %1447 = vmatprep.subr.mxu0 0.0
    %1448 = vmatpush1.msra.mxu0 %v1093
    %1449 = vmatprep.subr.mxu0 0.0
    %1450 = vmatpush1.msra.mxu0 %v1094
    %1451 = vmatprep.subr.mxu0 0.0
    %1452 = vmatpush1.msra.mxu0 %v1095
    %1453 = vmatprep.subr.mxu0 0.0
    %1454 = vmatpush1.msra.mxu0 %v1096
    %1455 = vmatprep.subr.mxu0 0.0
    %1456 = vmatpush1.msra.mxu0 0.0
    %1457 = vmatprep.subr.mxu0 0.0
    %1458 = vmatpush1.msra.mxu0 0.0
    %1459 = vmatprep.subr.mxu0 0.0
    %1460 = vmatpush1.msra.mxu0 0.0
    %1461 = vmatprep.subr.mxu0 0.0
    %1462 = vmatpush1.msra.mxu0 0.0
    %1463 = vmatprep.subr.mxu0 0.0
    %1464 = vmatpush1.msra.mxu0 0.0
    %1465 = vmatprep.subr.mxu0 0.0
    %1466 = vmatpush1.msra.mxu0 0.0
    %1467 = vmatprep.subr.mxu0 0.0
    %1468 = vmatpush1.msra.mxu0 0.0
    %1469 = vmatprep.subr.mxu0 0.0
    %1470 = vmatpush1.msra.mxu0 0.0
    %1471 = vmatprep.subr.mxu0 0.0
    %1472 = vmatpush1.msra.mxu0 0.0
    %1473 = vmatprep.subr.mxu0 0.0
    %1474 = vmatpush1.msra.mxu0 0.0
    %1475 = vmatprep.subr.mxu0 0.0
    %1476 = vmatpush1.msra.mxu0 0.0
    %1477 = vmatprep.subr.mxu0 0.0
    %1478 = vmatpush1.msra.mxu0 0.0
    %1479 = vmatprep.mubr.f32.mxu0 %v1183
    %1480 = vmatmul.mubr.f32.gmra.mrb[0].mxu0 %v1099
    %v1481 = vpop.f32.mrb[0].mxu0
    %v1482 = vadd.f32 %v1312, %v1481
    %v1483 = vpop.f32.mrb[0].mxu0
    %1484 = vmatprep.mubr.f32.mxu0 %v1186
    %1485 = vmatmul.mubr.f32.gmra.mrb[0].mxu0 %v1103
    %v1486 = vpop.f32.mrb[0].mxu0
    %v1487 = vadd.f32 %v1317, %v1486
    %v1488 = vpop.f32.mrb[0].mxu0
    %1489 = vmatprep.mubr.f32.mxu0 %v1189
    %1490 = vmatmul.mubr.f32.gmra.mrb[0].mxu0 %v1107
    %v1491 = vpop.f32.mrb[0].mxu0
    %v1492 = vadd.f32 %v1322, %v1491
    %v1493 = vpop.f32.mrb[0].mxu0
    %1494 = vmatprep.mubr.f32.mxu0 %v1192
    %1495 = vmatmul.mubr.f32.gmra.mrb[0].mxu0 %v1111
    %v1496 = vpop.f32.mrb[0].mxu0
    %v1497 = vadd.f32 %v1327, %v1496
    %v1498 = vpop.f32.mrb[0].mxu0
    %1499 = vmatprep.mubr.f32.mxu0 %v1195
    %1500 = vmatmul.mubr.f32.gmra.mrb[0].mxu0 %v1115
    %v1501 = vpop.f32.mrb[0].mxu0
    %v1502 = vadd.f32 %v1332, %v1501
    %v1503 = vpop.f32.mrb[0].mxu0
    %1504 = vmatprep.mubr.f32.mxu0 %v1198
    %1505 = vmatmul.mubr.f32.gmra.mrb[0].mxu0 %v1119
    %v1506 = vpop.f32.mrb[0].mxu0
    %v1507 = vadd.f32 %v1337, %v1506
    %v1508 = vpop.f32.mrb[0].mxu0
    %1509 = vmatprep.mubr.f32.mxu0 %v1201
    %1510 = vmatmul.mubr.f32.gmra.mrb[0].mxu0 %v1123
    %v1511 = vpop.f32.mrb[0].mxu0
    %v1512 = vadd.f32 %v1342, %v1511
    %v1513 = vpop.f32.mrb[0].mxu0
    %1514 = vmatprep.mubr.f32.mxu0 %v1204
    %1515 = vmatmul.mubr.f32.gmra.mrb[0].mxu0 %v1127
    %v1516 = vpop.f32.mrb[0].mxu0
    %v1517 = vadd.f32 %v1347, %v1516
    %v1518 = vpop.f32.mrb[0].mxu0
    %1519 = vmatprep.mubr.f32.mxu0 %v1207
    %1520 = vmatmul.mubr.f32.gmra.mrb[0].mxu0 %v1131
    %v1521 = vpop.f32.mrb[0].mxu0
    %v1522 = vadd.f32 %v1352, %v1521
    %v1523 = vpop.f32.mrb[0].mxu0
    %1524 = vmatprep.mubr.f32.mxu0 %v1210
    %1525 = vmatmul.mubr.f32.gmra.mrb[0].mxu0 %v1135
    %v1526 = vpop.f32.mrb[0].mxu0
    %v1527 = vadd.f32 %v1357, %v1526
    %v1528 = vpop.f32.mrb[0].mxu0
    %1529 = vmatprep.mubr.f32.mxu0 %v1213
    %1530 = vmatmul.mubr.f32.gmra.mrb[0].mxu0 %v1139
    %v1531 = vpop.f32.mrb[0].mxu0
    %v1532 = vadd.f32 %v1362, %v1531
    %v1533 = vpop.f32.mrb[0].mxu0
    %1534 = vmatprep.mubr.f32.mxu0 %v1216
    %1535 = vmatmul.mubr.f32.gmra.mrb[0].mxu0 %v1143
    %v1536 = vpop.f32.mrb[0].mxu0
    %v1537 = vadd.f32 %v1367, %v1536
    %v1538 = vpop.f32.mrb[0].mxu0
    %1539 = vmatprep.mubr.f32.mxu0 %v1219
    %1540 = vmatmul.mubr.f32.gmra.mrb[0].mxu0 %v1147
    %v1541 = vpop.f32.mrb[0].mxu0
    %v1542 = vadd.f32 %v1372, %v1541
    %v1543 = vpop.f32.mrb[0].mxu0
    %1544 = vmatprep.mubr.f32.mxu0 %v1222
    %1545 = vmatmul.mubr.f32.gmra.mrb[0].mxu0 %v1151
    %v1546 = vpop.f32.mrb[0].mxu0
    %v1547 = vadd.f32 %v1377, %v1546
    %v1548 = vpop.f32.mrb[0].mxu0
    %1549 = vmatprep.mubr.f32.mxu0 %v1225
    %1550 = vmatmul.mubr.f32.gmra.mrb[0].mxu0 %v1155
    %v1551 = vpop.f32.mrb[0].mxu0
    %v1552 = vadd.f32 %v1382, %v1551
    %v1553 = vpop.f32.mrb[0].mxu0
    %1554 = vmatprep.mubr.f32.mxu0 %v1228
    %1555 = vmatmul.mubr.f32.gmra.mrb[0].mxu0 %v1159
    %v1556 = vpop.f32.mrb[0].mxu0
    %v1557 = vadd.f32 %v1387, %v1556
    %v1558 = vpop.f32.mrb[0].mxu0
    %1559 = vmatprep.mubr.f32.mxu0 %v1231
    %1560 = vmatmul.mubr.f32.gmra.mrb[0].mxu0 %v1163
    %v1561 = vpop.f32.mrb[0].mxu0
    %v1562 = vadd.f32 %v1392, %v1561
    %v1563 = vpop.f32.mrb[0].mxu0
    %1564 = vmatprep.mubr.f32.mxu0 %v1234
    %1565 = vmatmul.mubr.f32.gmra.mrb[0].mxu0 %v1167
    %v1566 = vpop.f32.mrb[0].mxu0
    %v1567 = vadd.f32 %v1397, %v1566
    %v1568 = vpop.f32.mrb[0].mxu0
    %1569 = vmatprep.mubr.f32.mxu0 %v1237
    %1570 = vmatmul.mubr.f32.gmra.mrb[0].mxu0 %v1171
    %v1571 = vpop.f32.mrb[0].mxu0
    %v1572 = vadd.f32 %v1402, %v1571
    %v1573 = vpop.f32.mrb[0].mxu0
    %1574 = vmatprep.mubr.f32.mxu0 %v1240
    %1575 = vmatmul.mubr.f32.gmra.mrb[0].mxu0 %v1175
    %v1576 = vpop.f32.mrb[0].mxu0
    %v1577 = vadd.f32 %v1407, %v1576
    %v1578 = vpop.f32.mrb[0].mxu0
    %1579 = vmatprep.mubr.f32.mxu0 %v1243
    %1580 = vmatmul.mubr.f32.gmra.mrb[0].mxu0 %v1179
    %v1581 = vpop.f32.mrb[0].mxu0
    %v1582 = vadd.f32 %v1412, %v1581
    %v1583 = vpop.f32.mrb[0].mxu0
    %1584 = vdwg.mxu0
    %1585 = vst [vmem:[#allocation3] sm:$0xff] %v1482
    %1586 = vst [vmem:[#allocation3 + $0x8] sm:$0xff] %v1487
    %1587 = vst [vmem:[#allocation3 + $0x10] sm:$0xff] %v1492
    %1588 = vst [vmem:[#allocation3 + $0x18] sm:$0xff] %v1497
    %1589 = vst [vmem:[#allocation3 + $0x20] sm:$0xff] %v1502
    %1590 = vst [vmem:[#allocation3 + $0x28] sm:$0xff] %v1507
    %1591 = vst [vmem:[#allocation3 + $0x30] sm:$0xff] %v1512
    %1592 = vst [vmem:[#allocation3 + $0x38] sm:$0xff] %v1517
    %1593 = vst [vmem:[#allocation3 + $0x40] sm:$0xff] %v1522
    %1594 = vst [vmem:[#allocation3 + $0x48] sm:$0xff] %v1527
    %1595 = vst [vmem:[#allocation3 + $0x50] sm:$0xff] %v1532
    %1596 = vst [vmem:[#allocation3 + $0x58] sm:$0xff] %v1537
    %1597 = vst [vmem:[#allocation3 + $0x60] sm:$0xff] %v1542
    %1598 = vst [vmem:[#allocation3 + $0x68] sm:$0xff] %v1547
    %1599 = vst [vmem:[#allocation3 + $0x70] sm:$0xff] %v1552
    %1600 = vst [vmem:[#allocation3 + $0x78] sm:$0xff] %v1557
    %1601 = vst [vmem:[#allocation3 + $0x80] sm:$0xff] %v1562
    %1602 = vst [vmem:[#allocation3 + $0x88] sm:$0xff] %v1567
    %1603 = vst [vmem:[#allocation3 + $0x90] sm:$0xff] %v1572
    %1604 = vst [vmem:[#allocation3 + $0x98] sm:$0xff] %v1577
    %1605 = vst [vmem:[#allocation3 + $0xa0] sm:$0xff] %v1582
    %v1606 = vld [vmem:[#allocation3] sm:$0xff]
    %v1607 = vld [vmem:[#allocation3 + $0x8] sm:$0xff]
    %v1608 = vld [vmem:[#allocation3 + $0x10] sm:$0xff]
    %v1609 = vld [vmem:[#allocation3 + $0x18] sm:$0xff]
    %v1610 = vld [vmem:[#allocation3 + $0x20] sm:$0xff]
    %v1611 = vld [vmem:[#allocation3 + $0x28] sm:$0xff]
    %v1612 = vld [vmem:[#allocation3 + $0x30] sm:$0xff]
    %v1613 = vld [vmem:[#allocation3 + $0x38] sm:$0xff]
    %v1614 = vld [vmem:[#allocation3 + $0x40] sm:$0xff]
    %v1615 = vld [vmem:[#allocation3 + $0x48] sm:$0xff]
    %v1616 = vld [vmem:[#allocation3 + $0x50] sm:$0xff]
    %v1617 = vld [vmem:[#allocation3 + $0x58] sm:$0xff]
    %v1618 = vld [vmem:[#allocation3 + $0x60] sm:$0xff]
    %v1619 = vld [vmem:[#allocation3 + $0x68] sm:$0xff]
    %v1620 = vld [vmem:[#allocation3 + $0x70] sm:$0xff]
    %v1621 = vld [vmem:[#allocation3 + $0x78] sm:$0xff]
    %v1622 = vld [vmem:[#allocation3 + $0x1] sm:$0xff]
    %v1623 = vld [vmem:[#allocation3 + $0x9] sm:$0xff]
    %v1624 = vld [vmem:[#allocation3 + $0x11] sm:$0xff]
    %v1625 = vld [vmem:[#allocation3 + $0x19] sm:$0xff]
    %v1626 = vld [vmem:[#allocation3 + $0x21] sm:$0xff]
    %v1627 = vld [vmem:[#allocation3 + $0x29] sm:$0xff]
    %v1628 = vld [vmem:[#allocation3 + $0x31] sm:$0xff]
    %v1629 = vld [vmem:[#allocation3 + $0x39] sm:$0xff]
    %v1630 = vld [vmem:[#allocation3 + $0x41] sm:$0xff]
    %v1631 = vld [vmem:[#allocation3 + $0x49] sm:$0xff]
    %v1632 = vld [vmem:[#allocation3 + $0x51] sm:$0xff]
    %v1633 = vld [vmem:[#allocation3 + $0x59] sm:$0xff]
    %v1634 = vld [vmem:[#allocation3 + $0x61] sm:$0xff]
    %v1635 = vld [vmem:[#allocation3 + $0x69] sm:$0xff]
    %v1636 = vld [vmem:[#allocation3 + $0x71] sm:$0xff]
    %v1637 = vld [vmem:[#allocation3 + $0x79] sm:$0xff]
    %1638 = vrot.lane.b32.xlu0 %v1622, 8
    %v1639 = vpop.permute.xlu0 %1638
    %1640 = vrot.lane.b32.xlu0 %v1623, 8
    %v1641 = vpop.permute.xlu0 %1640
    %1642 = vrot.lane.b32.xlu0 %v1624, 8
    %v1643 = vpop.permute.xlu0 %1642
    %1644 = vrot.lane.b32.xlu0 %v1625, 8
    %v1645 = vpop.permute.xlu0 %1644
    %1646 = vrot.lane.b32.xlu0 %v1626, 8
    %v1647 = vpop.permute.xlu0 %1646
    %1648 = vrot.lane.b32.xlu0 %v1627, 8
    %v1649 = vpop.permute.xlu0 %1648
    %1650 = vrot.lane.b32.xlu0 %v1628, 8
    %v1651 = vpop.permute.xlu0 %1650
    %1652 = vrot.lane.b32.xlu0 %v1629, 8
    %v1653 = vpop.permute.xlu0 %1652
    %1654 = vrot.lane.b32.xlu0 %v1630, 8
    %v1655 = vpop.permute.xlu0 %1654
    %1656 = vrot.lane.b32.xlu0 %v1631, 8
    %v1657 = vpop.permute.xlu0 %1656
    %1658 = vrot.lane.b32.xlu0 %v1632, 8
    %v1659 = vpop.permute.xlu0 %1658
    %1660 = vrot.lane.b32.xlu0 %v1633, 8
    %v1661 = vpop.permute.xlu0 %1660
    %1662 = vrot.lane.b32.xlu0 %v1634, 8
    %v1663 = vpop.permute.xlu0 %1662
    %1664 = vrot.lane.b32.xlu0 %v1635, 8
    %v1665 = vpop.permute.xlu0 %1664
    %1666 = vrot.lane.b32.xlu0 %v1636, 8
    %v1667 = vpop.permute.xlu0 %1666
    %1668 = vrot.lane.b32.xlu0 %v1637, 8
    %v1669 = vpop.permute.xlu0 %1668
    %v1670 = vadd.f32 %v1606, %v1639
    %v1671 = vadd.f32 %v1607, %v1641
    %v1672 = vadd.f32 %v1608, %v1643
    %v1673 = vadd.f32 %v1609, %v1645
    %v1674 = vadd.f32 %v1610, %v1647
    %v1675 = vadd.f32 %v1611, %v1649
    %v1676 = vadd.f32 %v1612, %v1651
    %v1677 = vadd.f32 %v1613, %v1653
    %v1678 = vadd.f32 %v1614, %v1655
    %v1679 = vadd.f32 %v1615, %v1657
    %v1680 = vadd.f32 %v1616, %v1659
    %v1681 = vadd.f32 %v1617, %v1661
    %v1682 = vadd.f32 %v1618, %v1663
    %v1683 = vadd.f32 %v1619, %v1665
    %v1684 = vadd.f32 %v1620, %v1667
    %v1685 = vadd.f32 %v1621, %v1669
    %v1686 = vld [vmem:[#allocation3 + $0x2] sm:$0xff]
    %v1687 = vld [vmem:[#allocation3 + $0xa] sm:$0xff]
    %v1688 = vld [vmem:[#allocation3 + $0x12] sm:$0xff]
    %v1689 = vld [vmem:[#allocation3 + $0x1a] sm:$0xff]
    %v1690 = vld [vmem:[#allocation3 + $0x22] sm:$0xff]
    %v1691 = vld [vmem:[#allocation3 + $0x2a] sm:$0xff]
    %v1692 = vld [vmem:[#allocation3 + $0x32] sm:$0xff]
    %v1693 = vld [vmem:[#allocation3 + $0x3a] sm:$0xff]
    %v1694 = vld [vmem:[#allocation3 + $0x42] sm:$0xff]
    %v1695 = vld [vmem:[#allocation3 + $0x4a] sm:$0xff]
    %v1696 = vld [vmem:[#allocation3 + $0x52] sm:$0xff]
    %v1697 = vld [vmem:[#allocation3 + $0x5a] sm:$0xff]
    %v1698 = vld [vmem:[#allocation3 + $0x62] sm:$0xff]
    %v1699 = vld [vmem:[#allocation3 + $0x6a] sm:$0xff]
    %v1700 = vld [vmem:[#allocation3 + $0x72] sm:$0xff]
    %v1701 = vld [vmem:[#allocation3 + $0x7a] sm:$0xff]
    %1702 = vrot.lane.b32.xlu0 %v1686, 16
    %v1703 = vpop.permute.xlu0 %1702
    %1704 = vrot.lane.b32.xlu0 %v1687, 16
    %v1705 = vpop.permute.xlu0 %1704
    %1706 = vrot.lane.b32.xlu0 %v1688, 16
    %v1707 = vpop.permute.xlu0 %1706
    %1708 = vrot.lane.b32.xlu0 %v1689, 16
    %v1709 = vpop.permute.xlu0 %1708
    %1710 = vrot.lane.b32.xlu0 %v1690, 16
    %v1711 = vpop.permute.xlu0 %1710
    %1712 = vrot.lane.b32.xlu0 %v1691, 16
    %v1713 = vpop.permute.xlu0 %1712
    %1714 = vrot.lane.b32.xlu0 %v1692, 16
    %v1715 = vpop.permute.xlu0 %1714
    %1716 = vrot.lane.b32.xlu0 %v1693, 16
    %v1717 = vpop.permute.xlu0 %1716
    %1718 = vrot.lane.b32.xlu0 %v1694, 16
    %v1719 = vpop.permute.xlu0 %1718
    %1720 = vrot.lane.b32.xlu0 %v1695, 16
    %v1721 = vpop.permute.xlu0 %1720
    %1722 = vrot.lane.b32.xlu0 %v1696, 16
    %v1723 = vpop.permute.xlu0 %1722
    %1724 = vrot.lane.b32.xlu0 %v1697, 16
    %v1725 = vpop.permute.xlu0 %1724
    %1726 = vrot.lane.b32.xlu0 %v1698, 16
    %v1727 = vpop.permute.xlu0 %1726
    %1728 = vrot.lane.b32.xlu0 %v1699, 16
    %v1729 = vpop.permute.xlu0 %1728
    %1730 = vrot.lane.b32.xlu0 %v1700, 16
    %v1731 = vpop.permute.xlu0 %1730
    %1732 = vrot.lane.b32.xlu0 %v1701, 16
    %v1733 = vpop.permute.xlu0 %1732
    %v1734 = vadd.f32 %v1670, %v1703
    %v1735 = vadd.f32 %v1671, %v1705
    %v1736 = vadd.f32 %v1672, %v1707
    %v1737 = vadd.f32 %v1673, %v1709
    %v1738 = vadd.f32 %v1674, %v1711
    %v1739 = vadd.f32 %v1675, %v1713
    %v1740 = vadd.f32 %v1676, %v1715
    %v1741 = vadd.f32 %v1677, %v1717
    %v1742 = vadd.f32 %v1678, %v1719
    %v1743 = vadd.f32 %v1679, %v1721
    %v1744 = vadd.f32 %v1680, %v1723
    %v1745 = vadd.f32 %v1681, %v1725
    %v1746 = vadd.f32 %v1682, %v1727
    %v1747 = vadd.f32 %v1683, %v1729
    %v1748 = vadd.f32 %v1684, %v1731
    %v1749 = vadd.f32 %v1685, %v1733
    %v1750 = vld [vmem:[#allocation3 + $0x80] sm:$0xff]
    %v1751 = vld [vmem:[#allocation3 + $0x88] sm:$0xff]
    %1752 = vrot.lane.b32.xlu0 %v1608, 24
    %v1753 = vpop.permute.xlu0 %1752
    %1754 = vrot.lane.b32.xlu0 %v1609, 24
    %v1755 = vpop.permute.xlu0 %1754
    %1756 = vrot.lane.b32.xlu0 %v1610, 24
    %v1757 = vpop.permute.xlu0 %1756
    %1758 = vrot.lane.b32.xlu0 %v1611, 24
    %v1759 = vpop.permute.xlu0 %1758
    %1760 = vrot.lane.b32.xlu0 %v1612, 24
    %v1761 = vpop.permute.xlu0 %1760
    %1762 = vrot.lane.b32.xlu0 %v1613, 24
    %v1763 = vpop.permute.xlu0 %1762
    %1764 = vrot.lane.b32.xlu0 %v1614, 24
    %v1765 = vpop.permute.xlu0 %1764
    %1766 = vrot.lane.b32.xlu0 %v1615, 24
    %v1767 = vpop.permute.xlu0 %1766
    %1768 = vrot.lane.b32.xlu0 %v1616, 24
    %v1769 = vpop.permute.xlu0 %1768
    %1770 = vrot.lane.b32.xlu0 %v1617, 24
    %v1771 = vpop.permute.xlu0 %1770
    %1772 = vrot.lane.b32.xlu0 %v1618, 24
    %v1773 = vpop.permute.xlu0 %1772
    %1774 = vrot.lane.b32.xlu0 %v1619, 24
    %v1775 = vpop.permute.xlu0 %1774
    %1776 = vrot.lane.b32.xlu0 %v1620, 24
    %v1777 = vpop.permute.xlu0 %1776
    %1778 = vrot.lane.b32.xlu0 %v1621, 24
    %v1779 = vpop.permute.xlu0 %1778
    %1780 = vrot.lane.b32.xlu0 %v1750, 24
    %v1781 = vpop.permute.xlu0 %1780
    %1782 = vrot.lane.b32.xlu0 %v1751, 24
    %v1783 = vpop.permute.xlu0 %1782
    %v1784 = vadd.f32 %v1734, %v1753
    %v1785 = vadd.f32 %v1735, %v1755
    %v1786 = vadd.f32 %v1736, %v1757
    %v1787 = vadd.f32 %v1737, %v1759
    %v1788 = vadd.f32 %v1738, %v1761
    %v1789 = vadd.f32 %v1739, %v1763
    %v1790 = vadd.f32 %v1740, %v1765
    %v1791 = vadd.f32 %v1741, %v1767
    %v1792 = vadd.f32 %v1742, %v1769
    %v1793 = vadd.f32 %v1743, %v1771
    %v1794 = vadd.f32 %v1744, %v1773
    %v1795 = vadd.f32 %v1745, %v1775
    %v1796 = vadd.f32 %v1746, %v1777
    %v1797 = vadd.f32 %v1747, %v1779
    %v1798 = vadd.f32 %v1748, %v1781
    %v1799 = vadd.f32 %v1749, %v1783
    %v1800 = vld [vmem:[#allocation3 + $0x81] sm:$0xff]
    %v1801 = vld [vmem:[#allocation3 + $0x89] sm:$0xff]
    %1802 = vrot.lane.b32.xlu0 %v1624, 32
    %v1803 = vpop.permute.xlu0 %1802
    %1804 = vrot.lane.b32.xlu0 %v1625, 32
    %v1805 = vpop.permute.xlu0 %1804
    %1806 = vrot.lane.b32.xlu0 %v1626, 32
    %v1807 = vpop.permute.xlu0 %1806
    %1808 = vrot.lane.b32.xlu0 %v1627, 32
    %v1809 = vpop.permute.xlu0 %1808
    %1810 = vrot.lane.b32.xlu0 %v1628, 32
    %v1811 = vpop.permute.xlu0 %1810
    %1812 = vrot.lane.b32.xlu0 %v1629, 32
    %v1813 = vpop.permute.xlu0 %1812
    %1814 = vrot.lane.b32.xlu0 %v1630, 32
    %v1815 = vpop.permute.xlu0 %1814
    %1816 = vrot.lane.b32.xlu0 %v1631, 32
    %v1817 = vpop.permute.xlu0 %1816
    %1818 = vrot.lane.b32.xlu0 %v1632, 32
    %v1819 = vpop.permute.xlu0 %1818
    %1820 = vrot.lane.b32.xlu0 %v1633, 32
    %v1821 = vpop.permute.xlu0 %1820
    %1822 = vrot.lane.b32.xlu0 %v1634, 32
    %v1823 = vpop.permute.xlu0 %1822
    %1824 = vrot.lane.b32.xlu0 %v1635, 32
    %v1825 = vpop.permute.xlu0 %1824
    %1826 = vrot.lane.b32.xlu0 %v1636, 32
    %v1827 = vpop.permute.xlu0 %1826
    %1828 = vrot.lane.b32.xlu0 %v1637, 32
    %v1829 = vpop.permute.xlu0 %1828
    %1830 = vrot.lane.b32.xlu0 %v1800, 32
    %v1831 = vpop.permute.xlu0 %1830
    %1832 = vrot.lane.b32.xlu0 %v1801, 32
    %v1833 = vpop.permute.xlu0 %1832
    %v1834 = vadd.f32 %v1784, %v1803
    %v1835 = vadd.f32 %v1785, %v1805
    %v1836 = vadd.f32 %v1786, %v1807
    %v1837 = vadd.f32 %v1787, %v1809
    %v1838 = vadd.f32 %v1788, %v1811
    %v1839 = vadd.f32 %v1789, %v1813
    %v1840 = vadd.f32 %v1790, %v1815
    %v1841 = vadd.f32 %v1791, %v1817
    %v1842 = vadd.f32 %v1792, %v1819
    %v1843 = vadd.f32 %v1793, %v1821
    %v1844 = vadd.f32 %v1794, %v1823
    %v1845 = vadd.f32 %v1795, %v1825
    %v1846 = vadd.f32 %v1796, %v1827
    %v1847 = vadd.f32 %v1797, %v1829
    %v1848 = vadd.f32 %v1798, %v1831
    %v1849 = vadd.f32 %v1799, %v1833
    %v1850 = vld [vmem:[#allocation3 + $0x82] sm:$0xff]
    %v1851 = vld [vmem:[#allocation3 + $0x8a] sm:$0xff]
    %1852 = vrot.lane.b32.xlu0 %v1688, 40
    %v1853 = vpop.permute.xlu0 %1852
    %1854 = vrot.lane.b32.xlu0 %v1689, 40
    %v1855 = vpop.permute.xlu0 %1854
    %1856 = vrot.lane.b32.xlu0 %v1690, 40
    %v1857 = vpop.permute.xlu0 %1856
    %1858 = vrot.lane.b32.xlu0 %v1691, 40
    %v1859 = vpop.permute.xlu0 %1858
    %1860 = vrot.lane.b32.xlu0 %v1692, 40
    %v1861 = vpop.permute.xlu0 %1860
    %1862 = vrot.lane.b32.xlu0 %v1693, 40
    %v1863 = vpop.permute.xlu0 %1862
    %1864 = vrot.lane.b32.xlu0 %v1694, 40
    %v1865 = vpop.permute.xlu0 %1864
    %1866 = vrot.lane.b32.xlu0 %v1695, 40
    %v1867 = vpop.permute.xlu0 %1866
    %1868 = vrot.lane.b32.xlu0 %v1696, 40
    %v1869 = vpop.permute.xlu0 %1868
    %1870 = vrot.lane.b32.xlu0 %v1697, 40
    %v1871 = vpop.permute.xlu0 %1870
    %1872 = vrot.lane.b32.xlu0 %v1698, 40
    %v1873 = vpop.permute.xlu0 %1872
    %1874 = vrot.lane.b32.xlu0 %v1699, 40
    %v1875 = vpop.permute.xlu0 %1874
    %1876 = vrot.lane.b32.xlu0 %v1700, 40
    %v1877 = vpop.permute.xlu0 %1876
    %1878 = vrot.lane.b32.xlu0 %v1701, 40
    %v1879 = vpop.permute.xlu0 %1878
    %1880 = vrot.lane.b32.xlu0 %v1850, 40
    %v1881 = vpop.permute.xlu0 %1880
    %1882 = vrot.lane.b32.xlu0 %v1851, 40
    %v1883 = vpop.permute.xlu0 %1882
    %v1884 = vadd.f32 %v1834, %v1853
    %v1885 = vadd.f32 %v1835, %v1855
    %v1886 = vadd.f32 %v1836, %v1857
    %v1887 = vadd.f32 %v1837, %v1859
    %v1888 = vadd.f32 %v1838, %v1861
    %v1889 = vadd.f32 %v1839, %v1863
    %v1890 = vadd.f32 %v1840, %v1865
    %v1891 = vadd.f32 %v1841, %v1867
    %v1892 = vadd.f32 %v1842, %v1869
    %v1893 = vadd.f32 %v1843, %v1871
    %v1894 = vadd.f32 %v1844, %v1873
    %v1895 = vadd.f32 %v1845, %v1875
    %v1896 = vadd.f32 %v1846, %v1877
    %v1897 = vadd.f32 %v1847, %v1879
    %v1898 = vadd.f32 %v1848, %v1881
    %v1899 = vadd.f32 %v1849, %v1883
    %v1900 = vld [vmem:[#allocation3 + $0x90] sm:$0xff]
    %v1901 = vld [vmem:[#allocation3 + $0x98] sm:$0xff]
    %1902 = vrot.lane.b32.xlu0 %v1610, 48
    %v1903 = vpop.permute.xlu0 %1902
    %1904 = vrot.lane.b32.xlu0 %v1611, 48
    %v1905 = vpop.permute.xlu0 %1904
    %1906 = vrot.lane.b32.xlu0 %v1612, 48
    %v1907 = vpop.permute.xlu0 %1906
    %1908 = vrot.lane.b32.xlu0 %v1613, 48
    %v1909 = vpop.permute.xlu0 %1908
    %1910 = vrot.lane.b32.xlu0 %v1614, 48
    %v1911 = vpop.permute.xlu0 %1910
    %1912 = vrot.lane.b32.xlu0 %v1615, 48
    %v1913 = vpop.permute.xlu0 %1912
    %1914 = vrot.lane.b32.xlu0 %v1616, 48
    %v1915 = vpop.permute.xlu0 %1914
    %1916 = vrot.lane.b32.xlu0 %v1617, 48
    %v1917 = vpop.permute.xlu0 %1916
    %1918 = vrot.lane.b32.xlu0 %v1618, 48
    %v1919 = vpop.permute.xlu0 %1918
    %1920 = vrot.lane.b32.xlu0 %v1619, 48
    %v1921 = vpop.permute.xlu0 %1920
    %1922 = vrot.lane.b32.xlu0 %v1620, 48
    %v1923 = vpop.permute.xlu0 %1922
    %1924 = vrot.lane.b32.xlu0 %v1621, 48
    %v1925 = vpop.permute.xlu0 %1924
    %1926 = vrot.lane.b32.xlu0 %v1750, 48
    %v1927 = vpop.permute.xlu0 %1926
    %1928 = vrot.lane.b32.xlu0 %v1751, 48
    %v1929 = vpop.permute.xlu0 %1928
    %1930 = vrot.lane.b32.xlu0 %v1900, 48
    %v1931 = vpop.permute.xlu0 %1930
    %1932 = vrot.lane.b32.xlu0 %v1901, 48
    %v1933 = vpop.permute.xlu0 %1932
    %v1934 = vadd.f32 %v1884, %v1903
    %v1935 = vadd.f32 %v1885, %v1905
    %v1936 = vadd.f32 %v1886, %v1907
    %v1937 = vadd.f32 %v1887, %v1909
    %v1938 = vadd.f32 %v1888, %v1911
    %v1939 = vadd.f32 %v1889, %v1913
    %v1940 = vadd.f32 %v1890, %v1915
    %v1941 = vadd.f32 %v1891, %v1917
    %v1942 = vadd.f32 %v1892, %v1919
    %v1943 = vadd.f32 %v1893, %v1921
    %v1944 = vadd.f32 %v1894, %v1923
    %v1945 = vadd.f32 %v1895, %v1925
    %v1946 = vadd.f32 %v1896, %v1927
    %v1947 = vadd.f32 %v1897, %v1929
    %v1948 = vadd.f32 %v1898, %v1931
    %v1949 = vadd.f32 %v1899, %v1933
    %v1950 = vld [vmem:[#allocation3 + $0x91] sm:$0xff]
    %v1951 = vld [vmem:[#allocation3 + $0x99] sm:$0xff]
    %1952 = vrot.lane.b32.xlu0 %v1626, 56
    %v1953 = vpop.permute.xlu0 %1952
    %1954 = vrot.lane.b32.xlu0 %v1627, 56
    %v1955 = vpop.permute.xlu0 %1954
    %1956 = vrot.lane.b32.xlu0 %v1628, 56
    %v1957 = vpop.permute.xlu0 %1956
    %1958 = vrot.lane.b32.xlu0 %v1629, 56
    %v1959 = vpop.permute.xlu0 %1958
    %1960 = vrot.lane.b32.xlu0 %v1630, 56
    %v1961 = vpop.permute.xlu0 %1960
    %1962 = vrot.lane.b32.xlu0 %v1631, 56
    %v1963 = vpop.permute.xlu0 %1962
    %1964 = vrot.lane.b32.xlu0 %v1632, 56
    %v1965 = vpop.permute.xlu0 %1964
    %1966 = vrot.lane.b32.xlu0 %v1633, 56
    %v1967 = vpop.permute.xlu0 %1966
    %1968 = vrot.lane.b32.xlu0 %v1634, 56
    %v1969 = vpop.permute.xlu0 %1968
    %1970 = vrot.lane.b32.xlu0 %v1635, 56
    %v1971 = vpop.permute.xlu0 %1970
    %1972 = vrot.lane.b32.xlu0 %v1636, 56
    %v1973 = vpop.permute.xlu0 %1972
    %1974 = vrot.lane.b32.xlu0 %v1637, 56
    %v1975 = vpop.permute.xlu0 %1974
    %1976 = vrot.lane.b32.xlu0 %v1800, 56
    %v1977 = vpop.permute.xlu0 %1976
    %1978 = vrot.lane.b32.xlu0 %v1801, 56
    %v1979 = vpop.permute.xlu0 %1978
    %1980 = vrot.lane.b32.xlu0 %v1950, 56
    %v1981 = vpop.permute.xlu0 %1980
    %1982 = vrot.lane.b32.xlu0 %v1951, 56
    %v1983 = vpop.permute.xlu0 %1982
    %v1984 = vadd.f32 %v1934, %v1953
    %v1985 = vadd.f32 %v1935, %v1955
    %v1986 = vadd.f32 %v1936, %v1957
    %v1987 = vadd.f32 %v1937, %v1959
    %v1988 = vadd.f32 %v1938, %v1961
    %v1989 = vadd.f32 %v1939, %v1963
    %v1990 = vadd.f32 %v1940, %v1965
    %v1991 = vadd.f32 %v1941, %v1967
    %v1992 = vadd.f32 %v1942, %v1969
    %v1993 = vadd.f32 %v1943, %v1971
    %v1994 = vadd.f32 %v1944, %v1973
    %v1995 = vadd.f32 %v1945, %v1975
    %v1996 = vadd.f32 %v1946, %v1977
    %v1997 = vadd.f32 %v1947, %v1979
    %v1998 = vadd.f32 %v1948, %v1981
    %v1999 = vadd.f32 %v1949, %v1983
    %v2000 = vld [vmem:[#allocation3 + $0x92] sm:$0xff]
    %v2001 = vld [vmem:[#allocation3 + $0x9a] sm:$0xff]
    %2002 = vrot.lane.b32.xlu0 %v1690, 64
    %v2003 = vpop.permute.xlu0 %2002
    %2004 = vrot.lane.b32.xlu0 %v1691, 64
    %v2005 = vpop.permute.xlu0 %2004
    %2006 = vrot.lane.b32.xlu0 %v1692, 64
    %v2007 = vpop.permute.xlu0 %2006
    %2008 = vrot.lane.b32.xlu0 %v1693, 64
    %v2009 = vpop.permute.xlu0 %2008
    %2010 = vrot.lane.b32.xlu0 %v1694, 64
    %v2011 = vpop.permute.xlu0 %2010
    %2012 = vrot.lane.b32.xlu0 %v1695, 64
    %v2013 = vpop.permute.xlu0 %2012
    %2014 = vrot.lane.b32.xlu0 %v1696, 64
    %v2015 = vpop.permute.xlu0 %2014
    %2016 = vrot.lane.b32.xlu0 %v1697, 64
    %v2017 = vpop.permute.xlu0 %2016
    %2018 = vrot.lane.b32.xlu0 %v1698, 64
    %v2019 = vpop.permute.xlu0 %2018
    %2020 = vrot.lane.b32.xlu0 %v1699, 64
    %v2021 = vpop.permute.xlu0 %2020
    %2022 = vrot.lane.b32.xlu0 %v1700, 64
    %v2023 = vpop.permute.xlu0 %2022
    %2024 = vrot.lane.b32.xlu0 %v1701, 64
    %v2025 = vpop.permute.xlu0 %2024
    %2026 = vrot.lane.b32.xlu0 %v1850, 64
    %v2027 = vpop.permute.xlu0 %2026
    %2028 = vrot.lane.b32.xlu0 %v1851, 64
    %v2029 = vpop.permute.xlu0 %2028
    %2030 = vrot.lane.b32.xlu0 %v2000, 64
    %v2031 = vpop.permute.xlu0 %2030
    %2032 = vrot.lane.b32.xlu0 %v2001, 64
    %v2033 = vpop.permute.xlu0 %2032
    %v2034 = vadd.f32 %v1984, %v2003
    %v2035 = vadd.f32 %v1985, %v2005
    %v2036 = vadd.f32 %v1986, %v2007
    %v2037 = vadd.f32 %v1987, %v2009
    %v2038 = vadd.f32 %v1988, %v2011
    %v2039 = vadd.f32 %v1989, %v2013
    %v2040 = vadd.f32 %v1990, %v2015
    %v2041 = vadd.f32 %v1991, %v2017
    %v2042 = vadd.f32 %v1992, %v2019
    %v2043 = vadd.f32 %v1993, %v2021
    %v2044 = vadd.f32 %v1994, %v2023
    %v2045 = vadd.f32 %v1995, %v2025
    %v2046 = vadd.f32 %v1996, %v2027
    %v2047 = vadd.f32 %v1997, %v2029
    %v2048 = vadd.f32 %v1998, %v2031
    %v2049 = vadd.f32 %v1999, %v2033
    %v2050 = vld [vmem:[%s5] sm:$0xff]
    %v2051 = vld [vmem:[%s5 + $0x8] sm:$0xff]
    %v2052 = vld [vmem:[%s5 + $0x10] sm:$0xff]
    %v2053 = vld [vmem:[%s5 + $0x18] sm:$0xff]
    %v2054 = vld [vmem:[%s5 + $0x20] sm:$0xff]
    %v2055 = vld [vmem:[%s5 + $0x28] sm:$0xff]
    %v2056 = vld [vmem:[%s5 + $0x30] sm:$0xff]
    %v2057 = vld [vmem:[%s5 + $0x38] sm:$0xff]
    %v2058 = vld [vmem:[%s5 + $0x40] sm:$0xff]
    %v2059 = vld [vmem:[%s5 + $0x48] sm:$0xff]
    %v2060 = vld [vmem:[%s5 + $0x50] sm:$0xff]
    %v2061 = vld [vmem:[%s5 + $0x58] sm:$0xff]
    %v2062 = vld [vmem:[%s5 + $0x60] sm:$0xff]
    %v2063 = vld [vmem:[%s5 + $0x68] sm:$0xff]
    %v2064 = vld [vmem:[%s5 + $0x70] sm:$0xff]
    %v2065 = vld [vmem:[%s5 + $0x78] sm:$0xff]
    %v2066 = vld [vmem:[%s6] sm:$0x1]
    %v2068 = vlaneseq
    %v2069 = vshrl.u32 %v2068, 7
    %v2070 = vsub.s32 0, %v2069
    %v2071 = vrot.slane %v2066, %v2070
    %2073 = vmatprep.subr.mxu0 0.0
    %2074 = vmatpush1.msra.mxu0 %v2050
    %2075 = vmatprep.subr.mxu0 0.0
    %2076 = vmatpush1.msra.mxu0 %v2051
    %2077 = vmatprep.subr.mxu0 0.0
    %2078 = vmatpush1.msra.mxu0 %v2052
    %2079 = vmatprep.subr.mxu0 0.0
    %2080 = vmatpush1.msra.mxu0 %v2053
    %2081 = vmatprep.subr.mxu0 0.0
    %2082 = vmatpush1.msra.mxu0 %v2054
    %2083 = vmatprep.subr.mxu0 0.0
    %2084 = vmatpush1.msra.mxu0 %v2055
    %2085 = vmatprep.subr.mxu0 0.0
    %2086 = vmatpush1.msra.mxu0 %v2056
    %2087 = vmatprep.subr.mxu0 0.0
    %2088 = vmatpush1.msra.mxu0 %v2057
    %2089 = vmatprep.subr.mxu0 0.0
    %2090 = vmatpush1.msra.mxu0 %v2058
    %2091 = vmatprep.subr.mxu0 0.0
    %2092 = vmatpush1.msra.mxu0 %v2059
    %2093 = vmatprep.subr.mxu0 0.0
    %2094 = vmatpush1.msra.mxu0 %v2060
    %2095 = vmatprep.subr.mxu0 0.0
    %2096 = vmatpush1.msra.mxu0 %v2061
    %2097 = vmatprep.subr.mxu0 0.0
    %2098 = vmatpush1.msra.mxu0 %v2062
    %2099 = vmatprep.subr.mxu0 0.0
    %2100 = vmatpush1.msra.mxu0 %v2063
    %2101 = vmatprep.subr.mxu0 0.0
    %2102 = vmatpush1.msra.mxu0 %v2064
    %2103 = vmatprep.subr.mxu0 0.0
    %2104 = vmatpush1.msra.mxu0 %v2065
    %2105 = vmatprep.subr.mxu0 0.0
    %2106 = vmatpush1.msra.mxu0 0.0
    %2107 = vmatprep.subr.mxu0 0.0
    %2108 = vmatpush1.msra.mxu0 0.0
    %2109 = vmatprep.subr.mxu0 0.0
    %2110 = vmatpush1.msra.mxu0 0.0
    %2111 = vmatprep.subr.mxu0 0.0
    %2112 = vmatpush1.msra.mxu0 0.0
    %2113 = vmatprep.subr.mxu0 0.0
    %2114 = vmatpush1.msra.mxu0 0.0
    %2115 = vmatprep.subr.mxu0 0.0
    %2116 = vmatpush1.msra.mxu0 0.0
    %2117 = vmatprep.subr.mxu0 0.0
    %2118 = vmatpush1.msra.mxu0 0.0
    %2119 = vmatprep.subr.mxu0 0.0
    %2120 = vmatpush1.msra.mxu0 0.0
    %2121 = vmatprep.subr.mxu0 0.0
    %2122 = vmatpush1.msra.mxu0 0.0
    %2123 = vmatprep.subr.mxu0 0.0
    %2124 = vmatpush1.msra.mxu0 0.0
    %2125 = vmatprep.subr.mxu0 0.0
    %2126 = vmatpush1.msra.mxu0 0.0
    %2127 = vmatprep.subr.mxu0 0.0
    %2128 = vmatpush1.msra.mxu0 0.0
    %2129 = vmatprep.subr.mxu0 0.0
    %2130 = vmatpush1.msra.mxu0 0.0
    %2131 = vmatprep.subr.mxu0 0.0
    %2132 = vmatpush1.msra.mxu0 0.0
    %2133 = vmatprep.subr.mxu0 0.0
    %2134 = vmatpush1.msra.mxu0 0.0
    %2135 = vmatprep.subr.mxu0 0.0
    %2136 = vmatpush1.msra.mxu0 0.0
    %2137 = vmatprep.mubr.f32.mxu0 0.0
    %2138 = vmatmul.mubr.f32.gmra.mrb[0].mxu0 %v2034
    %v2139 = vpop.f32.mrb[0].mxu0
    %v2140 = vadd.f32 %v2071, %v2139
    %v2141 = vpop.f32.mrb[0].mxu0
    %2142 = vmatprep.mubr.f32.mxu0 0.0
    %2143 = vmatmul.mubr.f32.gmra.mrb[0].mxu0 %v2035
    %v2144 = vpop.f32.mrb[0].mxu0
    %v2145 = vadd.f32 %v2071, %v2144
    %v2146 = vpop.f32.mrb[0].mxu0
    %2147 = vmatprep.mubr.f32.mxu0 0.0
    %2148 = vmatmul.mubr.f32.gmra.mrb[0].mxu0 %v2036
    %v2149 = vpop.f32.mrb[0].mxu0
    %v2150 = vadd.f32 %v2071, %v2149
    %v2151 = vpop.f32.mrb[0].mxu0
    %2152 = vmatprep.mubr.f32.mxu0 0.0
    %2153 = vmatmul.mubr.f32.gmra.mrb[0].mxu0 %v2037
    %v2154 = vpop.f32.mrb[0].mxu0
    %v2155 = vadd.f32 %v2071, %v2154
    %v2156 = vpop.f32.mrb[0].mxu0
    %2157 = vmatprep.mubr.f32.mxu0 0.0
    %2158 = vmatmul.mubr.f32.gmra.mrb[0].mxu0 %v2038
    %v2159 = vpop.f32.mrb[0].mxu0
    %v2160 = vadd.f32 %v2071, %v2159
    %v2161 = vpop.f32.mrb[0].mxu0
    %2162 = vmatprep.mubr.f32.mxu0 0.0
    %2163 = vmatmul.mubr.f32.gmra.mrb[0].mxu0 %v2039
    %v2164 = vpop.f32.mrb[0].mxu0
    %v2165 = vadd.f32 %v2071, %v2164
    %v2166 = vpop.f32.mrb[0].mxu0
    %2167 = vmatprep.mubr.f32.mxu0 0.0
    %2168 = vmatmul.mubr.f32.gmra.mrb[0].mxu0 %v2040
    %v2169 = vpop.f32.mrb[0].mxu0
    %v2170 = vadd.f32 %v2071, %v2169
    %v2171 = vpop.f32.mrb[0].mxu0
    %2172 = vmatprep.mubr.f32.mxu0 0.0
    %2173 = vmatmul.mubr.f32.gmra.mrb[0].mxu0 %v2041
    %v2174 = vpop.f32.mrb[0].mxu0
    %v2175 = vadd.f32 %v2071, %v2174
    %v2176 = vpop.f32.mrb[0].mxu0
    %2177 = vmatprep.mubr.f32.mxu0 0.0
    %2178 = vmatmul.mubr.f32.gmra.mrb[0].mxu0 %v2042
    %v2179 = vpop.f32.mrb[0].mxu0
    %v2180 = vadd.f32 %v2071, %v2179
    %v2181 = vpop.f32.mrb[0].mxu0
    %2182 = vmatprep.mubr.f32.mxu0 0.0
    %2183 = vmatmul.mubr.f32.gmra.mrb[0].mxu0 %v2043
    %v2184 = vpop.f32.mrb[0].mxu0
    %v2185 = vadd.f32 %v2071, %v2184
    %v2186 = vpop.f32.mrb[0].mxu0
    %2187 = vmatprep.mubr.f32.mxu0 0.0
    %2188 = vmatmul.mubr.f32.gmra.mrb[0].mxu0 %v2044
    %v2189 = vpop.f32.mrb[0].mxu0
    %v2190 = vadd.f32 %v2071, %v2189
    %v2191 = vpop.f32.mrb[0].mxu0
    %2192 = vmatprep.mubr.f32.mxu0 0.0
    %2193 = vmatmul.mubr.f32.gmra.mrb[0].mxu0 %v2045
    %v2194 = vpop.f32.mrb[0].mxu0
    %v2195 = vadd.f32 %v2071, %v2194
    %v2196 = vpop.f32.mrb[0].mxu0
    %2197 = vmatprep.mubr.f32.mxu0 0.0
    %2198 = vmatmul.mubr.f32.gmra.mrb[0].mxu0 %v2046
    %v2199 = vpop.f32.mrb[0].mxu0
    %v2200 = vadd.f32 %v2071, %v2199
    %v2201 = vpop.f32.mrb[0].mxu0
    %2202 = vmatprep.mubr.f32.mxu0 0.0
    %2203 = vmatmul.mubr.f32.gmra.mrb[0].mxu0 %v2047
    %v2204 = vpop.f32.mrb[0].mxu0
    %v2205 = vadd.f32 %v2071, %v2204
    %v2206 = vpop.f32.mrb[0].mxu0
    %2207 = vmatprep.mubr.f32.mxu0 0.0
    %2208 = vmatmul.mubr.f32.gmra.mrb[0].mxu0 %v2048
    %v2209 = vpop.f32.mrb[0].mxu0
    %v2210 = vadd.f32 %v2071, %v2209
    %v2211 = vpop.f32.mrb[0].mxu0
    %2212 = vmatprep.mubr.f32.mxu0 0.0
    %2213 = vmatmul.mubr.f32.gmra.mrb[0].mxu0 %v2049
    %v2214 = vpop.f32.mrb[0].mxu0
    %v2215 = vadd.f32 %v2071, %v2214
    %v2216 = vpop.f32.mrb[0].mxu0
    %2217 = vdwg.mxu0
    %v2218 = vmax.f32 %v2140, 0.0
    %v2219 = vmax.f32 %v2145, 0.0
    %v2220 = vmax.f32 %v2150, 0.0
    %v2221 = vmax.f32 %v2155, 0.0
    %v2222 = vmax.f32 %v2160, 0.0
    %v2223 = vmax.f32 %v2165, 0.0
    %v2224 = vmax.f32 %v2170, 0.0
    %v2225 = vmax.f32 %v2175, 0.0
    %v2226 = vmax.f32 %v2180, 0.0
    %v2227 = vmax.f32 %v2185, 0.0
    %v2228 = vmax.f32 %v2190, 0.0
    %v2229 = vmax.f32 %v2195, 0.0
    %v2230 = vmax.f32 %v2200, 0.0
    %v2231 = vmax.f32 %v2205, 0.0
    %v2232 = vmax.f32 %v2210, 0.0
    %v2233 = vmax.f32 %v2215, 0.0
    %2234 = vst [vmem:[#allocation4] sm:$0xff] %v2218
    %2235 = vst [vmem:[#allocation4 + $0x8] sm:$0xff] %v2219
    %2236 = vst [vmem:[#allocation4 + $0x10] sm:$0xff] %v2220
    %2237 = vst [vmem:[#allocation4 + $0x18] sm:$0xff] %v2221
    %2238 = vst [vmem:[#allocation4 + $0x20] sm:$0xff] %v2222
    %2239 = vst [vmem:[#allocation4 + $0x28] sm:$0xff] %v2223
    %2240 = vst [vmem:[#allocation4 + $0x30] sm:$0xff] %v2224
    %2241 = vst [vmem:[#allocation4 + $0x38] sm:$0xff] %v2225
    %2242 = vst [vmem:[#allocation4 + $0x40] sm:$0xff] %v2226
    %2243 = vst [vmem:[#allocation4 + $0x48] sm:$0xff] %v2227
    %2244 = vst [vmem:[#allocation4 + $0x50] sm:$0xff] %v2228
    %2245 = vst [vmem:[#allocation4 + $0x58] sm:$0xff] %v2229
    %2246 = vst [vmem:[#allocation4 + $0x60] sm:$0xff] %v2230
    %2247 = vst [vmem:[#allocation4 + $0x68] sm:$0xff] %v2231
    %2248 = vst [vmem:[#allocation4 + $0x70] sm:$0xff] %v2232
    %2249 = vst [vmem:[#allocation4 + $0x78] sm:$0xff] %v2233
    %v2250 = vld [vmem:[#allocation4] sm:$0xff]
    %v2251 = vld [vmem:[#allocation4 + $0x8] sm:$0xff]
    %v2252 = vld [vmem:[#allocation4 + $0x10] sm:$0xff]
    %v2253 = vld [vmem:[#allocation4 + $0x18] sm:$0xff]
    %v2254 = vld [vmem:[#allocation4 + $0x20] sm:$0xff]
    %v2255 = vld [vmem:[#allocation4 + $0x28] sm:$0xff]
    %v2256 = vld [vmem:[#allocation4 + $0x30] sm:$0xff]
    %v2257 = vld [vmem:[#allocation4 + $0x38] sm:$0xff]
    %v2258 = vld [vmem:[#allocation4 + $0x40] sm:$0xff]
    %v2259 = vld [vmem:[#allocation4 + $0x48] sm:$0xff]
    %v2260 = vld [vmem:[#allocation4 + $0x50] sm:$0xff]
    %v2261 = vld [vmem:[#allocation4 + $0x58] sm:$0xff]
    %v2262 = vld [vmem:[#allocation4 + $0x60] sm:$0xff]
    %v2263 = vld [vmem:[#allocation4 + $0x1] sm:$0xff]
    %v2264 = vld [vmem:[#allocation4 + $0x9] sm:$0xff]
    %v2265 = vld [vmem:[#allocation4 + $0x11] sm:$0xff]
    %v2266 = vld [vmem:[#allocation4 + $0x19] sm:$0xff]
    %v2267 = vld [vmem:[#allocation4 + $0x21] sm:$0xff]
    %v2268 = vld [vmem:[#allocation4 + $0x29] sm:$0xff]
    %v2269 = vld [vmem:[#allocation4 + $0x31] sm:$0xff]
    %v2270 = vld [vmem:[#allocation4 + $0x39] sm:$0xff]
    %v2271 = vld [vmem:[#allocation4 + $0x41] sm:$0xff]
    %v2272 = vld [vmem:[#allocation4 + $0x49] sm:$0xff]
    %v2273 = vld [vmem:[#allocation4 + $0x51] sm:$0xff]
    %v2274 = vld [vmem:[#allocation4 + $0x59] sm:$0xff]
    %v2275 = vld [vmem:[#allocation4 + $0x61] sm:$0xff]
    %v2276 = vmax.f32 %v2250, %v2263
    %v2277 = vmax.f32 %v2251, %v2264
    %v2278 = vmax.f32 %v2252, %v2265
    %v2279 = vmax.f32 %v2253, %v2266
    %v2280 = vmax.f32 %v2254, %v2267
    %v2281 = vmax.f32 %v2255, %v2268
    %v2282 = vmax.f32 %v2256, %v2269
    %v2283 = vmax.f32 %v2257, %v2270
    %v2284 = vmax.f32 %v2258, %v2271
    %v2285 = vmax.f32 %v2259, %v2272
    %v2286 = vmax.f32 %v2260, %v2273
    %v2287 = vmax.f32 %v2261, %v2274
    %v2288 = vmax.f32 %v2262, %v2275
    %v2289 = vld [vmem:[#allocation4 + $0x68] sm:$0xff]
    %v2290 = vld [vmem:[#allocation4 + $0x70] sm:$0xff]
    %v2291 = vld [vmem:[#allocation4 + $0x69] sm:$0xff]
    %v2292 = vld [vmem:[#allocation4 + $0x71] sm:$0xff]
    %v2293 = vmax.f32 %v2289, %v2291
    %v2294 = vmax.f32 %v2290, %v2292
    %v2295 = vmax.f32 %v2276, %v2278
    %v2296 = vmax.f32 %v2277, %v2279
    %v2297 = vmax.f32 %v2278, %v2280
    %v2298 = vmax.f32 %v2279, %v2281
    %v2299 = vmax.f32 %v2280, %v2282
    %v2300 = vmax.f32 %v2281, %v2283
    %v2301 = vmax.f32 %v2282, %v2284
    %v2302 = vmax.f32 %v2283, %v2285
    %v2303 = vmax.f32 %v2284, %v2286
    %v2304 = vmax.f32 %v2285, %v2287
    %v2305 = vmax.f32 %v2286, %v2288
    %v2306 = vmax.f32 %v2287, %v2293
    %v2307 = vmax.f32 %v2288, %v2294
    %v2308 = vld [vmem:[%s7] sm:$0xff]
    %v2309 = vld [vmem:[%s7 + $0x8] sm:$0xff]
    %vm2310 = vcmask 850944
    %v2312 = vsel %vm2310, %v2308, 0
    %v2315 = vsel %vm2310, %v2309, 0
    %2317 = vmatprep.subr.mxu0 0.0
    %2318 = vmatpush1.msra.mxu0 %v2295
    %2319 = vmatprep.subr.mxu0 0.0
    %2320 = vmatpush1.msra.mxu0 %v2296
    %2321 = vmatprep.subr.mxu0 0.0
    %2322 = vmatpush1.msra.mxu0 %v2297
    %2323 = vmatprep.subr.mxu0 0.0
    %2324 = vmatpush1.msra.mxu0 %v2298
    %2325 = vmatprep.subr.mxu0 0.0
    %2326 = vmatpush1.msra.mxu0 %v2299
    %2327 = vmatprep.subr.mxu0 0.0
    %2328 = vmatpush1.msra.mxu0 %v2300
    %2329 = vmatprep.subr.mxu0 0.0
    %2330 = vmatpush1.msra.mxu0 %v2301
    %2331 = vmatprep.subr.mxu0 0.0
    %2332 = vmatpush1.msra.mxu0 %v2302
    %2333 = vmatprep.subr.mxu0 0.0
    %2334 = vmatpush1.msra.mxu0 %v2303
    %2335 = vmatprep.subr.mxu0 0.0
    %2336 = vmatpush1.msra.mxu0 %v2304
    %2337 = vmatprep.subr.mxu0 0.0
    %2338 = vmatpush1.msra.mxu0 %v2305
    %2339 = vmatprep.subr.mxu0 0.0
    %2340 = vmatpush1.msra.mxu0 %v2306
    %2341 = vmatprep.subr.mxu0 0.0
    %2342 = vmatpush1.msra.mxu0 %v2307
    %2343 = vmatprep.subr.mxu0 0.0
    %2344 = vmatpush1.msra.mxu0 0.0
    %2345 = vmatprep.subr.mxu0 0.0
    %2346 = vmatpush1.msra.mxu0 0.0
    %2347 = vmatprep.subr.mxu0 0.0
    %2348 = vmatpush1.msra.mxu0 0.0
    %2349 = vmatprep.subr.mxu0 0.0
    %2350 = vmatpush1.msra.mxu0 0.0
    %2351 = vmatprep.subr.mxu0 0.0
    %2352 = vmatpush1.msra.mxu0 0.0
    %2353 = vmatprep.subr.mxu0 0.0
    %2354 = vmatpush1.msra.mxu0 0.0
    %2355 = vmatprep.subr.mxu0 0.0
    %2356 = vmatpush1.msra.mxu0 0.0
    %2357 = vmatprep.subr.mxu0 0.0
    %2358 = vmatpush1.msra.mxu0 0.0
    %2359 = vmatprep.subr.mxu0 0.0
    %2360 = vmatpush1.msra.mxu0 0.0
    %2361 = vmatprep.subr.mxu0 0.0
    %2362 = vmatpush1.msra.mxu0 0.0
    %2363 = vmatprep.subr.mxu0 0.0
    %2364 = vmatpush1.msra.mxu0 0.0
    %2365 = vmatprep.subr.mxu0 0.0
    %2366 = vmatpush1.msra.mxu0 0.0
    %2367 = vmatprep.subr.mxu0 0.0
    %2368 = vmatpush1.msra.mxu0 0.0
    %2369 = vmatprep.subr.mxu0 0.0
    %2370 = vmatpush1.msra.mxu0 0.0
    %2371 = vmatprep.subr.mxu0 0.0
    %2372 = vmatpush1.msra.mxu0 0.0
    %2373 = vmatprep.subr.mxu0 0.0
    %2374 = vmatpush1.msra.mxu0 0.0
    %2375 = vmatprep.subr.mxu0 0.0
    %2376 = vmatpush1.msra.mxu0 0.0
    %2377 = vmatprep.subr.mxu0 0.0
    %2378 = vmatpush1.msra.mxu0 0.0
    %2379 = vmatprep.subr.mxu0 0.0
    %2380 = vmatpush1.msra.mxu0 0.0
    %2381 = vmatprep.mubr.f32.mxu0 0.0
    %2382 = vmatmul.mubr.f32.gmra.mrb[0].mxu0 %v2312
    %v2383 = vpop.f32.mrb[0].mxu0
    %v2384 = vadd.f32 0.0, %v2383
    %v2385 = vpop.f32.mrb[0].mxu0
    %2386 = vmatprep.mubr.f32.mxu0 0.0
    %2387 = vmatmul.mubr.f32.gmra.mrb[0].mxu0 %v2315
    %v2388 = vpop.f32.mrb[0].mxu0
    %v2389 = vadd.f32 0.0, %v2388
    %v2390 = vpop.f32.mrb[0].mxu0
    %2391 = vdwg.mxu0
    %2392 = vst [vmem:[#allocation5] sm:$0xff] %v2384
    %2393 = vst [vmem:[#allocation5 + $0x8] sm:$0xff] %v2389
    %v2394 = vld [vmem:[#allocation5] sm:$0x1]
    %v2395 = vlaneseq
    %vm2396 = vcmp.ge.s32.totalorder %v2395, 0
    %vm2397 = vcmp.lt.s32.totalorder %v2395, 16
    %vm2398 = vmand %vm2396, %vm2397
    %2399 = vst.msk [vmem:[#allocation6] sm:$0x1] %vm2398, %v2394
    %v2400 = vld [vmem:[#allocation5 + $0x1] sm:$0x1]
    %v2403 = vunpack.c.l.s4 1966171168
    %v2404 = vunpack.c.0.s8 %v2403
    %v2405 = vlaneseq
    %v2406 = vshrl.u32 %v2405, 7
    %v2407 = vsub.s32 %v2404, %v2406
    %v2408 = vrot.slane %v2400, %v2407
    %v2410 = vunpack.c.l.s4 1966171168
    %v2411 = vunpack.c.0.s8 %v2410
    %v2412 = vlaneseq
    %v2413 = vshrl.u32 %v2412, 7
    %v2414 = vsub.s32 %v2411, %v2413
    %v2415 = vrot.slane %v2408, %v2414
    %2416 = vrot.lane.b32.xlu0 %v2415, 16
    %v2417 = vpop.permute.xlu0 %2416
    %vm2419 = vcmp.ge.s32.totalorder %v2395, 16
    %vm2420 = vcmp.lt.s32.totalorder %v2395, 32
    %vm2421 = vmand %vm2419, %vm2420
    %2422 = vst.msk [vmem:[#allocation6] sm:$0x1] %vm2421, %v2417
    %v2423 = vld [vmem:[#allocation5 + $0x2] sm:$0x1]
    %v2426 = vunpack.c.l.s4 1966171168
    %v2427 = vunpack.c.0.s8 %v2426
    %v2428 = vlaneseq
    %v2429 = vshrl.u32 %v2428, 7
    %v2430 = vsub.s32 %v2427, %v2429
    %v2431 = vrot.slane %v2423, %v2430
    %v2433 = vunpack.c.l.s4 1966171168
    %v2434 = vunpack.c.0.s8 %v2433
    %v2435 = vlaneseq
    %v2436 = vshrl.u32 %v2435, 7
    %v2437 = vsub.s32 %v2434, %v2436
    %v2438 = vrot.slane %v2431, %v2437
    %2439 = vrot.lane.b32.xlu0 %v2438, 32
    %v2440 = vpop.permute.xlu0 %2439
    %vm2442 = vcmp.ge.s32.totalorder %v2395, 32
    %vm2443 = vcmp.lt.s32.totalorder %v2395, 48
    %vm2444 = vmand %vm2442, %vm2443
    %2445 = vst.msk [vmem:[#allocation6] sm:$0x1] %vm2444, %v2440
    %v2446 = vld [vmem:[#allocation5 + $0x3] sm:$0x1]
    %v2449 = vunpack.c.l.s4 1966171168
    %v2450 = vunpack.c.0.s8 %v2449
    %v2451 = vlaneseq
    %v2452 = vshrl.u32 %v2451, 7
    %v2453 = vsub.s32 %v2450, %v2452
    %v2454 = vrot.slane %v2446, %v2453
    %v2456 = vunpack.c.l.s4 1966171168
    %v2457 = vunpack.c.0.s8 %v2456
    %v2458 = vlaneseq
    %v2459 = vshrl.u32 %v2458, 7
    %v2460 = vsub.s32 %v2457, %v2459
    %v2461 = vrot.slane %v2454, %v2460
    %2462 = vrot.lane.b32.xlu0 %v2461, 48
    %v2463 = vpop.permute.xlu0 %2462
    %vm2465 = vcmp.ge.s32.totalorder %v2395, 48
    %vm2466 = vcmp.lt.s32.totalorder %v2395, 64
    %vm2467 = vmand %vm2465, %vm2466
    %2468 = vst.msk [vmem:[#allocation6] sm:$0x1] %vm2467, %v2463
    %v2469 = vld [vmem:[#allocation5 + $0x4] sm:$0x1]
    %v2472 = vunpack.c.l.s4 1966171168
    %v2473 = vunpack.c.0.s8 %v2472
    %v2474 = vlaneseq
    %v2475 = vshrl.u32 %v2474, 7
    %v2476 = vsub.s32 %v2473, %v2475
    %v2477 = vrot.slane %v2469, %v2476
    %v2479 = vunpack.c.l.s4 1966171168
    %v2480 = vunpack.c.0.s8 %v2479
    %v2481 = vlaneseq
    %v2482 = vshrl.u32 %v2481, 7
    %v2483 = vsub.s32 %v2480, %v2482
    %v2484 = vrot.slane %v2477, %v2483
    %2485 = vrot.lane.b32.xlu0 %v2484, 64
    %v2486 = vpop.permute.xlu0 %2485
    %vm2488 = vcmp.ge.s32.totalorder %v2395, 64
    %vm2489 = vcmp.lt.s32.totalorder %v2395, 80
    %vm2490 = vmand %vm2488, %vm2489
    %2491 = vst.msk [vmem:[#allocation6] sm:$0x1] %vm2490, %v2486
    %v2492 = vld [vmem:[#allocation5 + $0x5] sm:$0x1]
    %v2495 = vunpack.c.l.s4 1966171168
    %v2496 = vunpack.c.0.s8 %v2495
    %v2497 = vlaneseq
    %v2498 = vshrl.u32 %v2497, 7
    %v2499 = vsub.s32 %v2496, %v2498
    %v2500 = vrot.slane %v2492, %v2499
    %v2502 = vunpack.c.l.s4 1966171168
    %v2503 = vunpack.c.0.s8 %v2502
    %v2504 = vlaneseq
    %v2505 = vshrl.u32 %v2504, 7
    %v2506 = vsub.s32 %v2503, %v2505
    %v2507 = vrot.slane %v2500, %v2506
    %2508 = vrot.lane.b32.xlu0 %v2507, 80
    %v2509 = vpop.permute.xlu0 %2508
    %vm2511 = vcmp.ge.s32.totalorder %v2395, 80
    %vm2512 = vcmp.lt.s32.totalorder %v2395, 96
    %vm2513 = vmand %vm2511, %vm2512
    %2514 = vst.msk [vmem:[#allocation6] sm:$0x1] %vm2513, %v2509
    %v2515 = vld [vmem:[#allocation5 + $0x6] sm:$0x1]
    %v2518 = vunpack.c.l.s4 1966171168
    %v2519 = vunpack.c.0.s8 %v2518
    %v2520 = vlaneseq
    %v2521 = vshrl.u32 %v2520, 7
    %v2522 = vsub.s32 %v2519, %v2521
    %v2523 = vrot.slane %v2515, %v2522
    %v2525 = vunpack.c.l.s4 1966171168
    %v2526 = vunpack.c.0.s8 %v2525
    %v2527 = vlaneseq
    %v2528 = vshrl.u32 %v2527, 7
    %v2529 = vsub.s32 %v2526, %v2528
    %v2530 = vrot.slane %v2523, %v2529
    %2531 = vrot.lane.b32.xlu0 %v2530, 96
    %v2532 = vpop.permute.xlu0 %2531
    %vm2534 = vcmp.ge.s32.totalorder %v2395, 96
    %vm2535 = vcmp.lt.s32.totalorder %v2395, 112
    %vm2536 = vmand %vm2534, %vm2535
    %2537 = vst.msk [vmem:[#allocation6] sm:$0x1] %vm2536, %v2532
    %v2538 = vld [vmem:[#allocation5 + $0x7] sm:$0x1]
    %v2541 = vunpack.c.l.s4 1966171168
    %v2542 = vunpack.c.0.s8 %v2541
    %v2543 = vlaneseq
    %v2544 = vshrl.u32 %v2543, 7
    %v2545 = vsub.s32 %v2542, %v2544
    %v2546 = vrot.slane %v2538, %v2545
    %v2548 = vunpack.c.l.s4 1966171168
    %v2549 = vunpack.c.0.s8 %v2548
    %v2550 = vlaneseq
    %v2551 = vshrl.u32 %v2550, 7
    %v2552 = vsub.s32 %v2549, %v2551
    %v2553 = vrot.slane %v2546, %v2552
    %2554 = vrot.lane.b32.xlu0 %v2553, 112
    %v2555 = vpop.permute.xlu0 %2554
    %vm2557 = vcmp.ge.s32.totalorder %v2395, 112
    %vm2558 = vcmp.lt.s32.totalorder %v2395, 128
    %vm2559 = vmand %vm2557, %vm2558
    %2560 = vst.msk [vmem:[#allocation6] sm:$0x1] %vm2559, %v2555
    %v2561 = vld [vmem:[#allocation5 + $0x8] sm:$0x1]
    %2562 = vst.msk [vmem:[#allocation6 + $0x1] sm:$0x1] %vm2398, %v2561
    %v2563 = vld [vmem:[#allocation5 + $0x9] sm:$0x1]
    %v2566 = vunpack.c.l.s4 1966171168
    %v2567 = vunpack.c.0.s8 %v2566
    %v2568 = vlaneseq
    %v2569 = vshrl.u32 %v2568, 7
    %v2570 = vsub.s32 %v2567, %v2569
    %v2571 = vrot.slane %v2563, %v2570
    %v2573 = vunpack.c.l.s4 1966171168
    %v2574 = vunpack.c.0.s8 %v2573
    %v2575 = vlaneseq
    %v2576 = vshrl.u32 %v2575, 7
    %v2577 = vsub.s32 %v2574, %v2576
    %v2578 = vrot.slane %v2571, %v2577
    %2579 = vrot.lane.b32.xlu0 %v2578, 16
    %v2580 = vpop.permute.xlu0 %2579
    %2582 = vst.msk [vmem:[#allocation6 + $0x1] sm:$0x1] %vm2421, %v2580
    %v2583 = vld [vmem:[#allocation5 + $0xa] sm:$0x1]
    %v2586 = vunpack.c.l.s4 1966171168
    %v2587 = vunpack.c.0.s8 %v2586
    %v2588 = vlaneseq
    %v2589 = vshrl.u32 %v2588, 7
    %v2590 = vsub.s32 %v2587, %v2589
    %v2591 = vrot.slane %v2583, %v2590
    %v2593 = vunpack.c.l.s4 1966171168
    %v2594 = vunpack.c.0.s8 %v2593
    %v2595 = vlaneseq
    %v2596 = vshrl.u32 %v2595, 7
    %v2597 = vsub.s32 %v2594, %v2596
    %v2598 = vrot.slane %v2591, %v2597
    %2599 = vrot.lane.b32.xlu0 %v2598, 32
    %v2600 = vpop.permute.xlu0 %2599
    %2602 = vst.msk [vmem:[#allocation6 + $0x1] sm:$0x1] %vm2444, %v2600
    %v2603 = vld [vmem:[#allocation5 + $0xb] sm:$0x1]
    %v2606 = vunpack.c.l.s4 1966171168
    %v2607 = vunpack.c.0.s8 %v2606
    %v2608 = vlaneseq
    %v2609 = vshrl.u32 %v2608, 7
    %v2610 = vsub.s32 %v2607, %v2609
    %v2611 = vrot.slane %v2603, %v2610
    %v2613 = vunpack.c.l.s4 1966171168
    %v2614 = vunpack.c.0.s8 %v2613
    %v2615 = vlaneseq
    %v2616 = vshrl.u32 %v2615, 7
    %v2617 = vsub.s32 %v2614, %v2616
    %v2618 = vrot.slane %v2611, %v2617
    %2619 = vrot.lane.b32.xlu0 %v2618, 48
    %v2620 = vpop.permute.xlu0 %2619
    %2622 = vst.msk [vmem:[#allocation6 + $0x1] sm:$0x1] %vm2467, %v2620
    %v2623 = vld [vmem:[#allocation5 + $0xc] sm:$0x1]
    %v2626 = vunpack.c.l.s4 1966171168
    %v2627 = vunpack.c.0.s8 %v2626
    %v2628 = vlaneseq
    %v2629 = vshrl.u32 %v2628, 7
    %v2630 = vsub.s32 %v2627, %v2629
    %v2631 = vrot.slane %v2623, %v2630
    %v2633 = vunpack.c.l.s4 1966171168
    %v2634 = vunpack.c.0.s8 %v2633
    %v2635 = vlaneseq
    %v2636 = vshrl.u32 %v2635, 7
    %v2637 = vsub.s32 %v2634, %v2636
    %v2638 = vrot.slane %v2631, %v2637
    %2639 = vrot.lane.b32.xlu0 %v2638, 64
    %v2640 = vpop.permute.xlu0 %2639
    %2642 = vst.msk [vmem:[#allocation6 + $0x1] sm:$0x1] %vm2490, %v2640
    %v2643 = vld [vmem:[#allocation5 + $0xd] sm:$0x1]
    %v2646 = vunpack.c.l.s4 1966171168
    %v2647 = vunpack.c.0.s8 %v2646
    %v2648 = vlaneseq
    %v2649 = vshrl.u32 %v2648, 7
    %v2650 = vsub.s32 %v2647, %v2649
    %v2651 = vrot.slane %v2643, %v2650
    %v2653 = vunpack.c.l.s4 1966171168
    %v2654 = vunpack.c.0.s8 %v2653
    %v2655 = vlaneseq
    %v2656 = vshrl.u32 %v2655, 7
    %v2657 = vsub.s32 %v2654, %v2656
    %v2658 = vrot.slane %v2651, %v2657
    %2659 = vrot.lane.b32.xlu0 %v2658, 80
    %v2660 = vpop.permute.xlu0 %2659
    %2662 = vst.msk [vmem:[#allocation6 + $0x1] sm:$0x1] %vm2513, %v2660
    %v2663 = vld [vmem:[#allocation5 + $0xe] sm:$0x1]
    %v2666 = vunpack.c.l.s4 1966171168
    %v2667 = vunpack.c.0.s8 %v2666
    %v2668 = vlaneseq
    %v2669 = vshrl.u32 %v2668, 7
    %v2670 = vsub.s32 %v2667, %v2669
    %v2671 = vrot.slane %v2663, %v2670
    %v2673 = vunpack.c.l.s4 1966171168
    %v2674 = vunpack.c.0.s8 %v2673
    %v2675 = vlaneseq
    %v2676 = vshrl.u32 %v2675, 7
    %v2677 = vsub.s32 %v2674, %v2676
    %v2678 = vrot.slane %v2671, %v2677
    %2679 = vrot.lane.b32.xlu0 %v2678, 96
    %v2680 = vpop.permute.xlu0 %2679
    %2682 = vst.msk [vmem:[#allocation6 + $0x1] sm:$0x1] %vm2536, %v2680
    %v2683 = vld [vmem:[#allocation5 + $0xf] sm:$0x1]
    %v2686 = vunpack.c.l.s4 1966171168
    %v2687 = vunpack.c.0.s8 %v2686
    %v2688 = vlaneseq
    %v2689 = vshrl.u32 %v2688, 7
    %v2690 = vsub.s32 %v2687, %v2689
    %v2691 = vrot.slane %v2683, %v2690
    %v2693 = vunpack.c.l.s4 1966171168
    %v2694 = vunpack.c.0.s8 %v2693
    %v2695 = vlaneseq
    %v2696 = vshrl.u32 %v2695, 7
    %v2697 = vsub.s32 %v2694, %v2696
    %v2698 = vrot.slane %v2691, %v2697
    %2699 = vrot.lane.b32.xlu0 %v2698, 112
    %v2700 = vpop.permute.xlu0 %2699
    %2702 = vst.msk [vmem:[#allocation6 + $0x1] sm:$0x1] %vm2559, %v2700
    %v2703 = vld [vmem:[%s1] sm:$0x1]
    %vm2704 = vmand %vm2396, %vm2558
    %2705 = vst.msk [vmem:[#allocation6 + $0x2] sm:$0x1] %vm2704, %v2703
    %v2706 = vld [vmem:[#allocation6] sm:$0x7]
    %v2707 = vld [vmem:[%s8] sm:$0xff]
    %v2708 = vld [vmem:[%s8 + $0x8] sm:$0xff]
    %v2709 = vld [vmem:[%s8 + $0x10] sm:$0xff]
    %v2710 = vld [vmem:[%s8 + $0x18] sm:$0xff]
    %v2711 = vld [vmem:[%s8 + $0x20] sm:$0xff]
    %v2712 = vld [vmem:[%s8 + $0x28] sm:$0xff]
    %v2713 = vld [vmem:[%s8 + $0x30] sm:$0xff]
    %v2714 = vld [vmem:[%s8 + $0x38] sm:$0xff]
    %v2715 = vld [vmem:[%s8 + $0x40] sm:$0xff]
    %v2716 = vld [vmem:[%s8 + $0x48] sm:$0xff]
    %v2717 = vld [vmem:[%s8 + $0x50] sm:$0xff]
    %v2718 = vld [vmem:[%s8 + $0x58] sm:$0xff]
    %v2719 = vld [vmem:[%s8 + $0x60] sm:$0xff]
    %v2720 = vld [vmem:[%s8 + $0x68] sm:$0xff]
    %v2721 = vld [vmem:[%s8 + $0x70] sm:$0xff]
    %v2722 = vld [vmem:[%s8 + $0x78] sm:$0xff]
    %v2723 = vld [vmem:[%s8 + $0x80] sm:$0xff]
    %v2724 = vld [vmem:[%s8 + $0x88] sm:$0xff]
    %v2725 = vld [vmem:[%s8 + $0x90] sm:$0xff]
    %v2726 = vld [vmem:[%s8 + $0x98] sm:$0xff]
    %v2727 = vld [vmem:[%s8 + $0xa0] sm:$0xff]
    %v2728 = vld [vmem:[%s8 + $0xa8] sm:$0xff]
    %v2729 = vld [vmem:[%s8 + $0xb0] sm:$0xff]
    %v2730 = vld [vmem:[%s8 + $0xb8] sm:$0xff]
    %v2731 = vld [vmem:[%s8 + $0xc0] sm:$0xff]
    %v2732 = vld [vmem:[%s8 + $0xc8] sm:$0xff]
    %v2733 = vld [vmem:[%s8 + $0xd0] sm:$0xff]
    %v2734 = vld [vmem:[%s8 + $0xd8] sm:$0xff]
    %v2735 = vld [vmem:[%s8 + $0xe0] sm:$0xff]
    %v2736 = vld [vmem:[%s8 + $0xe8] sm:$0xff]
    %v2737 = vld [vmem:[%s8 + $0xf0] sm:$0xff]
    %v2738 = vld [vmem:[%s8 + $0xf8] sm:$0xff]
    %v2739 = vld [vmem:[%s8 + $0x100] sm:$0xff]
    %v2740 = vld [vmem:[%s8 + $0x108] sm:$0xff]
    %v2741 = vld [vmem:[%s8 + $0x110] sm:$0xff]
    %v2742 = vld [vmem:[%s8 + $0x118] sm:$0xff]
    %v2743 = vld [vmem:[%s8 + $0x120] sm:$0xff]
    %v2744 = vld [vmem:[%s8 + $0x128] sm:$0xff]
    %v2745 = vld [vmem:[%s8 + $0x130] sm:$0xff]
    %v2746 = vld [vmem:[%s8 + $0x138] sm:$0xff]
    %v2747 = vld [vmem:[%s8 + $0x140] sm:$0xff]
    %v2748 = vld [vmem:[%s8 + $0x148] sm:$0xff]
    %v2749 = vld [vmem:[%s8 + $0x150] sm:$0xff]
    %v2750 = vld [vmem:[%s8 + $0x158] sm:$0xff]
    %v2751 = vld [vmem:[%s8 + $0x160] sm:$0xff]
    %v2752 = vld [vmem:[%s8 + $0x168] sm:$0xff]
    %v2753 = vld [vmem:[%s8 + $0x170] sm:$0xff]
    %v2754 = vld [vmem:[%s8 + $0x178] sm:$0xff]
    %v2755 = vld [vmem:[%s9] sm:$0x1]
    %v2757 = vlaneseq
    %v2758 = vshrl.u32 %v2757, 7
    %v2759 = vsub.s32 0, %v2758
    %v2760 = vrot.slane %v2706, %v2759
    %v2761 = vlaneseq
    %v2762 = vshrl.u32 %v2761, 7
    %v2763 = vsub.s32 1, %v2762
    %v2764 = vrot.slane %v2706, %v2763
    %v2765 = vlaneseq
    %v2766 = vshrl.u32 %v2765, 7
    %v2767 = vsub.s32 2, %v2766
    %v2768 = vrot.slane %v2706, %v2767
    %2772 = vmatprep.subr.mxu0 0.0
    %2773 = vmatpush1.msra.mxu0 %v2707
    %2774 = vmatprep.subr.mxu0 0.0
    %2775 = vmatpush1.msra.mxu0 %v2708
    %2776 = vmatprep.subr.mxu0 0.0
    %2777 = vmatpush1.msra.mxu0 %v2709
    %2778 = vmatprep.subr.mxu0 0.0
    %2779 = vmatpush1.msra.mxu0 %v2710
    %2780 = vmatprep.subr.mxu0 0.0
    %2781 = vmatpush1.msra.mxu0 %v2711
    %2782 = vmatprep.subr.mxu0 0.0
    %2783 = vmatpush1.msra.mxu0 %v2712
    %2784 = vmatprep.subr.mxu0 0.0
    %2785 = vmatpush1.msra.mxu0 %v2713
    %2786 = vmatprep.subr.mxu0 0.0
    %2787 = vmatpush1.msra.mxu0 %v2714
    %2788 = vmatprep.subr.mxu0 0.0
    %2789 = vmatpush1.msra.mxu0 %v2715
    %2790 = vmatprep.subr.mxu0 0.0
    %2791 = vmatpush1.msra.mxu0 %v2716
    %2792 = vmatprep.subr.mxu0 0.0
    %2793 = vmatpush1.msra.mxu0 %v2717
    %2794 = vmatprep.subr.mxu0 0.0
    %2795 = vmatpush1.msra.mxu0 %v2718
    %2796 = vmatprep.subr.mxu0 0.0
    %2797 = vmatpush1.msra.mxu0 %v2719
    %2798 = vmatprep.subr.mxu0 0.0
    %2799 = vmatpush1.msra.mxu0 %v2720
    %2800 = vmatprep.subr.mxu0 0.0
    %2801 = vmatpush1.msra.mxu0 %v2721
    %2802 = vmatprep.subr.mxu0 0.0
    %2803 = vmatpush1.msra.mxu0 %v2722
    %2804 = vmatprep.subr.mxu0 0.0
    %2805 = vmatpush1.msra.mxu0 %v2723
    %2806 = vmatprep.subr.mxu0 0.0
    %2807 = vmatpush1.msra.mxu0 %v2724
    %2808 = vmatprep.subr.mxu0 0.0
    %2809 = vmatpush1.msra.mxu0 %v2725
    %2810 = vmatprep.subr.mxu0 0.0
    %2811 = vmatpush1.msra.mxu0 %v2726
    %2812 = vmatprep.subr.mxu0 0.0
    %2813 = vmatpush1.msra.mxu0 %v2727
    %2814 = vmatprep.subr.mxu0 0.0
    %2815 = vmatpush1.msra.mxu0 %v2728
    %2816 = vmatprep.subr.mxu0 0.0
    %2817 = vmatpush1.msra.mxu0 %v2729
    %2818 = vmatprep.subr.mxu0 0.0
    %2819 = vmatpush1.msra.mxu0 %v2730
    %2820 = vmatprep.subr.mxu0 0.0
    %2821 = vmatpush1.msra.mxu0 %v2731
    %2822 = vmatprep.subr.mxu0 0.0
    %2823 = vmatpush1.msra.mxu0 %v2732
    %2824 = vmatprep.subr.mxu0 0.0
    %2825 = vmatpush1.msra.mxu0 %v2733
    %2826 = vmatprep.subr.mxu0 0.0
    %2827 = vmatpush1.msra.mxu0 %v2734
    %2828 = vmatprep.subr.mxu0 0.0
    %2829 = vmatpush1.msra.mxu0 %v2735
    %2830 = vmatprep.subr.mxu0 0.0
    %2831 = vmatpush1.msra.mxu0 %v2736
    %2832 = vmatprep.subr.mxu0 0.0
    %2833 = vmatpush1.msra.mxu0 %v2737
    %2834 = vmatprep.subr.mxu0 0.0
    %2835 = vmatpush1.msra.mxu0 %v2738
    %2836 = vmatprep.mubr.f32.mxu0 %v2764
    %2837 = vmatmul.mubr.f32.gmra.mrb[0].mxu0 %v2760
    %v2838 = vpop.f32.mrb[0].mxu0
    %v2839 = vadd.f32 %v2755, %v2838
    %v2840 = vpop.f32.mrb[0].mxu0
    %2841 = vdwg.mxu0
    %2842 = vmatprep.subr.mxu0 0.0
    %2843 = vmatpush1.msra.mxu0 %v2739
    %2844 = vmatprep.subr.mxu0 0.0
    %2845 = vmatpush1.msra.mxu0 %v2740
    %2846 = vmatprep.subr.mxu0 0.0
    %2847 = vmatpush1.msra.mxu0 %v2741
    %2848 = vmatprep.subr.mxu0 0.0
    %2849 = vmatpush1.msra.mxu0 %v2742
    %2850 = vmatprep.subr.mxu0 0.0
    %2851 = vmatpush1.msra.mxu0 %v2743
    %2852 = vmatprep.subr.mxu0 0.0
    %2853 = vmatpush1.msra.mxu0 %v2744
    %2854 = vmatprep.subr.mxu0 0.0
    %2855 = vmatpush1.msra.mxu0 %v2745
    %2856 = vmatprep.subr.mxu0 0.0
    %2857 = vmatpush1.msra.mxu0 %v2746
    %2858 = vmatprep.subr.mxu0 0.0
    %2859 = vmatpush1.msra.mxu0 %v2747
    %2860 = vmatprep.subr.mxu0 0.0
    %2861 = vmatpush1.msra.mxu0 %v2748
    %2862 = vmatprep.subr.mxu0 0.0
    %2863 = vmatpush1.msra.mxu0 %v2749
    %2864 = vmatprep.subr.mxu0 0.0
    %2865 = vmatpush1.msra.mxu0 %v2750
    %2866 = vmatprep.subr.mxu0 0.0
    %2867 = vmatpush1.msra.mxu0 %v2751
    %2868 = vmatprep.subr.mxu0 0.0
    %2869 = vmatpush1.msra.mxu0 %v2752
    %2870 = vmatprep.subr.mxu0 0.0
    %2871 = vmatpush1.msra.mxu0 %v2753
    %2872 = vmatprep.subr.mxu0 0.0
    %2873 = vmatpush1.msra.mxu0 %v2754
    %2874 = vmatprep.subr.mxu0 0.0
    %2875 = vmatpush1.msra.mxu0 0.0
    %2876 = vmatprep.subr.mxu0 0.0
    %2877 = vmatpush1.msra.mxu0 0.0
    %2878 = vmatprep.subr.mxu0 0.0
    %2879 = vmatpush1.msra.mxu0 0.0
    %2880 = vmatprep.subr.mxu0 0.0
    %2881 = vmatpush1.msra.mxu0 0.0
    %2882 = vmatprep.subr.mxu0 0.0
    %2883 = vmatpush1.msra.mxu0 0.0
    %2884 = vmatprep.subr.mxu0 0.0
    %2885 = vmatpush1.msra.mxu0 0.0
    %2886 = vmatprep.subr.mxu0 0.0
    %2887 = vmatpush1.msra.mxu0 0.0
    %2888 = vmatprep.subr.mxu0 0.0
    %2889 = vmatpush1.msra.mxu0 0.0
    %2890 = vmatprep.subr.mxu0 0.0
    %2891 = vmatpush1.msra.mxu0 0.0
    %2892 = vmatprep.subr.mxu0 0.0
    %2893 = vmatpush1.msra.mxu0 0.0
    %2894 = vmatprep.subr.mxu0 0.0
    %2895 = vmatpush1.msra.mxu0 0.0
    %2896 = vmatprep.subr.mxu0 0.0
    %2897 = vmatpush1.msra.mxu0 0.0
    %2898 = vmatprep.subr.mxu0 0.0
    %2899 = vmatpush1.msra.mxu0 0.0
    %2900 = vmatprep.subr.mxu0 0.0
    %2901 = vmatpush1.msra.mxu0 0.0
    %2902 = vmatprep.subr.mxu0 0.0
    %2903 = vmatpush1.msra.mxu0 0.0
    %2904 = vmatprep.subr.mxu0 0.0
    %2905 = vmatpush1.msra.mxu0 0.0
    %2906 = vmatprep.mubr.f32.mxu0 0.0
    %2907 = vmatmul.mubr.f32.gmra.mrb[0].mxu0 %v2768
    %v2908 = vpop.f32.mrb[0].mxu0
    %v2909 = vadd.f32 %v2839, %v2908
    %v2910 = vpop.f32.mrb[0].mxu0
    %2911 = vdwg.mxu0
    %v2912 = vmax.f32 %v2909, 0.0
    %v2913 = vld [vmem:[%s10] sm:$0xff]
    %v2914 = vld [vmem:[%s10 + $0x8] sm:$0xff]
    %v2915 = vld [vmem:[%s10 + $0x10] sm:$0xff]
    %v2916 = vld [vmem:[%s10 + $0x18] sm:$0xff]
    %v2917 = vld [vmem:[%s10 + $0x20] sm:$0xff]
    %v2918 = vld [vmem:[%s10 + $0x28] sm:$0xff]
    %v2919 = vld [vmem:[%s10 + $0x30] sm:$0xff]
    %v2920 = vld [vmem:[%s10 + $0x38] sm:$0xff]
    %v2921 = vld [vmem:[%s10 + $0x40] sm:$0xff]
    %v2922 = vld [vmem:[%s10 + $0x48] sm:$0xff]
    %v2923 = vld [vmem:[%s10 + $0x50] sm:$0xff]
    %v2924 = vld [vmem:[%s10 + $0x58] sm:$0xff]
    %v2925 = vld [vmem:[%s10 + $0x60] sm:$0xff]
    %v2926 = vld [vmem:[%s10 + $0x68] sm:$0xff]
    %v2927 = vld [vmem:[%s10 + $0x70] sm:$0xff]
    %v2928 = vld [vmem:[%s10 + $0x78] sm:$0xff]
    %v2929 = vld [vmem:[%s11] sm:$0x1]
    %2930 = vmatprep.subr.mxu0 0.0
    %2931 = vmatpush1.msra.mxu0 %v2913
    %2932 = vmatprep.subr.mxu0 0.0
    %2933 = vmatpush1.msra.mxu0 %v2914
    %2934 = vmatprep.subr.mxu0 0.0
    %2935 = vmatpush1.msra.mxu0 %v2915
    %2936 = vmatprep.subr.mxu0 0.0
    %2937 = vmatpush1.msra.mxu0 %v2916
    %2938 = vmatprep.subr.mxu0 0.0
    %2939 = vmatpush1.msra.mxu0 %v2917
    %2940 = vmatprep.subr.mxu0 0.0
    %2941 = vmatpush1.msra.mxu0 %v2918
    %2942 = vmatprep.subr.mxu0 0.0
    %2943 = vmatpush1.msra.mxu0 %v2919
    %2944 = vmatprep.subr.mxu0 0.0
    %2945 = vmatpush1.msra.mxu0 %v2920
    %2946 = vmatprep.subr.mxu0 0.0
    %2947 = vmatpush1.msra.mxu0 %v2921
    %2948 = vmatprep.subr.mxu0 0.0
    %2949 = vmatpush1.msra.mxu0 %v2922
    %2950 = vmatprep.subr.mxu0 0.0
    %2951 = vmatpush1.msra.mxu0 %v2923
    %2952 = vmatprep.subr.mxu0 0.0
    %2953 = vmatpush1.msra.mxu0 %v2924
    %2954 = vmatprep.subr.mxu0 0.0
    %2955 = vmatpush1.msra.mxu0 %v2925
    %2956 = vmatprep.subr.mxu0 0.0
    %2957 = vmatpush1.msra.mxu0 %v2926
    %2958 = vmatprep.subr.mxu0 0.0
    %2959 = vmatpush1.msra.mxu0 %v2927
    %2960 = vmatprep.subr.mxu0 0.0
    %2961 = vmatpush1.msra.mxu0 %v2928
    %2962 = vmatprep.subr.mxu0 0.0
    %2963 = vmatpush1.msra.mxu0 0.0
    %2964 = vmatprep.subr.mxu0 0.0
    %2965 = vmatpush1.msra.mxu0 0.0
    %2966 = vmatprep.subr.mxu0 0.0
    %2967 = vmatpush1.msra.mxu0 0.0
    %2968 = vmatprep.subr.mxu0 0.0
    %2969 = vmatpush1.msra.mxu0 0.0
    %2970 = vmatprep.subr.mxu0 0.0
    %2971 = vmatpush1.msra.mxu0 0.0
    %2972 = vmatprep.subr.mxu0 0.0
    %2973 = vmatpush1.msra.mxu0 0.0
    %2974 = vmatprep.subr.mxu0 0.0
    %2975 = vmatpush1.msra.mxu0 0.0
    %2976 = vmatprep.subr.mxu0 0.0
    %2977 = vmatpush1.msra.mxu0 0.0
    %2978 = vmatprep.subr.mxu0 0.0
    %2979 = vmatpush1.msra.mxu0 0.0
    %2980 = vmatprep.subr.mxu0 0.0
    %2981 = vmatpush1.msra.mxu0 0.0
    %2982 = vmatprep.subr.mxu0 0.0
    %2983 = vmatpush1.msra.mxu0 0.0
    %2984 = vmatprep.subr.mxu0 0.0
    %2985 = vmatpush1.msra.mxu0 0.0
    %2986 = vmatprep.subr.mxu0 0.0
    %2987 = vmatpush1.msra.mxu0 0.0
    %2988 = vmatprep.subr.mxu0 0.0
    %2989 = vmatpush1.msra.mxu0 0.0
    %2990 = vmatprep.subr.mxu0 0.0
    %2991 = vmatpush1.msra.mxu0 0.0
    %2992 = vmatprep.subr.mxu0 0.0
    %2993 = vmatpush1.msra.mxu0 0.0
    %2994 = vmatprep.mubr.f32.mxu0 0.0
    %2995 = vmatmul.mubr.f32.gmra.mrb[0].mxu0 %v2912
    %v2996 = vpop.f32.mrb[0].mxu0
    %v2997 = vadd.f32 %v2929, %v2996
    %v2998 = vpop.f32.mrb[0].mxu0
    %2999 = vdwg.mxu0
    %vm3000 = vcmask 516096
    %v3001 = vsel %vm3000, %v2997, -inf
    %3002 = vmax.xlane.f32.xlu0 %v3001
    %v3003 = vpop.xlane.xlu0 %3002
    %v3004 = vsub.f32 %v2997, %v3003
    %v3005 = vmul.f32 %v3004, 1.442695
    %v3006 = vpow.pop %v3005
    %v3007 = vsel %vm3000, %v3006, 0.0
    %3008 = vadd.xlane.f32.xlu0 %v3007
    %v3009 = vpop.xlane.xlu0 %3008
    %v3010 = vlog2.pop %v3009
    %v3011 = vmul.f32 %v3010, 0.6931472
    %v3012 = vsub.f32 %v3004, %v3011
    %3013 = vst.msk [vmem:[#allocation7] sm:$0x1] %vm3000, %v3012
    // Predicated region
    $region50: #{lenet_forward.1} parent=1 // pred_check
      _
    $region51: #{lenet_forward.1} parent=1 // pred_check_branch
      %3015 = sbr.rel (0) target = $region53
    $region52: #{lenet_forward.1} parent=1 // pred_region
      %s3017 = ssub.s32 16, 16
      %3018 = vsyncadd [#allocation8], %s3017
      %s3020 = sshll.u32 [#allocation7], 4
      %s3021 = int_to_ptr.vmem [resolvable:$true] %s3020
      %3023 = dma.vmem_to_hbm [thread:$0]  %s3021, 16, %s12, [#allocation8]
    $region53: #{lenet_forward.1} parent=1 // pred_fallthru
      _
    // Predicated region
    $region54: #{lenet_forward.1} parent=1 // pred_check
      _
    $region55: #{lenet_forward.1} parent=1 // pred_check_branch
      %3025 = sbr.rel (0) target = $region57
    $region56: #{lenet_forward.1} parent=1 // pred_region
      %3026 = dma.done [#allocation8], 16
    $region57: #{lenet_forward.1} parent=1 // pred_fallthru
      _
    %3027 = vsyncpa [#allocation8], 1

</llo_original>
